<compile_context>
chip_gen: v7x
topology: tpu7x:2x2x1
jax: 0.10.0
libtpu: 0.0.40
codegen_flags: <defaults>
</compile_context>

<pallas_src>
import jax
import jax.numpy as jnp
from jax.experimental import pallas as pl
from jax.experimental.pallas import tpu as pltpu

CIN_PAD = 8                      # single input channel zero-padded to 8
VMEM_LIMIT = 32 * 1024 * 1024    # explicit scoped-VMEM limit (safe on v5e/v6e/v7x)


# ----------------------------------------------------------------------------
# Fused 5x5 conv (stride 1, "same") + bias + ReLU + 2x2 maxpool.
# One grid step = one image.  dx taps are pre-folded into K by the wrapper.
# ----------------------------------------------------------------------------
def _conv5x5_relu_pool_kernel(x_ref, w_ref, b_ref, o_ref, hpool_ref):
    """
    x_ref:     (1, H+4, W, K)  bf16, K = 5*Cin (width taps folded into channels)
    w_ref:     (5, K, Cout)    bf16, one (K, Cout) matrix per kernel row dy
    b_ref:     (1, Cout)       f32
    o_ref:     (1, H//2, W//2, Cout) bf16
    hpool_ref: (1, H//2, W, Cout)    f32 scratch for the stride-2 column pool
    """
    _, Hp, W, K = x_ref.shape
    H = Hp - 4
    Hh, Wh = H // 2, W // 2
    Cout = w_ref.shape[-1]

    # Convolution: 5 MXU matmuls (one per kernel row), register accumulator.
    acc = jnp.zeros((H * W, Cout), jnp.float32)
    for dy in range(5):
        win = x_ref[:, dy:dy + H, :, :].reshape(H * W, K)          # bf16
        acc = acc + jnp.dot(win, w_ref[dy], preferred_element_type=jnp.float32)

    # bias + ReLU in f32 (VPU), then 2x2 max-pool.
    act = jnp.maximum(acc + b_ref[...], 0.0).reshape(1, Hh, 2, W, Cout)

    # rows pooled in registers ...
    hpool_ref[...] = jnp.maximum(act[:, :, 0], act[:, :, 1])
    # ... columns via stride-2 sublane reads of the small row-pooled scratch
    # (the only supported way to compact every-other sublane).
    even = hpool_ref[:, :, pl.ds(0, Wh, stride=2), :]
    odd = hpool_ref[:, :, pl.ds(1, Wh, stride=2), :]
    o_ref[...] = jnp.maximum(even, odd).astype(o_ref.dtype)


def _dx_expand(x_nhwc):
    """(B, H, W, C) -> (B, H+4, W, 5*C) bf16: 2-px halo + width-tap im2col + cast.

    One fused XLA pass over the (small) activation; it lets the kernel contract
    over K = 5*C per kernel row with zero in-kernel relayout work.
    """
    _, _, W, _ = x_nhwc.shape
    xp = jnp.pad(x_nhwc, ((0, 0), (2, 2), (2, 2), (0, 0)))
    cols = [xp[:, :, dx:dx + W, :] for dx in range(5)]
    return jnp.concatenate(cols, axis=-1).astype(jnp.bfloat16)


def conv5x5_relu_pool(x_nhwc, w_k, bias):
    """x_nhwc: (B, H, W, Cin); w_k: (5, 5*Cin, Cout) bf16; bias: (1, Cout) f32."""
    B, H, W, _ = x_nhwc.shape
    K, Cout = w_k.shape[1], w_k.shape[2]
    Hh, Wh = H // 2, W // 2
    x_dx = _dx_expand(x_nhwc)                                      # (B, H+4, W, K)

    return pl.pallas_call(
        _conv5x5_relu_pool_kernel,
        out_shape=jax.ShapeDtypeStruct((B, Hh, Wh, Cout), jnp.bfloat16),
        grid=(B,),
        in_specs=[
            pl.BlockSpec((1, H + 4, W, K), lambda i: (i, 0, 0, 0)),
            pl.BlockSpec((5, K, Cout), lambda i: (0, 0, 0)),       # weights resident
            pl.BlockSpec((1, Cout), lambda i: (0, 0)),
        ],
        out_specs=pl.BlockSpec((1, Hh, Wh, Cout), lambda i: (i, 0, 0, 0)),
        scratch_shapes=[pltpu.VMEM((1, Hh, W, Cout), jnp.float32)],
        compiler_params=pltpu.CompilerParams(
            dimension_semantics=("parallel",),        # batch across TCs on v7x
            vmem_limit_bytes=VMEM_LIMIT,
        ),
    )(x_dx, w_k, bias)


# ----------------------------------------------------------------------------
# fc1 -> ReLU -> fc2 fused, tiled over fc1's K (feature) dimension.
# wfc1 is streamed in bf16 K-tiles; the hidden accumulator lives in VMEM f32.
# ----------------------------------------------------------------------------
def _mlp_kernel(x_ref, w1_ref, b1_ref, w2_ref, b2_ref, o_ref, acc_ref):
    k = pl.program_id(0)

    @pl.when(k == 0)
    def _():
        acc_ref[...] = jnp.zeros_like(acc_ref)

    acc_ref[...] += jnp.dot(x_ref[...], w1_ref[...],
                            preferred_element_type=jnp.float32)

    @pl.when(k == pl.num_programs(0) - 1)
    def _():
        h = jnp.maximum(acc_ref[...] + b1_ref[...], 0.0).astype(w2_ref.dtype)
        o_ref[...] = (jnp.dot(h, w2_ref[...], preferred_element_type=jnp.float32)
                      + b2_ref[...]).astype(o_ref.dtype)


def mlp(feat, w1, b1, w2, b2, *, tk):
    B, F = feat.shape
    HID = w1.shape[-1]
    NOUT = w2.shape[-1]
    nk = F // tk

    return pl.pallas_call(
        _mlp_kernel,
        out_shape=jax.ShapeDtypeStruct((B, NOUT), jnp.float32),
        grid=(nk,),
        in_specs=[
            pl.BlockSpec((B, tk), lambda k: (0, k)),
            pl.BlockSpec((tk, HID), lambda k: (k, 0)),             # streamed K-tiles
            pl.BlockSpec((1, HID), lambda k: (0, 0)),
            pl.BlockSpec((HID, NOUT), lambda k: (0, 0)),
            pl.BlockSpec((1, NOUT), lambda k: (0, 0)),
        ],
        out_specs=pl.BlockSpec((B, NOUT), lambda k: (0, 0)),
        scratch_shapes=[pltpu.VMEM((B, HID), jnp.float32)],
        compiler_params=pltpu.CompilerParams(
            dimension_semantics=("arbitrary",),       # K is a reduction axis
            vmem_limit_bytes=VMEM_LIMIT,
        ),
    )(feat, w1, b1, w2, b2)


# ----------------------------------------------------------------------------
# Parameters (deterministic synthetic init; shapes follow the PyTorch module)
# ----------------------------------------------------------------------------
def _nchw_to_nhwc_row_perm(Hq, Wq, C):
    """perm[j_nhwc] = j_nchw, so wfc1_nhwc = wfc1_nchw[perm] matches NHWC flatten."""
    h = jnp.arange(Hq)[:, None, None]
    w = jnp.arange(Wq)[None, :, None]
    c = jnp.arange(C)[None, None, :]
    return ((c * Hq + h) * Wq + w).reshape(-1)


def init_params(key, max_height, max_width):
    ks = jax.random.split(key, 8)
    s = 0.05

    # layer1: Conv2d(1, 32, k=5).  Stored as (dy, dx*Cin+c, Cout); Cin padded 1->8.
    w1 = s * jax.random.normal(ks[0], (5, 5, 1, 32), jnp.float32)
    w1 = jnp.pad(w1, ((0, 0), (0, 0), (0, CIN_PAD - 1), (0, 0)))
    w1 = w1.reshape(5, 5 * CIN_PAD, 32).astype(jnp.bfloat16)
    b1 = (s * jax.random.normal(ks[1], (32,), jnp.float32)).reshape(1, 32)

    # layer2: Conv2d(32, 64, k=5)
    w2 = s * jax.random.normal(ks[2], (5, 5, 32, 64), jnp.float32)
    w2 = w2.reshape(5, 5 * 32, 64).astype(jnp.bfloat16)
    b2 = (s * jax.random.normal(ks[3], (64,), jnp.float32)).reshape(1, 64)

    Hq, Wq, C2 = max_height // 4, max_width // 4, 64
    feat = Hq * Wq * C2
    hid, hid_pad, out_pad = 1000, 1024, 128

    # fc1 weight generated in PyTorch NCHW-flatten row order, then permuted to
    # NHWC order so the activation transpose before the flatten can be dropped.
    wfc1 = s * jax.random.normal(ks[4], (feat, hid), jnp.float32)
    wfc1 = wfc1[_nchw_to_nhwc_row_perm(Hq, Wq, C2), :]
    bfc1 = s * jax.random.normal(ks[5], (hid,), jnp.float32)
    wfc2 = s * jax.random.normal(ks[6], (hid, 1), jnp.float32)
    bfc2 = s * jax.random.normal(ks[7], (1,), jnp.float32)

    # Zero padding is exact: padded fc1 columns give relu(0)=0 and hit zero fc2
    # rows; padded fc2 output columns are sliced off in the wrapper.
    wfc1_p = jnp.pad(wfc1, ((0, 0), (0, hid_pad - hid))).astype(jnp.bfloat16)
    bfc1_p = jnp.pad(bfc1, ((0, hid_pad - hid),)).reshape(1, hid_pad)
    wfc2_p = jnp.pad(wfc2, ((0, hid_pad - hid), (0, out_pad - 1))).astype(jnp.bfloat16)
    bfc2_p = jnp.pad(bfc2, ((0, out_pad - 1),)).reshape(1, out_pad)

    return dict(w1=w1, b1=b1, w2=w2, b2=b2,
                wfc1=wfc1_p, bfc1=bfc1_p, wfc2=wfc2_p, bfc2=bfc2_p)


# ----------------------------------------------------------------------------
# Forward pass (matches ComplexCNN.forward in eval mode)
# ----------------------------------------------------------------------------
def complex_cnn_forward(x_nchw, params):
    B = x_nchw.shape[0]
    x = jnp.transpose(x_nchw, (0, 2, 3, 1)).astype(jnp.float32)     # NCHW -> NHWC
    x = jnp.pad(x, ((0, 0), (0, 0), (0, 0), (0, CIN_PAD - x.shape[-1])))

    h1 = conv5x5_relu_pool(x, params["w1"], params["b1"])           # (B, H/2, W/2, 32)
    h2 = conv5x5_relu_pool(h1, params["w2"], params["b2"])          # (B, H/4, W/4, 64)

    # NHWC flatten; wfc1 rows were pre-permuted to this order (no transpose).
    feat = h2.reshape(B, -1).astype(jnp.bfloat16)
    # TODO(synk): nn.Dropout() is identity in eval mode; stochastic training dropout omitted.

    F = feat.shape[1]
    tk = next((t for t in (512, 256, 128) if F % t == 0), F)
    out = mlp(feat, params["wfc1"], params["bfc1"],
              params["wfc2"], params["bfc2"], tk=tk)
    return out[:, :1]                                               # strip fc2 lane padding


if __name__ == "__main__":
    max_height = max_width = 16    # small spatial size (module default is 300x300)
    batch = 2
    key = jax.random.PRNGKey(0)
    pkey, xkey = jax.random.split(key)
    params = init_params(pkey, max_height, max_width)
    x = jax.random.normal(xkey, (batch, 1, max_height, max_width), jnp.float32)

    fwd = jax.jit(complex_cnn_forward)
    out = fwd(x, params)
    jax.block_until_ready(out)
    assert out.shape == (batch, 1), out.shape
    assert bool(jnp.all(jnp.isfinite(out)))
    print("KERNEL_OK")
</pallas_src>

<mosaic_0001>
module attributes {stable_mosaic.version = 11 : i64} {
  func.func @_conv5x5_relu_pool_kernel(%arg0: i32, %arg1: memref<1x20x16x40xbf16, #tpu.memory_space<vmem>>, %arg2: memref<5x40x32xbf16, #tpu.memory_space<vmem>>, %arg3: memref<1x32xf32, #tpu.memory_space<vmem>>, %arg4: memref<1x8x8x32xbf16, #tpu.memory_space<vmem>>, %arg5: memref<1x8x16x32xf32, #tpu.memory_space<vmem>>) attributes {dimension_semantics = [#tpu.dimension_semantics<parallel>], iteration_bounds = array<i64: 2>, scalar_prefetch = 0 : i64, scratch_operands = 1 : i64, tpu.core_type = #tpu.core_type<tc>, window_params = [{transform_indices = @transform_0, window_bounds = array<i64: 1, 20, 16, 40>}, {pipeline_mode = #tpu.pipeline_mode<synchronous>, transform_indices = @transform_1, window_bounds = array<i64: 5, 40, 32>}, {pipeline_mode = #tpu.pipeline_mode<synchronous>, transform_indices = @transform_2, window_bounds = array<i64: 1, 32>}, {transform_indices = @transform_3, window_bounds = array<i64: 1, 8, 8, 32>}]} {
    %cst = arith.constant 0.000000e+00 : f32
    %0 = vector.broadcast %cst : f32 to vector<256x32xf32>
    %c0 = arith.constant 0 : index
    %c0_0 = arith.constant 0 : index
    %c0_1 = arith.constant 0 : index
    %c0_2 = arith.constant 0 : index
    %1 = vector.load %arg1[%c0, %c0_0, %c0_1, %c0_2] : memref<1x20x16x40xbf16, #tpu.memory_space<vmem>>, vector<1x16x16x40xbf16>
    %2 = vector.shape_cast %1 : vector<1x16x16x40xbf16> to vector<256x40xbf16>
    %c0_3 = arith.constant 0 : index
    %c0_4 = arith.constant 0 : index
    %c0_5 = arith.constant 0 : index
    %3 = vector.load %arg2[%c0_3, %c0_4, %c0_5] : memref<5x40x32xbf16, #tpu.memory_space<vmem>>, vector<1x40x32xbf16>
    %4 = vector.shape_cast %3 : vector<1x40x32xbf16> to vector<40x32xbf16>
    %cst_6 = arith.constant dense<0.000000e+00> : vector<256x32xf32>
    %5 = tpu.matmul %2, %4, %cst_6 {dimension_numbers = #tpu.dot_dimension_numbers<[1], [0], [0], [1], [0, 0, 1, 1], [], []>} : vector<256x40xbf16>, vector<40x32xbf16>, vector<256x32xf32> -> vector<256x32xf32>
    %6 = arith.addf %0, %5 : vector<256x32xf32>
    %c0_7 = arith.constant 0 : index
    %c1 = arith.constant 1 : index
    %c0_8 = arith.constant 0 : index
    %c0_9 = arith.constant 0 : index
    %7 = vector.load %arg1[%c0_7, %c1, %c0_8, %c0_9] : memref<1x20x16x40xbf16, #tpu.memory_space<vmem>>, vector<1x16x16x40xbf16>
    %8 = vector.shape_cast %7 : vector<1x16x16x40xbf16> to vector<256x40xbf16>
    %c1_10 = arith.constant 1 : index
    %c0_11 = arith.constant 0 : index
    %c0_12 = arith.constant 0 : index
    %9 = vector.load %arg2[%c1_10, %c0_11, %c0_12] : memref<5x40x32xbf16, #tpu.memory_space<vmem>>, vector<1x40x32xbf16>
    %10 = vector.shape_cast %9 : vector<1x40x32xbf16> to vector<40x32xbf16>
    %cst_13 = arith.constant dense<0.000000e+00> : vector<256x32xf32>
    %11 = tpu.matmul %8, %10, %cst_13 {dimension_numbers = #tpu.dot_dimension_numbers<[1], [0], [0], [1], [0, 0, 1, 1], [], []>} : vector<256x40xbf16>, vector<40x32xbf16>, vector<256x32xf32> -> vector<256x32xf32>
    %12 = arith.addf %6, %11 : vector<256x32xf32>
    %c0_14 = arith.constant 0 : index
    %c2 = arith.constant 2 : index
    %c0_15 = arith.constant 0 : index
    %c0_16 = arith.constant 0 : index
    %13 = vector.load %arg1[%c0_14, %c2, %c0_15, %c0_16] : memref<1x20x16x40xbf16, #tpu.memory_space<vmem>>, vector<1x16x16x40xbf16>
    %14 = vector.shape_cast %13 : vector<1x16x16x40xbf16> to vector<256x40xbf16>
    %c2_17 = arith.constant 2 : index
    %c0_18 = arith.constant 0 : index
    %c0_19 = arith.constant 0 : index
    %15 = vector.load %arg2[%c2_17, %c0_18, %c0_19] : memref<5x40x32xbf16, #tpu.memory_space<vmem>>, vector<1x40x32xbf16>
    %16 = vector.shape_cast %15 : vector<1x40x32xbf16> to vector<40x32xbf16>
    %cst_20 = arith.constant dense<0.000000e+00> : vector<256x32xf32>
    %17 = tpu.matmul %14, %16, %cst_20 {dimension_numbers = #tpu.dot_dimension_numbers<[1], [0], [0], [1], [0, 0, 1, 1], [], []>} : vector<256x40xbf16>, vector<40x32xbf16>, vector<256x32xf32> -> vector<256x32xf32>
    %18 = arith.addf %12, %17 : vector<256x32xf32>
    %c0_21 = arith.constant 0 : index
    %c3 = arith.constant 3 : index
    %c0_22 = arith.constant 0 : index
    %c0_23 = arith.constant 0 : index
    %19 = vector.load %arg1[%c0_21, %c3, %c0_22, %c0_23] : memref<1x20x16x40xbf16, #tpu.memory_space<vmem>>, vector<1x16x16x40xbf16>
    %20 = vector.shape_cast %19 : vector<1x16x16x40xbf16> to vector<256x40xbf16>
    %c3_24 = arith.constant 3 : index
    %c0_25 = arith.constant 0 : index
    %c0_26 = arith.constant 0 : index
    %21 = vector.load %arg2[%c3_24, %c0_25, %c0_26] : memref<5x40x32xbf16, #tpu.memory_space<vmem>>, vector<1x40x32xbf16>
    %22 = vector.shape_cast %21 : vector<1x40x32xbf16> to vector<40x32xbf16>
    %cst_27 = arith.constant dense<0.000000e+00> : vector<256x32xf32>
    %23 = tpu.matmul %20, %22, %cst_27 {dimension_numbers = #tpu.dot_dimension_numbers<[1], [0], [0], [1], [0, 0, 1, 1], [], []>} : vector<256x40xbf16>, vector<40x32xbf16>, vector<256x32xf32> -> vector<256x32xf32>
    %24 = arith.addf %18, %23 : vector<256x32xf32>
    %c0_28 = arith.constant 0 : index
    %c4 = arith.constant 4 : index
    %c0_29 = arith.constant 0 : index
    %c0_30 = arith.constant 0 : index
    %25 = vector.load %arg1[%c0_28, %c4, %c0_29, %c0_30] : memref<1x20x16x40xbf16, #tpu.memory_space<vmem>>, vector<1x16x16x40xbf16>
    %26 = vector.shape_cast %25 : vector<1x16x16x40xbf16> to vector<256x40xbf16>
    %c4_31 = arith.constant 4 : index
    %c0_32 = arith.constant 0 : index
    %c0_33 = arith.constant 0 : index
    %27 = vector.load %arg2[%c4_31, %c0_32, %c0_33] : memref<5x40x32xbf16, #tpu.memory_space<vmem>>, vector<1x40x32xbf16>
    %28 = vector.shape_cast %27 : vector<1x40x32xbf16> to vector<40x32xbf16>
    %cst_34 = arith.constant dense<0.000000e+00> : vector<256x32xf32>
    %29 = tpu.matmul %26, %28, %cst_34 {dimension_numbers = #tpu.dot_dimension_numbers<[1], [0], [0], [1], [0, 0, 1, 1], [], []>} : vector<256x40xbf16>, vector<40x32xbf16>, vector<256x32xf32> -> vector<256x32xf32>
    %30 = arith.addf %24, %29 : vector<256x32xf32>
    %c0_35 = arith.constant 0 : index
    %c0_36 = arith.constant 0 : index
    %31 = vector.load %arg3[%c0_35, %c0_36] : memref<1x32xf32, #tpu.memory_space<vmem>>, vector<1x32xf32>
    %32 = vector.broadcast %31 : vector<1x32xf32> to vector<256x32xf32>
    %33 = arith.addf %30, %32 : vector<256x32xf32>
    %cst_37 = arith.constant 0.000000e+00 : f32
    %34 = vector.broadcast %cst_37 : f32 to vector<256x32xf32>
    %35 = arith.maximumf %33, %34 : vector<256x32xf32>
    %36 = vector.shape_cast %35 : vector<256x32xf32> to vector<1x8x2x16x32xf32>
    %37 = vector.extract_strided_slice %36 {offsets = [0, 0, 0, 0, 0], sizes = [1, 8, 1, 16, 32], strides = [1, 1, 1, 1, 1]} : vector<1x8x2x16x32xf32> to vector<1x8x1x16x32xf32>
    %38 = vector.shape_cast %37 : vector<1x8x1x16x32xf32> to vector<1x8x16x32xf32>
    %39 = vector.extract_strided_slice %36 {offsets = [0, 0, 1, 0, 0], sizes = [1, 8, 1, 16, 32], strides = [1, 1, 1, 1, 1]} : vector<1x8x2x16x32xf32> to vector<1x8x1x16x32xf32>
    %40 = vector.shape_cast %39 : vector<1x8x1x16x32xf32> to vector<1x8x16x32xf32>
    %41 = arith.maximumf %38, %40 : vector<1x8x16x32xf32>
    %c0_38 = arith.constant 0 : index
    %c0_39 = arith.constant 0 : index
    %c0_40 = arith.constant 0 : index
    %c0_41 = arith.constant 0 : index
    %42 = vector.load %arg5[%c0_38, %c0_39, %c0_40, %c0_41] : memref<1x8x16x32xf32, #tpu.memory_space<vmem>>, vector<1x8x16x32xf32>
    tpu.vector_store %arg5[%c0_38, %c0_39, %c0_40, %c0_41], %41 {strides = array<i32>} : memref<1x8x16x32xf32, #tpu.memory_space<vmem>>, vector<1x8x16x32xf32>,
    %c0_42 = arith.constant 0 : index
    %c0_43 = arith.constant 0 : index
    %c0_44 = arith.constant 0 : index
    %c0_45 = arith.constant 0 : index
    %43 = tpu.strided_load %arg5[%c0_42, %c0_43, %c0_44, %c0_45] {strides = array<i32: 1, 1, 2, 1>} : memref<1x8x16x32xf32, #tpu.memory_space<vmem>>, vector<1x8x8x32xf32>
    %c0_46 = arith.constant 0 : index
    %c0_47 = arith.constant 0 : index
    %c1_48 = arith.constant 1 : index
    %c0_49 = arith.constant 0 : index
    %44 = tpu.strided_load %arg5[%c0_46, %c0_47, %c1_48, %c0_49] {strides = array<i32: 1, 1, 2, 1>} : memref<1x8x16x32xf32, #tpu.memory_space<vmem>>, vector<1x8x8x32xf32>
    %45 = arith.maximumf %43, %44 : vector<1x8x8x32xf32>
    %46 = arith.truncf %45 : vector<1x8x8x32xf32> to vector<1x8x8x32xbf16>
    %c0_50 = arith.constant 0 : index
    %c0_51 = arith.constant 0 : index
    %c0_52 = arith.constant 0 : index
    %c0_53 = arith.constant 0 : index
    %47 = vector.load %arg4[%c0_50, %c0_51, %c0_52, %c0_53] : memref<1x8x8x32xbf16, #tpu.memory_space<vmem>>, vector<1x8x8x32xbf16>
    tpu.vector_store %arg4[%c0_50, %c0_51, %c0_52, %c0_53], %46 {strides = array<i32>} : memref<1x8x8x32xbf16, #tpu.memory_space<vmem>>, vector<1x8x8x32xbf16>,
    return
  }
  func.func @transform_0(%arg0: i32) -> (i32, i32, i32, i32) {
    %c0_i32 = arith.constant 0 : i32
    %c0_i32_0 = arith.constant 0 : i32
    %c0_i32_1 = arith.constant 0 : i32
    %c0_i32_2 = arith.constant 0 : i32
    return %arg0, %c0_i32, %c0_i32_0, %c0_i32_1 : i32, i32, i32, i32
  }
  func.func @transform_1(%arg0: i32) -> (i32, i32, i32) {
    %c0_i32 = arith.constant 0 : i32
    %c0_i32_0 = arith.constant 0 : i32
    %c0_i32_1 = arith.constant 0 : i32
    %c0_i32_2 = arith.constant 0 : i32
    return %c0_i32, %c0_i32_0, %c0_i32_1 : i32, i32, i32
  }
  func.func @transform_2(%arg0: i32) -> (i32, i32) {
    %c0_i32 = arith.constant 0 : i32
    %c0_i32_0 = arith.constant 0 : i32
    %c0_i32_1 = arith.constant 0 : i32
    return %c0_i32, %c0_i32_0 : i32, i32
  }
  func.func @transform_3(%arg0: i32) -> (i32, i32, i32, i32) {
    %c0_i32 = arith.constant 0 : i32
    %c0_i32_0 = arith.constant 0 : i32
    %c0_i32_1 = arith.constant 0 : i32
    %c0_i32_2 = arith.constant 0 : i32
    return %arg0, %c0_i32, %c0_i32_0, %c0_i32_1 : i32, i32, i32, i32
  }
}

module attributes {stable_mosaic.version = 11 : i64} {
  func.func @_conv5x5_relu_pool_kernel(%arg0: i32, %arg1: memref<1x12x8x160xbf16, #tpu.memory_space<vmem>>, %arg2: memref<5x160x64xbf16, #tpu.memory_space<vmem>>, %arg3: memref<1x64xf32, #tpu.memory_space<vmem>>, %arg4: memref<1x4x4x64xbf16, #tpu.memory_space<vmem>>, %arg5: memref<1x4x8x64xf32, #tpu.memory_space<vmem>>) attributes {dimension_semantics = [#tpu.dimension_semantics<parallel>], iteration_bounds = array<i64: 2>, scalar_prefetch = 0 : i64, scratch_operands = 1 : i64, tpu.core_type = #tpu.core_type<tc>, window_params = [{transform_indices = @transform_0, window_bounds = array<i64: 1, 12, 8, 160>}, {pipeline_mode = #tpu.pipeline_mode<synchronous>, transform_indices = @transform_1, window_bounds = array<i64: 5, 160, 64>}, {pipeline_mode = #tpu.pipeline_mode<synchronous>, transform_indices = @transform_2, window_bounds = array<i64: 1, 64>}, {transform_indices = @transform_3, window_bounds = array<i64: 1, 4, 4, 64>}]} {
    %cst = arith.constant 0.000000e+00 : f32
    %0 = vector.broadcast %cst : f32 to vector<64x64xf32>
    %c0 = arith.constant 0 : index
    %c0_0 = arith.constant 0 : index
    %c0_1 = arith.constant 0 : index
    %c0_2 = arith.constant 0 : index
    %1 = vector.load %arg1[%c0, %c0_0, %c0_1, %c0_2] : memref<1x12x8x160xbf16, #tpu.memory_space<vmem>>, vector<1x8x8x160xbf16>
    %2 = vector.shape_cast %1 : vector<1x8x8x160xbf16> to vector<64x160xbf16>
    %c0_3 = arith.constant 0 : index
    %c0_4 = arith.constant 0 : index
    %c0_5 = arith.constant 0 : index
    %3 = vector.load %arg2[%c0_3, %c0_4, %c0_5] : memref<5x160x64xbf16, #tpu.memory_space<vmem>>, vector<1x160x64xbf16>
    %4 = vector.shape_cast %3 : vector<1x160x64xbf16> to vector<160x64xbf16>
    %cst_6 = arith.constant dense<0.000000e+00> : vector<64x64xf32>
    %5 = tpu.matmul %2, %4, %cst_6 {dimension_numbers = #tpu.dot_dimension_numbers<[1], [0], [0], [1], [0, 0, 1, 1], [], []>} : vector<64x160xbf16>, vector<160x64xbf16>, vector<64x64xf32> -> vector<64x64xf32>
    %6 = arith.addf %0, %5 : vector<64x64xf32>
    %c0_7 = arith.constant 0 : index
    %c1 = arith.constant 1 : index
    %c0_8 = arith.constant 0 : index
    %c0_9 = arith.constant 0 : index
    %7 = vector.load %arg1[%c0_7, %c1, %c0_8, %c0_9] : memref<1x12x8x160xbf16, #tpu.memory_space<vmem>>, vector<1x8x8x160xbf16>
    %8 = vector.shape_cast %7 : vector<1x8x8x160xbf16> to vector<64x160xbf16>
    %c1_10 = arith.constant 1 : index
    %c0_11 = arith.constant 0 : index
    %c0_12 = arith.constant 0 : index
    %9 = vector.load %arg2[%c1_10, %c0_11, %c0_12] : memref<5x160x64xbf16, #tpu.memory_space<vmem>>, vector<1x160x64xbf16>
    %10 = vector.shape_cast %9 : vector<1x160x64xbf16> to vector<160x64xbf16>
    %cst_13 = arith.constant dense<0.000000e+00> : vector<64x64xf32>
    %11 = tpu.matmul %8, %10, %cst_13 {dimension_numbers = #tpu.dot_dimension_numbers<[1], [0], [0], [1], [0, 0, 1, 1], [], []>} : vector<64x160xbf16>, vector<160x64xbf16>, vector<64x64xf32> -> vector<64x64xf32>
    %12 = arith.addf %6, %11 : vector<64x64xf32>
    %c0_14 = arith.constant 0 : index
    %c2 = arith.constant 2 : index
    %c0_15 = arith.constant 0 : index
    %c0_16 = arith.constant 0 : index
    %13 = vector.load %arg1[%c0_14, %c2, %c0_15, %c0_16] : memref<1x12x8x160xbf16, #tpu.memory_space<vmem>>, vector<1x8x8x160xbf16>
    %14 = vector.shape_cast %13 : vector<1x8x8x160xbf16> to vector<64x160xbf16>
    %c2_17 = arith.constant 2 : index
    %c0_18 = arith.constant 0 : index
    %c0_19 = arith.constant 0 : index
    %15 = vector.load %arg2[%c2_17, %c0_18, %c0_19] : memref<5x160x64xbf16, #tpu.memory_space<vmem>>, vector<1x160x64xbf16>
    %16 = vector.shape_cast %15 : vector<1x160x64xbf16> to vector<160x64xbf16>
    %cst_20 = arith.constant dense<0.000000e+00> : vector<64x64xf32>
    %17 = tpu.matmul %14, %16, %cst_20 {dimension_numbers = #tpu.dot_dimension_numbers<[1], [0], [0], [1], [0, 0, 1, 1], [], []>} : vector<64x160xbf16>, vector<160x64xbf16>, vector<64x64xf32> -> vector<64x64xf32>
    %18 = arith.addf %12, %17 : vector<64x64xf32>
    %c0_21 = arith.constant 0 : index
    %c3 = arith.constant 3 : index
    %c0_22 = arith.constant 0 : index
    %c0_23 = arith.constant 0 : index
    %19 = vector.load %arg1[%c0_21, %c3, %c0_22, %c0_23] : memref<1x12x8x160xbf16, #tpu.memory_space<vmem>>, vector<1x8x8x160xbf16>
    %20 = vector.shape_cast %19 : vector<1x8x8x160xbf16> to vector<64x160xbf16>
    %c3_24 = arith.constant 3 : index
    %c0_25 = arith.constant 0 : index
    %c0_26 = arith.constant 0 : index
    %21 = vector.load %arg2[%c3_24, %c0_25, %c0_26] : memref<5x160x64xbf16, #tpu.memory_space<vmem>>, vector<1x160x64xbf16>
    %22 = vector.shape_cast %21 : vector<1x160x64xbf16> to vector<160x64xbf16>
    %cst_27 = arith.constant dense<0.000000e+00> : vector<64x64xf32>
    %23 = tpu.matmul %20, %22, %cst_27 {dimension_numbers = #tpu.dot_dimension_numbers<[1], [0], [0], [1], [0, 0, 1, 1], [], []>} : vector<64x160xbf16>, vector<160x64xbf16>, vector<64x64xf32> -> vector<64x64xf32>
    %24 = arith.addf %18, %23 : vector<64x64xf32>
    %c0_28 = arith.constant 0 : index
    %c4 = arith.constant 4 : index
    %c0_29 = arith.constant 0 : index
    %c0_30 = arith.constant 0 : index
    %25 = vector.load %arg1[%c0_28, %c4, %c0_29, %c0_30] : memref<1x12x8x160xbf16, #tpu.memory_space<vmem>>, vector<1x8x8x160xbf16>
    %26 = vector.shape_cast %25 : vector<1x8x8x160xbf16> to vector<64x160xbf16>
    %c4_31 = arith.constant 4 : index
    %c0_32 = arith.constant 0 : index
    %c0_33 = arith.constant 0 : index
    %27 = vector.load %arg2[%c4_31, %c0_32, %c0_33] : memref<5x160x64xbf16, #tpu.memory_space<vmem>>, vector<1x160x64xbf16>
    %28 = vector.shape_cast %27 : vector<1x160x64xbf16> to vector<160x64xbf16>
    %cst_34 = arith.constant dense<0.000000e+00> : vector<64x64xf32>
    %29 = tpu.matmul %26, %28, %cst_34 {dimension_numbers = #tpu.dot_dimension_numbers<[1], [0], [0], [1], [0, 0, 1, 1], [], []>} : vector<64x160xbf16>, vector<160x64xbf16>, vector<64x64xf32> -> vector<64x64xf32>
    %30 = arith.addf %24, %29 : vector<64x64xf32>
    %c0_35 = arith.constant 0 : index
    %c0_36 = arith.constant 0 : index
    %31 = vector.load %arg3[%c0_35, %c0_36] : memref<1x64xf32, #tpu.memory_space<vmem>>, vector<1x64xf32>
    %32 = vector.broadcast %31 : vector<1x64xf32> to vector<64x64xf32>
    %33 = arith.addf %30, %32 : vector<64x64xf32>
    %cst_37 = arith.constant 0.000000e+00 : f32
    %34 = vector.broadcast %cst_37 : f32 to vector<64x64xf32>
    %35 = arith.maximumf %33, %34 : vector<64x64xf32>
    %36 = vector.shape_cast %35 : vector<64x64xf32> to vector<1x4x2x8x64xf32>
    %37 = vector.extract_strided_slice %36 {offsets = [0, 0, 0, 0, 0], sizes = [1, 4, 1, 8, 64], strides = [1, 1, 1, 1, 1]} : vector<1x4x2x8x64xf32> to vector<1x4x1x8x64xf32>
    %38 = vector.shape_cast %37 : vector<1x4x1x8x64xf32> to vector<1x4x8x64xf32>
    %39 = vector.extract_strided_slice %36 {offsets = [0, 0, 1, 0, 0], sizes = [1, 4, 1, 8, 64], strides = [1, 1, 1, 1, 1]} : vector<1x4x2x8x64xf32> to vector<1x4x1x8x64xf32>
    %40 = vector.shape_cast %39 : vector<1x4x1x8x64xf32> to vector<1x4x8x64xf32>
    %41 = arith.maximumf %38, %40 : vector<1x4x8x64xf32>
    %c0_38 = arith.constant 0 : index
    %c0_39 = arith.constant 0 : index
    %c0_40 = arith.constant 0 : index
    %c0_41 = arith.constant 0 : index
    %42 = vector.load %arg5[%c0_38, %c0_39, %c0_40, %c0_41] : memref<1x4x8x64xf32, #tpu.memory_space<vmem>>, vector<1x4x8x64xf32>
    tpu.vector_store %arg5[%c0_38, %c0_39, %c0_40, %c0_41], %41 {strides = array<i32>} : memref<1x4x8x64xf32, #tpu.memory_space<vmem>>, vector<1x4x8x64xf32>,
    %c0_42 = arith.constant 0 : index
    %c0_43 = arith.constant 0 : index
    %c0_44 = arith.constant 0 : index
    %c0_45 = arith.constant 0 : index
    %43 = tpu.strided_load %arg5[%c0_42, %c0_43, %c0_44, %c0_45] {strides = array<i32: 1, 1, 2, 1>} : memref<1x4x8x64xf32, #tpu.memory_space<vmem>>, vector<1x4x4x64xf32>
    %c0_46 = arith.constant 0 : index
    %c0_47 = arith.constant 0 : index
    %c1_48 = arith.constant 1 : index
    %c0_49 = arith.constant 0 : index
    %44 = tpu.strided_load %arg5[%c0_46, %c0_47, %c1_48, %c0_49] {strides = array<i32: 1, 1, 2, 1>} : memref<1x4x8x64xf32, #tpu.memory_space<vmem>>, vector<1x4x4x64xf32>
    %45 = arith.maximumf %43, %44 : vector<1x4x4x64xf32>
    %46 = arith.truncf %45 : vector<1x4x4x64xf32> to vector<1x4x4x64xbf16>
    %c0_50 = arith.constant 0 : index
    %c0_51 = arith.constant 0 : index
    %c0_52 = arith.constant 0 : index
    %c0_53 = arith.constant 0 : index
    %47 = vector.load %arg4[%c0_50, %c0_51, %c0_52, %c0_53] : memref<1x4x4x64xbf16, #tpu.memory_space<vmem>>, vector<1x4x4x64xbf16>
    tpu.vector_store %arg4[%c0_50, %c0_51, %c0_52, %c0_53], %46 {strides = array<i32>} : memref<1x4x4x64xbf16, #tpu.memory_space<vmem>>, vector<1x4x4x64xbf16>,
    return
  }
  func.func @transform_0(%arg0: i32) -> (i32, i32, i32, i32) {
    %c0_i32 = arith.constant 0 : i32
    %c0_i32_0 = arith.constant 0 : i32
    %c0_i32_1 = arith.constant 0 : i32
    %c0_i32_2 = arith.constant 0 : i32
    return %arg0, %c0_i32, %c0_i32_0, %c0_i32_1 : i32, i32, i32, i32
  }
  func.func @transform_1(%arg0: i32) -> (i32, i32, i32) {
    %c0_i32 = arith.constant 0 : i32
    %c0_i32_0 = arith.constant 0 : i32
    %c0_i32_1 = arith.constant 0 : i32
    %c0_i32_2 = arith.constant 0 : i32
    return %c0_i32, %c0_i32_0, %c0_i32_1 : i32, i32, i32
  }
  func.func @transform_2(%arg0: i32) -> (i32, i32) {
    %c0_i32 = arith.constant 0 : i32
    %c0_i32_0 = arith.constant 0 : i32
    %c0_i32_1 = arith.constant 0 : i32
    return %c0_i32, %c0_i32_0 : i32, i32
  }
  func.func @transform_3(%arg0: i32) -> (i32, i32, i32, i32) {
    %c0_i32 = arith.constant 0 : i32
    %c0_i32_0 = arith.constant 0 : i32
    %c0_i32_1 = arith.constant 0 : i32
    %c0_i32_2 = arith.constant 0 : i32
    return %arg0, %c0_i32, %c0_i32_0, %c0_i32_1 : i32, i32, i32, i32
  }
}

module attributes {stable_mosaic.version = 11 : i64} {
  func.func @_mlp_kernel(%arg0: i32, %arg1: memref<2x512xbf16, #tpu.memory_space<vmem>>, %arg2: memref<512x1024xbf16, #tpu.memory_space<vmem>>, %arg3: memref<1x1024xf32, #tpu.memory_space<vmem>>, %arg4: memref<1024x128xbf16, #tpu.memory_space<vmem>>, %arg5: memref<1x128xf32, #tpu.memory_space<vmem>>, %arg6: memref<2x128xf32, #tpu.memory_space<vmem>>, %arg7: memref<2x1024xf32, #tpu.memory_space<vmem>>) attributes {dimension_semantics = [#tpu.dimension_semantics<arbitrary>], iteration_bounds = array<i64: 2>, scalar_prefetch = 0 : i64, scratch_operands = 1 : i64, tpu.core_type = #tpu.core_type<tc>, window_params = [{transform_indices = @transform_0, window_bounds = array<i64: 2, 512>}, {transform_indices = @transform_1, window_bounds = array<i64: 512, 1024>}, {pipeline_mode = #tpu.pipeline_mode<synchronous>, transform_indices = @transform_2, window_bounds = array<i64: 1, 1024>}, {pipeline_mode = #tpu.pipeline_mode<synchronous>, transform_indices = @transform_3, window_bounds = array<i64: 1024, 128>}, {pipeline_mode = #tpu.pipeline_mode<synchronous>, transform_indices = @transform_4, window_bounds = array<i64: 1, 128>}, {pipeline_mode = #tpu.pipeline_mode<synchronous>, transform_indices = @transform_5, window_bounds = array<i64: 2, 128>}]} {
    %c0_i32 = arith.constant 0 : i32
    %0 = arith.cmpi eq, %arg0, %c0_i32 : i32
    %1 = arith.extui %0 : i1 to i32
    %c0_i32_0 = arith.constant 0 : i32
    %2 = arith.cmpi ne, %1, %c0_i32_0 : i32
    scf.if %2 {
      %cst_9 = arith.constant 0.000000e+00 : f32
      %12 = vector.broadcast %cst_9 : f32 to vector<2x1024xf32>
      %c0_10 = arith.constant 0 : index
      %c0_11 = arith.constant 0 : index
      %13 = vector.load %arg7[%c0_10, %c0_11] : memref<2x1024xf32, #tpu.memory_space<vmem>>, vector<2x1024xf32>
      tpu.vector_store %arg7[%c0_10, %c0_11], %12 {strides = array<i32>} : memref<2x1024xf32, #tpu.memory_space<vmem>>, vector<2x1024xf32>,
    } else {
    }
    %c0 = arith.constant 0 : index
    %c0_1 = arith.constant 0 : index
    %3 = vector.load %arg7[%c0, %c0_1] : memref<2x1024xf32, #tpu.memory_space<vmem>>, vector<2x1024xf32>
    %c0_2 = arith.constant 0 : index
    %c0_3 = arith.constant 0 : index
    %4 = vector.load %arg1[%c0_2, %c0_3] : memref<2x512xbf16, #tpu.memory_space<vmem>>, vector<2x512xbf16>
    %c0_4 = arith.constant 0 : index
    %c0_5 = arith.constant 0 : index
    %5 = vector.load %arg2[%c0_4, %c0_5] : memref<512x1024xbf16, #tpu.memory_space<vmem>>, vector<512x1024xbf16>
    %cst = arith.constant dense<0.000000e+00> : vector<2x1024xf32>
    %6 = tpu.matmul %4, %5, %cst {dimension_numbers = #tpu.dot_dimension_numbers<[1], [0], [0], [1], [0, 0, 1, 1], [], []>} : vector<2x512xbf16>, vector<512x1024xbf16>, vector<2x1024xf32> -> vector<2x1024xf32>
    %7 = arith.addf %3, %6 : vector<2x1024xf32>
    %c0_6 = arith.constant 0 : index
    %c0_7 = arith.constant 0 : index
    %8 = vector.load %arg7[%c0_6, %c0_7] : memref<2x1024xf32, #tpu.memory_space<vmem>>, vector<2x1024xf32>
    tpu.vector_store %arg7[%c0_6, %c0_7], %7 {strides = array<i32>} : memref<2x1024xf32, #tpu.memory_space<vmem>>, vector<2x1024xf32>,
    %c1_i32 = arith.constant 1 : i32
    %9 = arith.cmpi eq, %arg0, %c1_i32 : i32
    %10 = arith.extui %9 : i1 to i32
    %c0_i32_8 = arith.constant 0 : i32
    %11 = arith.cmpi ne, %10, %c0_i32_8 : i32
    scf.if %11 {
      %c0_9 = arith.constant 0 : index
      %c0_10 = arith.constant 0 : index
      %12 = vector.load %arg7[%c0_9, %c0_10] : memref<2x1024xf32, #tpu.memory_space<vmem>>, vector<2x1024xf32>
      %c0_11 = arith.constant 0 : index
      %c0_12 = arith.constant 0 : index
      %13 = vector.load %arg3[%c0_11, %c0_12] : memref<1x1024xf32, #tpu.memory_space<vmem>>, vector<1x1024xf32>
      %14 = vector.broadcast %13 : vector<1x1024xf32> to vector<2x1024xf32>
      %15 = arith.addf %12, %14 : vector<2x1024xf32>
      %cst_13 = arith.constant 0.000000e+00 : f32
      %16 = vector.broadcast %cst_13 : f32 to vector<2x1024xf32>
      %17 = arith.maximumf %15, %16 : vector<2x1024xf32>
      %18 = arith.truncf %17 : vector<2x1024xf32> to vector<2x1024xbf16>
      %c0_14 = arith.constant 0 : index
      %c0_15 = arith.constant 0 : index
      %19 = vector.load %arg4[%c0_14, %c0_15] : memref<1024x128xbf16, #tpu.memory_space<vmem>>, vector<1024x128xbf16>
      %cst_16 = arith.constant dense<0.000000e+00> : vector<2x128xf32>
      %20 = tpu.matmul %18, %19, %cst_16 {dimension_numbers = #tpu.dot_dimension_numbers<[1], [0], [0], [1], [0, 0, 1, 1], [], []>} : vector<2x1024xbf16>, vector<1024x128xbf16>, vector<2x128xf32> -> vector<2x128xf32>
      %c0_17 = arith.constant 0 : index
      %c0_18 = arith.constant 0 : index
      %21 = vector.load %arg5[%c0_17, %c0_18] : memref<1x128xf32, #tpu.memory_space<vmem>>, vector<1x128xf32>
      %22 = vector.broadcast %21 : vector<1x128xf32> to vector<2x128xf32>
      %23 = arith.addf %20, %22 : vector<2x128xf32>
      %c0_19 = arith.constant 0 : index
      %c0_20 = arith.constant 0 : index
      %24 = vector.load %arg6[%c0_19, %c0_20] : memref<2x128xf32, #tpu.memory_space<vmem>>, vector<2x128xf32>
      tpu.vector_store %arg6[%c0_19, %c0_20], %23 {strides = array<i32>} : memref<2x128xf32, #tpu.memory_space<vmem>>, vector<2x128xf32>,
    } else {
    }
    return
  }
  func.func @transform_0(%arg0: i32) -> (i32, i32) {
    %c0_i32 = arith.constant 0 : i32
    %c0_i32_0 = arith.constant 0 : i32
    return %c0_i32, %arg0 : i32, i32
  }
  func.func @transform_1(%arg0: i32) -> (i32, i32) {
    %c0_i32 = arith.constant 0 : i32
    %c0_i32_0 = arith.constant 0 : i32
    return %arg0, %c0_i32 : i32, i32
  }
  func.func @transform_2(%arg0: i32) -> (i32, i32) {
    %c0_i32 = arith.constant 0 : i32
    %c0_i32_0 = arith.constant 0 : i32
    %c0_i32_1 = arith.constant 0 : i32
    return %c0_i32, %c0_i32_0 : i32, i32
  }
  func.func @transform_3(%arg0: i32) -> (i32, i32) {
    %c0_i32 = arith.constant 0 : i32
    %c0_i32_0 = arith.constant 0 : i32
    %c0_i32_1 = arith.constant 0 : i32
    return %c0_i32, %c0_i32_0 : i32, i32
  }
  func.func @transform_4(%arg0: i32) -> (i32, i32) {
    %c0_i32 = arith.constant 0 : i32
    %c0_i32_0 = arith.constant 0 : i32
    %c0_i32_1 = arith.constant 0 : i32
    return %c0_i32, %c0_i32_0 : i32, i32
  }
  func.func @transform_5(%arg0: i32) -> (i32, i32) {
    %c0_i32 = arith.constant 0 : i32
    %c0_i32_0 = arith.constant 0 : i32
    %c0_i32_1 = arith.constant 0 : i32
    return %c0_i32, %c0_i32_0 : i32, i32
  }
}

</mosaic_0001>

<llo_original>
// kernel: complex_cnn_forward.3
$region0: #{complex_cnn_forward.3}
  #allocation0 [shape = 'u32[]', space=smem, size = 0x4, offset = 0x4, fixed_abs, tag = 'smem constant byte address 0x4 - core index']
  #allocation1 [shape = 'u32[144,128]{1,0:T(1,128)}', space=vmem, size = 0x12000, scoped, tag = 'internal scratch']
  #allocation2 [shape = 'f32[1,8,16,32]{3,2,1,0:T(8,128)}', space=vmem, size = 0x10000, scoped, tag = 'scratch operand']
  %s0 = inlined_call_operand.vmem [shape: bf16[2,20,16,40], index: 0, kind: input, shape index: {}]
  %s1 = inlined_call_operand.vmem [shape: bf16[5,40,32], index: 1, kind: input, shape index: {}]
  %s2 = inlined_call_operand.vmem [shape: f32[1,32], index: 2, kind: input, shape index: {}]
  %s3 = inlined_call_operand.vmem [shape: bf16[2,8,8,32], index: 3, kind: output, shape index: {}]
  %s4 = sld [smem:[#allocation0]]
  $region45: #{complex_cnn_forward.3} parent=0
    _
  %s6 = ssub.s32 1, %s4
  %s7 = scalar_select 0, %s6, %s4
  loop: start=0, step=1, limit=4
  $region2: #{complex_cnn_forward.3} parent=0 // loop_pre_header
    _
  $region3: #{complex_cnn_forward.3} parent=0 // loop_header
    %s9 = sphi 0, %s13
    %p10 = scmp.ge.s32.totalorder %s9, 4
    %s19 = sphi 0, %s21
    %s22 = sphi 0, %s19
    %s23 = sphi 0, %s22
    %s39 = sphi 0, %s23
    %s43 = sphi 0, %s43
    %s45 = sphi 0, %s43
    %s46 = sphi 0, %s45
    %s60 = sphi 0, %s46
    %s64 = sphi 0, %s64
    %s66 = sphi 0, %s64
    %s67 = sphi 0, %s66
    %s81 = sphi 0, %s67
    %s87 = sphi 0, %s89
    %s90 = sphi 0, %s87
    %s91 = sphi 0, %s90
    %s107 = sphi 0, %s91
  $region4: #{complex_cnn_forward.3} parent=0 // loop_header_branch
    %12 = sbr.rel (%p10) target = $region8
  $region5: #{complex_cnn_forward.3} parent=0 // loop_body
    %s14 = ssub.s32 %s9, 1
    %s15 = ssub.s32 %s9, 2
    %s16 = sadd.s32 %s9, 1
    %s17 = ssub.s32 %s9, %s16
    %p18 = scmp.eq.s32.totalorder %s17, 0
    %s20 = sadd.s32 %s19, 1
    %s21 = scalar_select %p18, %s19, %s20
    %p24 = pneg %p18
    %p25 = scmp.eq.s32.totalorder %s9, 1
    %p26 = por %p24, %p25
    %p27 = scmp.ne.s32.totalorder %s19, %s22
    %p28 = scmp.eq.s32.totalorder %s9, 0
    %p29 = por %p27, %p28
    %p30 = scmp.ne.s32.totalorder %s19, %s22
    %p31 = scmp.eq.s32.totalorder %s14, 1
    %p32 = por %p30, %p31
    %p33 = scmp.ne.s32.totalorder %s22, %s23
    %p34 = scmp.eq.s32.totalorder %s14, 0
    %p35 = por %p33, %p34
    %p36 = scmp.ne.s32.totalorder %s22, %s23
    %p37 = scmp.eq.s32.totalorder %s15, 1
    %p38 = por %p36, %p37
    %p40 = scmp.ne.s32.totalorder %s23, %s39
    %p41 = scmp.eq.s32.totalorder %s15, 0
    %p42 = por %p40, %p41
    %s44 = sadd.s32 %s43, 1
    %p47 = scmp.eq.s32.totalorder %s9, 1
    %p48 = scmp.ne.s32.totalorder %s43, %s45
    %p49 = scmp.eq.s32.totalorder %s9, 0
    %p50 = por %p48, %p49
    %p51 = scmp.ne.s32.totalorder %s43, %s45
    %p52 = scmp.eq.s32.totalorder %s14, 1
    %p53 = por %p51, %p52
    %p54 = scmp.ne.s32.totalorder %s45, %s46
    %p55 = scmp.eq.s32.totalorder %s14, 0
    %p56 = por %p54, %p55
    %p57 = scmp.ne.s32.totalorder %s45, %s46
    %p58 = scmp.eq.s32.totalorder %s15, 1
    %p59 = por %p57, %p58
    %p61 = scmp.ne.s32.totalorder %s46, %s60
    %p62 = scmp.eq.s32.totalorder %s15, 0
    %p63 = por %p61, %p62
    %s65 = sadd.s32 %s64, 1
    %p68 = scmp.eq.s32.totalorder %s9, 1
    %p69 = scmp.ne.s32.totalorder %s64, %s66
    %p70 = scmp.eq.s32.totalorder %s9, 0
    %p71 = por %p69, %p70
    %p72 = scmp.ne.s32.totalorder %s64, %s66
    %p73 = scmp.eq.s32.totalorder %s14, 1
    %p74 = por %p72, %p73
    %p75 = scmp.ne.s32.totalorder %s66, %s67
    %p76 = scmp.eq.s32.totalorder %s14, 0
    %p77 = por %p75, %p76
    %p78 = scmp.ne.s32.totalorder %s66, %s67
    %p79 = scmp.eq.s32.totalorder %s15, 1
    %p80 = por %p78, %p79
    %p82 = scmp.ne.s32.totalorder %s67, %s81
    %p83 = scmp.eq.s32.totalorder %s15, 0
    %p84 = por %p82, %p83
    %s85 = ssub.s32 %s9, %s16
    %p86 = scmp.eq.s32.totalorder %s85, 0
    %s88 = sadd.s32 %s87, 1
    %s89 = scalar_select %p86, %s87, %s88
    %p92 = pneg %p86
    %p93 = scmp.eq.s32.totalorder %s9, 1
    %p94 = por %p92, %p93
    %p95 = scmp.ne.s32.totalorder %s87, %s90
    %p96 = scmp.eq.s32.totalorder %s9, 0
    %p97 = por %p95, %p96
    %p98 = scmp.ne.s32.totalorder %s87, %s90
    %p99 = scmp.eq.s32.totalorder %s14, 1
    %p100 = por %p98, %p99
    %p101 = scmp.ne.s32.totalorder %s90, %s91
    %p102 = scmp.eq.s32.totalorder %s14, 0
    %p103 = por %p101, %p102
    %p104 = scmp.ne.s32.totalorder %s90, %s91
    %p105 = scmp.eq.s32.totalorder %s15, 1
    %p106 = por %p104, %p105
    %p108 = scmp.ne.s32.totalorder %s91, %s107
    %p109 = scmp.eq.s32.totalorder %s15, 0
    %p110 = por %p108, %p109
    %p111 = scmp.le.s32.totalorder 1, %s9
    %p112 = scmp.lt.s32.totalorder %s9, 3
    %p113 = pnand %p111, %p112
    %p114 = pneg %p113
    // Predicated region
    $region9: #{complex_cnn_forward.3} parent=5 // pred_check
      _
    $region10: #{complex_cnn_forward.3} parent=5 // pred_check_branch
      %116 = sbr.rel (%p113) target = $region12
    $region11: #{complex_cnn_forward.3} parent=5 // pred_region
      %s117 = ssub.s32 %s9, 1
      // Predicated region
      $region13: #{complex_cnn_forward.3} parent=11 // pred_check
        %p118 = pneg %p56
      $region14: #{complex_cnn_forward.3} parent=11 // pred_check_branch
        %120 = sbr.rel (%p118) target = $region16
      $region15: #{complex_cnn_forward.3} parent=11 // pred_region
        _
      $region16: #{complex_cnn_forward.3} parent=11 // pred_fallthru
        _
      // Predicated region
      $region17: #{complex_cnn_forward.3} parent=11 // pred_check
        %p121 = pneg %p77
      $region18: #{complex_cnn_forward.3} parent=11 // pred_check_branch
        %123 = sbr.rel (%p121) target = $region20
      $region19: #{complex_cnn_forward.3} parent=11 // pred_region
        _
      $region20: #{complex_cnn_forward.3} parent=11 // pred_fallthru
        _
    $region12: #{complex_cnn_forward.3} parent=5 // pred_fallthru
      _
    %p124 = scmp.lt.s32.totalorder %s9, 2
    // Predicated region
    $region21: #{complex_cnn_forward.3} parent=5 // pred_check
      %p125 = pneg %p124
    $region22: #{complex_cnn_forward.3} parent=5 // pred_check_branch
      %127 = sbr.rel (%p125) target = $region24
    $region23: #{complex_cnn_forward.3} parent=5 // pred_region
      // Predicated region
      $region25: #{complex_cnn_forward.3} parent=23 // pred_check
        %p128 = pneg %p29
      $region26: #{complex_cnn_forward.3} parent=23 // pred_check_branch
        %130 = sbr.rel (%p128) target = $region28
      $region27: #{complex_cnn_forward.3} parent=23 // pred_region
        %p131 = scmp.lt.s32.totalorder %s9, 1
        %s132 = scalar_select %p131, %s9, 1
        %s133 = smul.addr %s132, 40
        %s134 = smul.addr %s133, 4
        %s135 = scalar_lea.vmem %s0, %s134
      $region28: #{complex_cnn_forward.3} parent=23 // pred_fallthru
        _
    $region24: #{complex_cnn_forward.3} parent=5 // pred_fallthru
      _
    %p136 = scmp.le.s32.totalorder 1, %s9
    %p137 = scmp.lt.s32.totalorder %s9, 3
    %p138 = pnand %p136, %p137
    %p139 = pneg %p138
    // Predicated region
    $region29: #{complex_cnn_forward.3} parent=5 // pred_check
      _
    $region30: #{complex_cnn_forward.3} parent=5 // pred_check_branch
      %141 = sbr.rel (%p138) target = $region32
    $region31: #{complex_cnn_forward.3} parent=5 // pred_region
      %s142 = ssub.s32 %s9, 1
      %p143 = scmp.lt.s32.totalorder %s14, 1
      %s144 = scalar_select %p143, %s14, 1
      %s145 = smul.addr %s144, 40
      %s146 = smul.addr %s145, 4
      %s147 = scalar_lea.vmem %s0, %s146
      %p148 = pneg %p35
      %p149 = pneg %p32
      %p150 = pneg %p56
      %p151 = pneg %p53
      %p152 = pneg %p77
      %p153 = pneg %p74
      %p154 = pneg %p103
      %p155 = pneg %p100
      %p156 = scmp.lt.s32.totalorder %s14, 1
      %s157 = scalar_select %p156, %s14, 1
      %s158 = smul.addr %s157, 8
      %s159 = smul.addr %s158, 4
      %s160 = scalar_lea.vmem %s3, %s159
      %p161 = scmp.lt.s32.totalorder %s14, 1
      %s162 = scalar_select %p161, %s14, 1
      %s163 = smul.addr %s162, 40
      %s164 = smul.addr %s163, 4
      %s165 = scalar_lea.vmem %s0, %s164
      %p166 = scmp.lt.s32.totalorder %s14, 1
      %s167 = scalar_select %p166, %s14, 1
      %s168 = smul.addr %s167, 8
      %s169 = smul.addr %s168, 4
      %s170 = scalar_lea.vmem %s3, %s169
      %v172 = vld [vmem:[%s165] sm:$0xf]
      %v173 = vld [vmem:[%s165 + $0x4] sm:$0xf]
      %v174 = vld [vmem:[%s165 + $0x8] sm:$0xf]
      %v175 = vld [vmem:[%s165 + $0xc] sm:$0xf]
      %v176 = vld [vmem:[%s165 + $0x10] sm:$0xf]
      %v177 = vld [vmem:[%s165 + $0x14] sm:$0xf]
      %v178 = vld [vmem:[%s165 + $0x18] sm:$0xf]
      %v179 = vld [vmem:[%s165 + $0x1c] sm:$0xf]
      %v180 = vld [vmem:[%s165 + $0x20] sm:$0xf]
      %v181 = vld [vmem:[%s165 + $0x24] sm:$0xf]
      %v182 = vld [vmem:[%s165 + $0x28] sm:$0xf]
      %v183 = vld [vmem:[%s165 + $0x2c] sm:$0xf]
      %v184 = vld [vmem:[%s165 + $0x30] sm:$0xf]
      %v185 = vld [vmem:[%s165 + $0x34] sm:$0xf]
      %v186 = vld [vmem:[%s165 + $0x38] sm:$0xf]
      %v187 = vld [vmem:[%s165 + $0x3c] sm:$0xf]
      %v188 = vld [vmem:[%s165 + $0x40] sm:$0xf]
      %v189 = vld [vmem:[%s165 + $0x44] sm:$0xf]
      %v190 = vld [vmem:[%s165 + $0x48] sm:$0xf]
      %v191 = vld [vmem:[%s165 + $0x4c] sm:$0xf]
      %v192 = vld [vmem:[%s165 + $0x50] sm:$0xf]
      %v193 = vld [vmem:[%s165 + $0x54] sm:$0xf]
      %v194 = vld [vmem:[%s165 + $0x58] sm:$0xf]
      %v195 = vld [vmem:[%s165 + $0x5c] sm:$0xf]
      %v196 = vld [vmem:[%s165 + $0x60] sm:$0xf]
      %v197 = vld [vmem:[%s165 + $0x64] sm:$0xf]
      %v198 = vld [vmem:[%s165 + $0x68] sm:$0xf]
      %v199 = vld [vmem:[%s165 + $0x6c] sm:$0xf]
      %v200 = vld [vmem:[%s165 + $0x70] sm:$0xf]
      %v201 = vld [vmem:[%s165 + $0x74] sm:$0xf]
      %v202 = vld [vmem:[%s165 + $0x78] sm:$0xf]
      %v203 = vld [vmem:[%s165 + $0x7c] sm:$0xf]
      %v204 = vld [vmem:[%s1] sm:$0xf]
      %v205 = vld [vmem:[%s1 + $0x4] sm:$0xf]
      %v206 = vld [vmem:[%s1 + $0x8] sm:$0xf]
      %v207 = vld [vmem:[%s1 + $0xc] sm:$0xf]
      %v208 = vld [vmem:[%s1 + $0x10] sm:$0xf]
      %s209 = scalar_lea.vmem %s165, 8
      %v210 = vld [vmem:[%s209] sm:$0xf]
      %v211 = vld [vmem:[%s209 + $0x4] sm:$0xf]
      %v212 = vld [vmem:[%s209 + $0x8] sm:$0xf]
      %v213 = vld [vmem:[%s209 + $0xc] sm:$0xf]
      %v214 = vld [vmem:[%s209 + $0x10] sm:$0xf]
      %v215 = vld [vmem:[%s209 + $0x14] sm:$0xf]
      %v216 = vld [vmem:[%s209 + $0x18] sm:$0xf]
      %v217 = vld [vmem:[%s209 + $0x1c] sm:$0xf]
      %v218 = vld [vmem:[%s209 + $0x20] sm:$0xf]
      %v219 = vld [vmem:[%s209 + $0x24] sm:$0xf]
      %v220 = vld [vmem:[%s209 + $0x28] sm:$0xf]
      %v221 = vld [vmem:[%s209 + $0x2c] sm:$0xf]
      %v222 = vld [vmem:[%s209 + $0x30] sm:$0xf]
      %v223 = vld [vmem:[%s209 + $0x34] sm:$0xf]
      %v224 = vld [vmem:[%s209 + $0x38] sm:$0xf]
      %v225 = vld [vmem:[%s209 + $0x3c] sm:$0xf]
      %v226 = vld [vmem:[%s209 + $0x40] sm:$0xf]
      %v227 = vld [vmem:[%s209 + $0x44] sm:$0xf]
      %v228 = vld [vmem:[%s209 + $0x48] sm:$0xf]
      %v229 = vld [vmem:[%s209 + $0x4c] sm:$0xf]
      %v230 = vld [vmem:[%s209 + $0x50] sm:$0xf]
      %v231 = vld [vmem:[%s209 + $0x54] sm:$0xf]
      %v232 = vld [vmem:[%s209 + $0x58] sm:$0xf]
      %v233 = vld [vmem:[%s209 + $0x5c] sm:$0xf]
      %v234 = vld [vmem:[%s209 + $0x60] sm:$0xf]
      %v235 = vld [vmem:[%s209 + $0x64] sm:$0xf]
      %v236 = vld [vmem:[%s209 + $0x68] sm:$0xf]
      %v237 = vld [vmem:[%s209 + $0x6c] sm:$0xf]
      %v238 = vld [vmem:[%s209 + $0x70] sm:$0xf]
      %v239 = vld [vmem:[%s209 + $0x74] sm:$0xf]
      %v240 = vld [vmem:[%s209 + $0x78] sm:$0xf]
      %v241 = vld [vmem:[%s209 + $0x7c] sm:$0xf]
      %s242 = scalar_lea.vmem %s1, 20
      %v243 = vld [vmem:[%s242] sm:$0xf]
      %v244 = vld [vmem:[%s242 + $0x4] sm:$0xf]
      %v245 = vld [vmem:[%s242 + $0x8] sm:$0xf]
      %v246 = vld [vmem:[%s242 + $0xc] sm:$0xf]
      %v247 = vld [vmem:[%s242 + $0x10] sm:$0xf]
      %v280 = vunpack.c.l.b16 %v210
      %v281 = vunpack.c.l.b16 %v211
      %v282 = vunpack.c.l.b16 %v212
      %v283 = vunpack.c.l.b16 %v213
      %v284 = vunpack.c.l.b16 %v214
      %v285 = vunpack.c.l.b16 %v215
      %v286 = vunpack.c.l.b16 %v216
      %v287 = vunpack.c.l.b16 %v217
      %v288 = vunpack.c.l.b16 %v218
      %v289 = vunpack.c.l.b16 %v219
      %v290 = vunpack.c.l.b16 %v220
      %v291 = vunpack.c.l.b16 %v221
      %v292 = vunpack.c.l.b16 %v222
      %v293 = vunpack.c.l.b16 %v223
      %v294 = vunpack.c.l.b16 %v224
      %v295 = vunpack.c.l.b16 %v225
      %v296 = vunpack.c.l.b16 %v226
      %v297 = vunpack.c.l.b16 %v227
      %v298 = vunpack.c.l.b16 %v228
      %v299 = vunpack.c.l.b16 %v229
      %v300 = vunpack.c.l.b16 %v230
      %v301 = vunpack.c.l.b16 %v231
      %v302 = vunpack.c.l.b16 %v232
      %v303 = vunpack.c.l.b16 %v233
      %v304 = vunpack.c.l.b16 %v234
      %v305 = vunpack.c.l.b16 %v235
      %v306 = vunpack.c.l.b16 %v236
      %v307 = vunpack.c.l.b16 %v237
      %v308 = vunpack.c.l.b16 %v238
      %v309 = vunpack.c.l.b16 %v239
      %v310 = vunpack.c.l.b16 %v240
      %v311 = vunpack.c.l.b16 %v241
      %v312 = vpack.c.b16 %v281, %v280
      %v313 = vpack.c.b16 %v283, %v282
      %v314 = vpack.c.b16 %v285, %v284
      %v315 = vpack.c.b16 %v287, %v286
      %v316 = vpack.c.b16 %v289, %v288
      %v317 = vpack.c.b16 %v291, %v290
      %v318 = vpack.c.b16 %v293, %v292
      %v319 = vpack.c.b16 %v295, %v294
      %v320 = vpack.c.b16 %v297, %v296
      %v321 = vpack.c.b16 %v299, %v298
      %v322 = vpack.c.b16 %v301, %v300
      %v323 = vpack.c.b16 %v303, %v302
      %v324 = vpack.c.b16 %v305, %v304
      %v325 = vpack.c.b16 %v307, %v306
      %v326 = vpack.c.b16 %v309, %v308
      %v327 = vpack.c.b16 %v311, %v310
      %v333 = vunpack.c.l.b16 %v243
      %v334 = vunpack.c.l.b16 %v244
      %v335 = vunpack.c.l.b16 %v245
      %v336 = vunpack.c.l.b16 %v246
      %v337 = vunpack.c.l.b16 %v247
      %v338 = vpack.c.b16 %v334, %v333
      %v339 = vpack.c.b16 %v336, %v335
      %v340 = vpack.c.b16 %v337, %v337
      %vm343 = vcmask 326656
      %v345 = vsel %vm343, %v312, 0
      %v348 = vsel %vm343, %v313, 0
      %v351 = vsel %vm343, %v314, 0
      %v354 = vsel %vm343, %v315, 0
      %v357 = vsel %vm343, %v316, 0
      %v360 = vsel %vm343, %v317, 0
      %v363 = vsel %vm343, %v318, 0
      %v366 = vsel %vm343, %v319, 0
      %v369 = vsel %vm343, %v320, 0
      %v372 = vsel %vm343, %v321, 0
      %v375 = vsel %vm343, %v322, 0
      %v378 = vsel %vm343, %v323, 0
      %v381 = vsel %vm343, %v324, 0
      %v384 = vsel %vm343, %v325, 0
      %v387 = vsel %vm343, %v326, 0
      %v390 = vsel %vm343, %v327, 0
      %vm392 = vcmask 1043456
      %v394 = vsel %vm392, %v340, 0
      %396 = vmatprep.subr.bf16.mxu0 0
      %397 = vmatpush1.bf16.msra.mxu0 %v338
      %398 = vmatprep.subr.bf16.mxu0 0
      %399 = vmatpush1.bf16.msra.mxu0 %v339
      %400 = vmatprep.subr.bf16.mxu0 0
      %401 = vmatpush1.bf16.msra.mxu0 %v394
      %402 = vmatprep.subr.bf16.mxu0 0
      %403 = vmatpush1.bf16.msra.mxu0 0
      %404 = vmatprep.subr.bf16.mxu0 0
      %405 = vmatpush1.bf16.msra.mxu0 0
      %406 = vmatprep.subr.bf16.mxu0 0
      %407 = vmatpush1.bf16.msra.mxu0 0
      %408 = vmatprep.subr.bf16.mxu0 0
      %409 = vmatpush1.bf16.msra.mxu0 0
      %410 = vmatprep.subr.bf16.mxu0 0
      %411 = vmatpush1.bf16.msra.mxu0 0
      %412 = vmatprep.subr.bf16.mxu0 0
      %413 = vmatpush1.bf16.msra.mxu0 0
      %414 = vmatprep.subr.bf16.mxu0 0
      %415 = vmatpush1.bf16.msra.mxu0 0
      %416 = vmatprep.subr.bf16.mxu0 0
      %417 = vmatpush1.bf16.msra.mxu0 0
      %418 = vmatprep.subr.bf16.mxu0 0
      %419 = vmatpush1.bf16.msra.mxu0 0
      %420 = vmatprep.subr.bf16.mxu0 0
      %421 = vmatpush1.bf16.msra.mxu0 0
      %422 = vmatprep.subr.bf16.mxu0 0
      %423 = vmatpush1.bf16.msra.mxu0 0
      %424 = vmatprep.subr.bf16.mxu0 0
      %425 = vmatpush1.bf16.msra.mxu0 0
      %426 = vmatprep.subr.bf16.mxu0 0
      %427 = vmatpush1.bf16.msra.mxu0 0
      %428 = vmatprep.mubr.bf16.mxu0 0
      %429 = vmatmul.mubr.bf16.gmra.mrb[0].mxu0 %v345
      %v430 = vpop.f32.mrb[0].mxu0
      %v431 = vadd.f32 0.0, %v430
      %v432 = vpop.f32.mrb[0].mxu0
      %v433 = vpop.f32.mrb[0].mxu0
      %v434 = vadd.f32 0.0, %v433
      %v435 = vpop.f32.mrb[0].mxu0
      %436 = vmatprep.mubr.bf16.mxu0 0
      %437 = vmatmul.mubr.bf16.gmra.mrb[0].mxu0 %v348
      %v438 = vpop.f32.mrb[0].mxu0
      %v439 = vadd.f32 0.0, %v438
      %v440 = vpop.f32.mrb[0].mxu0
      %v441 = vpop.f32.mrb[0].mxu0
      %v442 = vadd.f32 0.0, %v441
      %v443 = vpop.f32.mrb[0].mxu0
      %444 = vmatprep.mubr.bf16.mxu0 0
      %445 = vmatmul.mubr.bf16.gmra.mrb[0].mxu0 %v351
      %v446 = vpop.f32.mrb[0].mxu0
      %v447 = vadd.f32 0.0, %v446
      %v448 = vpop.f32.mrb[0].mxu0
      %v449 = vpop.f32.mrb[0].mxu0
      %v450 = vadd.f32 0.0, %v449
      %v451 = vpop.f32.mrb[0].mxu0
      %452 = vmatprep.mubr.bf16.mxu0 0
      %453 = vmatmul.mubr.bf16.gmra.mrb[0].mxu0 %v354
      %v454 = vpop.f32.mrb[0].mxu0
      %v455 = vadd.f32 0.0, %v454
      %v456 = vpop.f32.mrb[0].mxu0
      %v457 = vpop.f32.mrb[0].mxu0
      %v458 = vadd.f32 0.0, %v457
      %v459 = vpop.f32.mrb[0].mxu0
      %460 = vmatprep.mubr.bf16.mxu0 0
      %461 = vmatmul.mubr.bf16.gmra.mrb[0].mxu0 %v357
      %v462 = vpop.f32.mrb[0].mxu0
      %v463 = vadd.f32 0.0, %v462
      %v464 = vpop.f32.mrb[0].mxu0
      %v465 = vpop.f32.mrb[0].mxu0
      %v466 = vadd.f32 0.0, %v465
      %v467 = vpop.f32.mrb[0].mxu0
      %468 = vmatprep.mubr.bf16.mxu0 0
      %469 = vmatmul.mubr.bf16.gmra.mrb[0].mxu0 %v360
      %v470 = vpop.f32.mrb[0].mxu0
      %v471 = vadd.f32 0.0, %v470
      %v472 = vpop.f32.mrb[0].mxu0
      %v473 = vpop.f32.mrb[0].mxu0
      %v474 = vadd.f32 0.0, %v473
      %v475 = vpop.f32.mrb[0].mxu0
      %476 = vmatprep.mubr.bf16.mxu0 0
      %477 = vmatmul.mubr.bf16.gmra.mrb[0].mxu0 %v363
      %v478 = vpop.f32.mrb[0].mxu0
      %v479 = vadd.f32 0.0, %v478
      %v480 = vpop.f32.mrb[0].mxu0
      %v481 = vpop.f32.mrb[0].mxu0
      %v482 = vadd.f32 0.0, %v481
      %v483 = vpop.f32.mrb[0].mxu0
      %484 = vmatprep.mubr.bf16.mxu0 0
      %485 = vmatmul.mubr.bf16.gmra.mrb[0].mxu0 %v366
      %v486 = vpop.f32.mrb[0].mxu0
      %v487 = vadd.f32 0.0, %v486
      %v488 = vpop.f32.mrb[0].mxu0
      %v489 = vpop.f32.mrb[0].mxu0
      %v490 = vadd.f32 0.0, %v489
      %v491 = vpop.f32.mrb[0].mxu0
      %492 = vmatprep.mubr.bf16.mxu0 0
      %493 = vmatmul.mubr.bf16.gmra.mrb[0].mxu0 %v369
      %v494 = vpop.f32.mrb[0].mxu0
      %v495 = vadd.f32 0.0, %v494
      %v496 = vpop.f32.mrb[0].mxu0
      %v497 = vpop.f32.mrb[0].mxu0
      %v498 = vadd.f32 0.0, %v497
      %v499 = vpop.f32.mrb[0].mxu0
      %500 = vmatprep.mubr.bf16.mxu0 0
      %501 = vmatmul.mubr.bf16.gmra.mrb[0].mxu0 %v372
      %v502 = vpop.f32.mrb[0].mxu0
      %v503 = vadd.f32 0.0, %v502
      %v504 = vpop.f32.mrb[0].mxu0
      %v505 = vpop.f32.mrb[0].mxu0
      %v506 = vadd.f32 0.0, %v505
      %v507 = vpop.f32.mrb[0].mxu0
      %508 = vmatprep.mubr.bf16.mxu0 0
      %509 = vmatmul.mubr.bf16.gmra.mrb[0].mxu0 %v375
      %v510 = vpop.f32.mrb[0].mxu0
      %v511 = vadd.f32 0.0, %v510
      %v512 = vpop.f32.mrb[0].mxu0
      %v513 = vpop.f32.mrb[0].mxu0
      %v514 = vadd.f32 0.0, %v513
      %v515 = vpop.f32.mrb[0].mxu0
      %516 = vmatprep.mubr.bf16.mxu0 0
      %517 = vmatmul.mubr.bf16.gmra.mrb[0].mxu0 %v378
      %v518 = vpop.f32.mrb[0].mxu0
      %v519 = vadd.f32 0.0, %v518
      %v520 = vpop.f32.mrb[0].mxu0
      %v521 = vpop.f32.mrb[0].mxu0
      %v522 = vadd.f32 0.0, %v521
      %v523 = vpop.f32.mrb[0].mxu0
      %524 = vmatprep.mubr.bf16.mxu0 0
      %525 = vmatmul.mubr.bf16.gmra.mrb[0].mxu0 %v381
      %v526 = vpop.f32.mrb[0].mxu0
      %v527 = vadd.f32 0.0, %v526
      %v528 = vpop.f32.mrb[0].mxu0
      %v529 = vpop.f32.mrb[0].mxu0
      %v530 = vadd.f32 0.0, %v529
      %v531 = vpop.f32.mrb[0].mxu0
      %532 = vmatprep.mubr.bf16.mxu0 0
      %533 = vmatmul.mubr.bf16.gmra.mrb[0].mxu0 %v384
      %v534 = vpop.f32.mrb[0].mxu0
      %v535 = vadd.f32 0.0, %v534
      %v536 = vpop.f32.mrb[0].mxu0
      %v537 = vpop.f32.mrb[0].mxu0
      %v538 = vadd.f32 0.0, %v537
      %v539 = vpop.f32.mrb[0].mxu0
      %540 = vmatprep.mubr.bf16.mxu0 0
      %541 = vmatmul.mubr.bf16.gmra.mrb[0].mxu0 %v387
      %v542 = vpop.f32.mrb[0].mxu0
      %v543 = vadd.f32 0.0, %v542
      %v544 = vpop.f32.mrb[0].mxu0
      %v545 = vpop.f32.mrb[0].mxu0
      %v546 = vadd.f32 0.0, %v545
      %v547 = vpop.f32.mrb[0].mxu0
      %548 = vmatprep.mubr.bf16.mxu0 0
      %549 = vmatmul.mubr.bf16.gmra.mrb[0].mxu0 %v390
      %v550 = vpop.f32.mrb[0].mxu0
      %v551 = vadd.f32 0.0, %v550
      %v552 = vpop.f32.mrb[0].mxu0
      %v553 = vpop.f32.mrb[0].mxu0
      %v554 = vadd.f32 0.0, %v553
      %v555 = vpop.f32.mrb[0].mxu0
      %556 = vdwg.mxu0
      %v589 = vunpack.c.l.b16 %v172
      %v590 = vunpack.c.l.b16 %v173
      %v591 = vunpack.c.l.b16 %v174
      %v592 = vunpack.c.l.b16 %v175
      %v593 = vunpack.c.l.b16 %v176
      %v594 = vunpack.c.l.b16 %v177
      %v595 = vunpack.c.l.b16 %v178
      %v596 = vunpack.c.l.b16 %v179
      %v597 = vunpack.c.l.b16 %v180
      %v598 = vunpack.c.l.b16 %v181
      %v599 = vunpack.c.l.b16 %v182
      %v600 = vunpack.c.l.b16 %v183
      %v601 = vunpack.c.l.b16 %v184
      %v602 = vunpack.c.l.b16 %v185
      %v603 = vunpack.c.l.b16 %v186
      %v604 = vunpack.c.l.b16 %v187
      %v605 = vunpack.c.l.b16 %v188
      %v606 = vunpack.c.l.b16 %v189
      %v607 = vunpack.c.l.b16 %v190
      %v608 = vunpack.c.l.b16 %v191
      %v609 = vunpack.c.l.b16 %v192
      %v610 = vunpack.c.l.b16 %v193
      %v611 = vunpack.c.l.b16 %v194
      %v612 = vunpack.c.l.b16 %v195
      %v613 = vunpack.c.l.b16 %v196
      %v614 = vunpack.c.l.b16 %v197
      %v615 = vunpack.c.l.b16 %v198
      %v616 = vunpack.c.l.b16 %v199
      %v617 = vunpack.c.l.b16 %v200
      %v618 = vunpack.c.l.b16 %v201
      %v619 = vunpack.c.l.b16 %v202
      %v620 = vunpack.c.l.b16 %v203
      %v621 = vpack.c.b16 %v590, %v589
      %v622 = vpack.c.b16 %v592, %v591
      %v623 = vpack.c.b16 %v594, %v593
      %v624 = vpack.c.b16 %v596, %v595
      %v625 = vpack.c.b16 %v598, %v597
      %v626 = vpack.c.b16 %v600, %v599
      %v627 = vpack.c.b16 %v602, %v601
      %v628 = vpack.c.b16 %v604, %v603
      %v629 = vpack.c.b16 %v606, %v605
      %v630 = vpack.c.b16 %v608, %v607
      %v631 = vpack.c.b16 %v610, %v609
      %v632 = vpack.c.b16 %v612, %v611
      %v633 = vpack.c.b16 %v614, %v613
      %v634 = vpack.c.b16 %v616, %v615
      %v635 = vpack.c.b16 %v618, %v617
      %v636 = vpack.c.b16 %v620, %v619
      %v642 = vunpack.c.l.b16 %v204
      %v643 = vunpack.c.l.b16 %v205
      %v644 = vunpack.c.l.b16 %v206
      %v645 = vunpack.c.l.b16 %v207
      %v646 = vunpack.c.l.b16 %v208
      %v647 = vpack.c.b16 %v643, %v642
      %v648 = vpack.c.b16 %v645, %v644
      %v649 = vpack.c.b16 %v646, %v646
      %v653 = vsel %vm343, %v621, 0
      %v656 = vsel %vm343, %v622, 0
      %v659 = vsel %vm343, %v623, 0
      %v662 = vsel %vm343, %v624, 0
      %v665 = vsel %vm343, %v625, 0
      %v668 = vsel %vm343, %v626, 0
      %v671 = vsel %vm343, %v627, 0
      %v674 = vsel %vm343, %v628, 0
      %v677 = vsel %vm343, %v629, 0
      %v680 = vsel %vm343, %v630, 0
      %v683 = vsel %vm343, %v631, 0
      %v686 = vsel %vm343, %v632, 0
      %v689 = vsel %vm343, %v633, 0
      %v692 = vsel %vm343, %v634, 0
      %v695 = vsel %vm343, %v635, 0
      %v698 = vsel %vm343, %v636, 0
      %v701 = vsel %vm392, %v649, 0
      %703 = vmatprep.subr.bf16.mxu0 0
      %704 = vmatpush1.bf16.msra.mxu0 %v647
      %705 = vmatprep.subr.bf16.mxu0 0
      %706 = vmatpush1.bf16.msra.mxu0 %v648
      %707 = vmatprep.subr.bf16.mxu0 0
      %708 = vmatpush1.bf16.msra.mxu0 %v701
      %709 = vmatprep.subr.bf16.mxu0 0
      %710 = vmatpush1.bf16.msra.mxu0 0
      %711 = vmatprep.subr.bf16.mxu0 0
      %712 = vmatpush1.bf16.msra.mxu0 0
      %713 = vmatprep.subr.bf16.mxu0 0
      %714 = vmatpush1.bf16.msra.mxu0 0
      %715 = vmatprep.subr.bf16.mxu0 0
      %716 = vmatpush1.bf16.msra.mxu0 0
      %717 = vmatprep.subr.bf16.mxu0 0
      %718 = vmatpush1.bf16.msra.mxu0 0
      %719 = vmatprep.subr.bf16.mxu0 0
      %720 = vmatpush1.bf16.msra.mxu0 0
      %721 = vmatprep.subr.bf16.mxu0 0
      %722 = vmatpush1.bf16.msra.mxu0 0
      %723 = vmatprep.subr.bf16.mxu0 0
      %724 = vmatpush1.bf16.msra.mxu0 0
      %725 = vmatprep.subr.bf16.mxu0 0
      %726 = vmatpush1.bf16.msra.mxu0 0
      %727 = vmatprep.subr.bf16.mxu0 0
      %728 = vmatpush1.bf16.msra.mxu0 0
      %729 = vmatprep.subr.bf16.mxu0 0
      %730 = vmatpush1.bf16.msra.mxu0 0
      %731 = vmatprep.subr.bf16.mxu0 0
      %732 = vmatpush1.bf16.msra.mxu0 0
      %733 = vmatprep.subr.bf16.mxu0 0
      %734 = vmatpush1.bf16.msra.mxu0 0
      %735 = vmatprep.mubr.bf16.mxu0 0
      %736 = vmatmul.mubr.bf16.gmra.mrb[0].mxu0 %v653
      %v737 = vpop.f32.mrb[0].mxu0
      %v738 = vadd.f32 %v431, %v737
      %v739 = vpop.f32.mrb[0].mxu0
      %v740 = vpop.f32.mrb[0].mxu0
      %v741 = vadd.f32 %v434, %v740
      %v742 = vpop.f32.mrb[0].mxu0
      %743 = vmatprep.mubr.bf16.mxu0 0
      %744 = vmatmul.mubr.bf16.gmra.mrb[0].mxu0 %v656
      %v745 = vpop.f32.mrb[0].mxu0
      %v746 = vadd.f32 %v439, %v745
      %v747 = vpop.f32.mrb[0].mxu0
      %v748 = vpop.f32.mrb[0].mxu0
      %v749 = vadd.f32 %v442, %v748
      %v750 = vpop.f32.mrb[0].mxu0
      %751 = vmatprep.mubr.bf16.mxu0 0
      %752 = vmatmul.mubr.bf16.gmra.mrb[0].mxu0 %v659
      %v753 = vpop.f32.mrb[0].mxu0
      %v754 = vadd.f32 %v447, %v753
      %v755 = vpop.f32.mrb[0].mxu0
      %v756 = vpop.f32.mrb[0].mxu0
      %v757 = vadd.f32 %v450, %v756
      %v758 = vpop.f32.mrb[0].mxu0
      %759 = vmatprep.mubr.bf16.mxu0 0
      %760 = vmatmul.mubr.bf16.gmra.mrb[0].mxu0 %v662
      %v761 = vpop.f32.mrb[0].mxu0
      %v762 = vadd.f32 %v455, %v761
      %v763 = vpop.f32.mrb[0].mxu0
      %v764 = vpop.f32.mrb[0].mxu0
      %v765 = vadd.f32 %v458, %v764
      %v766 = vpop.f32.mrb[0].mxu0
      %767 = vmatprep.mubr.bf16.mxu0 0
      %768 = vmatmul.mubr.bf16.gmra.mrb[0].mxu0 %v665
      %v769 = vpop.f32.mrb[0].mxu0
      %v770 = vadd.f32 %v463, %v769
      %v771 = vpop.f32.mrb[0].mxu0
      %v772 = vpop.f32.mrb[0].mxu0
      %v773 = vadd.f32 %v466, %v772
      %v774 = vpop.f32.mrb[0].mxu0
      %775 = vmatprep.mubr.bf16.mxu0 0
      %776 = vmatmul.mubr.bf16.gmra.mrb[0].mxu0 %v668
      %v777 = vpop.f32.mrb[0].mxu0
      %v778 = vadd.f32 %v471, %v777
      %v779 = vpop.f32.mrb[0].mxu0
      %v780 = vpop.f32.mrb[0].mxu0
      %v781 = vadd.f32 %v474, %v780
      %v782 = vpop.f32.mrb[0].mxu0
      %783 = vmatprep.mubr.bf16.mxu0 0
      %784 = vmatmul.mubr.bf16.gmra.mrb[0].mxu0 %v671
      %v785 = vpop.f32.mrb[0].mxu0
      %v786 = vadd.f32 %v479, %v785
      %v787 = vpop.f32.mrb[0].mxu0
      %v788 = vpop.f32.mrb[0].mxu0
      %v789 = vadd.f32 %v482, %v788
      %v790 = vpop.f32.mrb[0].mxu0
      %791 = vmatprep.mubr.bf16.mxu0 0
      %792 = vmatmul.mubr.bf16.gmra.mrb[0].mxu0 %v674
      %v793 = vpop.f32.mrb[0].mxu0
      %v794 = vadd.f32 %v487, %v793
      %v795 = vpop.f32.mrb[0].mxu0
      %v796 = vpop.f32.mrb[0].mxu0
      %v797 = vadd.f32 %v490, %v796
      %v798 = vpop.f32.mrb[0].mxu0
      %799 = vmatprep.mubr.bf16.mxu0 0
      %800 = vmatmul.mubr.bf16.gmra.mrb[0].mxu0 %v677
      %v801 = vpop.f32.mrb[0].mxu0
      %v802 = vadd.f32 %v495, %v801
      %v803 = vpop.f32.mrb[0].mxu0
      %v804 = vpop.f32.mrb[0].mxu0
      %v805 = vadd.f32 %v498, %v804
      %v806 = vpop.f32.mrb[0].mxu0
      %807 = vmatprep.mubr.bf16.mxu0 0
      %808 = vmatmul.mubr.bf16.gmra.mrb[0].mxu0 %v680
      %v809 = vpop.f32.mrb[0].mxu0
      %v810 = vadd.f32 %v503, %v809
      %v811 = vpop.f32.mrb[0].mxu0
      %v812 = vpop.f32.mrb[0].mxu0
      %v813 = vadd.f32 %v506, %v812
      %v814 = vpop.f32.mrb[0].mxu0
      %815 = vmatprep.mubr.bf16.mxu0 0
      %816 = vmatmul.mubr.bf16.gmra.mrb[0].mxu0 %v683
      %v817 = vpop.f32.mrb[0].mxu0
      %v818 = vadd.f32 %v511, %v817
      %v819 = vpop.f32.mrb[0].mxu0
      %v820 = vpop.f32.mrb[0].mxu0
      %v821 = vadd.f32 %v514, %v820
      %v822 = vpop.f32.mrb[0].mxu0
      %823 = vmatprep.mubr.bf16.mxu0 0
      %824 = vmatmul.mubr.bf16.gmra.mrb[0].mxu0 %v686
      %v825 = vpop.f32.mrb[0].mxu0
      %v826 = vadd.f32 %v519, %v825
      %v827 = vpop.f32.mrb[0].mxu0
      %v828 = vpop.f32.mrb[0].mxu0
      %v829 = vadd.f32 %v522, %v828
      %v830 = vpop.f32.mrb[0].mxu0
      %831 = vmatprep.mubr.bf16.mxu0 0
      %832 = vmatmul.mubr.bf16.gmra.mrb[0].mxu0 %v689
      %v833 = vpop.f32.mrb[0].mxu0
      %v834 = vadd.f32 %v527, %v833
      %v835 = vpop.f32.mrb[0].mxu0
      %v836 = vpop.f32.mrb[0].mxu0
      %v837 = vadd.f32 %v530, %v836
      %v838 = vpop.f32.mrb[0].mxu0
      %839 = vmatprep.mubr.bf16.mxu0 0
      %840 = vmatmul.mubr.bf16.gmra.mrb[0].mxu0 %v692
      %v841 = vpop.f32.mrb[0].mxu0
      %v842 = vadd.f32 %v535, %v841
      %v843 = vpop.f32.mrb[0].mxu0
      %v844 = vpop.f32.mrb[0].mxu0
      %v845 = vadd.f32 %v538, %v844
      %v846 = vpop.f32.mrb[0].mxu0
      %847 = vmatprep.mubr.bf16.mxu0 0
      %848 = vmatmul.mubr.bf16.gmra.mrb[0].mxu0 %v695
      %v849 = vpop.f32.mrb[0].mxu0
      %v850 = vadd.f32 %v543, %v849
      %v851 = vpop.f32.mrb[0].mxu0
      %v852 = vpop.f32.mrb[0].mxu0
      %v853 = vadd.f32 %v546, %v852
      %v854 = vpop.f32.mrb[0].mxu0
      %855 = vmatprep.mubr.bf16.mxu0 0
      %856 = vmatmul.mubr.bf16.gmra.mrb[0].mxu0 %v698
      %v857 = vpop.f32.mrb[0].mxu0
      %v858 = vadd.f32 %v551, %v857
      %v859 = vpop.f32.mrb[0].mxu0
      %v860 = vpop.f32.mrb[0].mxu0
      %v861 = vadd.f32 %v554, %v860
      %v862 = vpop.f32.mrb[0].mxu0
      %863 = vdwg.mxu0
      %s864 = scalar_lea.vmem %s165, 16
      %v865 = vld [vmem:[%s864] sm:$0xf]
      %v866 = vld [vmem:[%s864 + $0x4] sm:$0xf]
      %v867 = vld [vmem:[%s864 + $0x8] sm:$0xf]
      %v868 = vld [vmem:[%s864 + $0xc] sm:$0xf]
      %v869 = vld [vmem:[%s864 + $0x10] sm:$0xf]
      %v870 = vld [vmem:[%s864 + $0x14] sm:$0xf]
      %v871 = vld [vmem:[%s864 + $0x18] sm:$0xf]
      %v872 = vld [vmem:[%s864 + $0x1c] sm:$0xf]
      %v873 = vld [vmem:[%s864 + $0x20] sm:$0xf]
      %v874 = vld [vmem:[%s864 + $0x24] sm:$0xf]
      %v875 = vld [vmem:[%s864 + $0x28] sm:$0xf]
      %v876 = vld [vmem:[%s864 + $0x2c] sm:$0xf]
      %v877 = vld [vmem:[%s864 + $0x30] sm:$0xf]
      %v878 = vld [vmem:[%s864 + $0x34] sm:$0xf]
      %v879 = vld [vmem:[%s864 + $0x38] sm:$0xf]
      %v880 = vld [vmem:[%s864 + $0x3c] sm:$0xf]
      %v881 = vld [vmem:[%s864 + $0x40] sm:$0xf]
      %v882 = vld [vmem:[%s864 + $0x44] sm:$0xf]
      %v883 = vld [vmem:[%s864 + $0x48] sm:$0xf]
      %v884 = vld [vmem:[%s864 + $0x4c] sm:$0xf]
      %v885 = vld [vmem:[%s864 + $0x50] sm:$0xf]
      %v886 = vld [vmem:[%s864 + $0x54] sm:$0xf]
      %v887 = vld [vmem:[%s864 + $0x58] sm:$0xf]
      %v888 = vld [vmem:[%s864 + $0x5c] sm:$0xf]
      %v889 = vld [vmem:[%s864 + $0x60] sm:$0xf]
      %v890 = vld [vmem:[%s864 + $0x64] sm:$0xf]
      %v891 = vld [vmem:[%s864 + $0x68] sm:$0xf]
      %v892 = vld [vmem:[%s864 + $0x6c] sm:$0xf]
      %v893 = vld [vmem:[%s864 + $0x70] sm:$0xf]
      %v894 = vld [vmem:[%s864 + $0x74] sm:$0xf]
      %v895 = vld [vmem:[%s864 + $0x78] sm:$0xf]
      %v896 = vld [vmem:[%s864 + $0x7c] sm:$0xf]
      %s897 = scalar_lea.vmem %s1, 40
      %v898 = vld [vmem:[%s897] sm:$0xf]
      %v899 = vld [vmem:[%s897 + $0x4] sm:$0xf]
      %v900 = vld [vmem:[%s897 + $0x8] sm:$0xf]
      %v901 = vld [vmem:[%s897 + $0xc] sm:$0xf]
      %v902 = vld [vmem:[%s897 + $0x10] sm:$0xf]
      %v935 = vunpack.c.l.b16 %v865
      %v936 = vunpack.c.l.b16 %v866
      %v937 = vunpack.c.l.b16 %v867
      %v938 = vunpack.c.l.b16 %v868
      %v939 = vunpack.c.l.b16 %v869
      %v940 = vunpack.c.l.b16 %v870
      %v941 = vunpack.c.l.b16 %v871
      %v942 = vunpack.c.l.b16 %v872
      %v943 = vunpack.c.l.b16 %v873
      %v944 = vunpack.c.l.b16 %v874
      %v945 = vunpack.c.l.b16 %v875
      %v946 = vunpack.c.l.b16 %v876
      %v947 = vunpack.c.l.b16 %v877
      %v948 = vunpack.c.l.b16 %v878
      %v949 = vunpack.c.l.b16 %v879
      %v950 = vunpack.c.l.b16 %v880
      %v951 = vunpack.c.l.b16 %v881
      %v952 = vunpack.c.l.b16 %v882
      %v953 = vunpack.c.l.b16 %v883
      %v954 = vunpack.c.l.b16 %v884
      %v955 = vunpack.c.l.b16 %v885
      %v956 = vunpack.c.l.b16 %v886
      %v957 = vunpack.c.l.b16 %v887
      %v958 = vunpack.c.l.b16 %v888
      %v959 = vunpack.c.l.b16 %v889
      %v960 = vunpack.c.l.b16 %v890
      %v961 = vunpack.c.l.b16 %v891
      %v962 = vunpack.c.l.b16 %v892
      %v963 = vunpack.c.l.b16 %v893
      %v964 = vunpack.c.l.b16 %v894
      %v965 = vunpack.c.l.b16 %v895
      %v966 = vunpack.c.l.b16 %v896
      %v967 = vpack.c.b16 %v936, %v935
      %v968 = vpack.c.b16 %v938, %v937
      %v969 = vpack.c.b16 %v940, %v939
      %v970 = vpack.c.b16 %v942, %v941
      %v971 = vpack.c.b16 %v944, %v943
      %v972 = vpack.c.b16 %v946, %v945
      %v973 = vpack.c.b16 %v948, %v947
      %v974 = vpack.c.b16 %v950, %v949
      %v975 = vpack.c.b16 %v952, %v951
      %v976 = vpack.c.b16 %v954, %v953
      %v977 = vpack.c.b16 %v956, %v955
      %v978 = vpack.c.b16 %v958, %v957
      %v979 = vpack.c.b16 %v960, %v959
      %v980 = vpack.c.b16 %v962, %v961
      %v981 = vpack.c.b16 %v964, %v963
      %v982 = vpack.c.b16 %v966, %v965
      %v988 = vunpack.c.l.b16 %v898
      %v989 = vunpack.c.l.b16 %v899
      %v990 = vunpack.c.l.b16 %v900
      %v991 = vunpack.c.l.b16 %v901
      %v992 = vunpack.c.l.b16 %v902
      %v993 = vpack.c.b16 %v989, %v988
      %v994 = vpack.c.b16 %v991, %v990
      %v995 = vpack.c.b16 %v992, %v992
      %v999 = vsel %vm343, %v967, 0
      %v1002 = vsel %vm343, %v968, 0
      %v1005 = vsel %vm343, %v969, 0
      %v1008 = vsel %vm343, %v970, 0
      %v1011 = vsel %vm343, %v971, 0
      %v1014 = vsel %vm343, %v972, 0
      %v1017 = vsel %vm343, %v973, 0
      %v1020 = vsel %vm343, %v974, 0
      %v1023 = vsel %vm343, %v975, 0
      %v1026 = vsel %vm343, %v976, 0
      %v1029 = vsel %vm343, %v977, 0
      %v1032 = vsel %vm343, %v978, 0
      %v1035 = vsel %vm343, %v979, 0
      %v1038 = vsel %vm343, %v980, 0
      %v1041 = vsel %vm343, %v981, 0
      %v1044 = vsel %vm343, %v982, 0
      %v1047 = vsel %vm392, %v995, 0
      %1049 = vmatprep.subr.bf16.mxu0 0
      %1050 = vmatpush1.bf16.msra.mxu0 %v993
      %1051 = vmatprep.subr.bf16.mxu0 0
      %1052 = vmatpush1.bf16.msra.mxu0 %v994
      %1053 = vmatprep.subr.bf16.mxu0 0
      %1054 = vmatpush1.bf16.msra.mxu0 %v1047
      %1055 = vmatprep.subr.bf16.mxu0 0
      %1056 = vmatpush1.bf16.msra.mxu0 0
      %1057 = vmatprep.subr.bf16.mxu0 0
      %1058 = vmatpush1.bf16.msra.mxu0 0
      %1059 = vmatprep.subr.bf16.mxu0 0
      %1060 = vmatpush1.bf16.msra.mxu0 0
      %1061 = vmatprep.subr.bf16.mxu0 0
      %1062 = vmatpush1.bf16.msra.mxu0 0
      %1063 = vmatprep.subr.bf16.mxu0 0
      %1064 = vmatpush1.bf16.msra.mxu0 0
      %1065 = vmatprep.subr.bf16.mxu0 0
      %1066 = vmatpush1.bf16.msra.mxu0 0
      %1067 = vmatprep.subr.bf16.mxu0 0
      %1068 = vmatpush1.bf16.msra.mxu0 0
      %1069 = vmatprep.subr.bf16.mxu0 0
      %1070 = vmatpush1.bf16.msra.mxu0 0
      %1071 = vmatprep.subr.bf16.mxu0 0
      %1072 = vmatpush1.bf16.msra.mxu0 0
      %1073 = vmatprep.subr.bf16.mxu0 0
      %1074 = vmatpush1.bf16.msra.mxu0 0
      %1075 = vmatprep.subr.bf16.mxu0 0
      %1076 = vmatpush1.bf16.msra.mxu0 0
      %1077 = vmatprep.subr.bf16.mxu0 0
      %1078 = vmatpush1.bf16.msra.mxu0 0
      %1079 = vmatprep.subr.bf16.mxu0 0
      %1080 = vmatpush1.bf16.msra.mxu0 0
      %1081 = vmatprep.mubr.bf16.mxu0 0
      %1082 = vmatmul.mubr.bf16.gmra.mrb[0].mxu0 %v999
      %v1083 = vpop.f32.mrb[0].mxu0
      %v1084 = vadd.f32 0.0, %v1083
      %v1085 = vpop.f32.mrb[0].mxu0
      %v1086 = vpop.f32.mrb[0].mxu0
      %v1087 = vadd.f32 0.0, %v1086
      %v1088 = vpop.f32.mrb[0].mxu0
      %1089 = vmatprep.mubr.bf16.mxu0 0
      %1090 = vmatmul.mubr.bf16.gmra.mrb[0].mxu0 %v1002
      %v1091 = vpop.f32.mrb[0].mxu0
      %v1092 = vadd.f32 0.0, %v1091
      %v1093 = vpop.f32.mrb[0].mxu0
      %v1094 = vpop.f32.mrb[0].mxu0
      %v1095 = vadd.f32 0.0, %v1094
      %v1096 = vpop.f32.mrb[0].mxu0
      %1097 = vmatprep.mubr.bf16.mxu0 0
      %1098 = vmatmul.mubr.bf16.gmra.mrb[0].mxu0 %v1005
      %v1099 = vpop.f32.mrb[0].mxu0
      %v1100 = vadd.f32 0.0, %v1099
      %v1101 = vpop.f32.mrb[0].mxu0
      %v1102 = vpop.f32.mrb[0].mxu0
      %v1103 = vadd.f32 0.0, %v1102
      %v1104 = vpop.f32.mrb[0].mxu0
      %1105 = vmatprep.mubr.bf16.mxu0 0
      %1106 = vmatmul.mubr.bf16.gmra.mrb[0].mxu0 %v1008
      %v1107 = vpop.f32.mrb[0].mxu0
      %v1108 = vadd.f32 0.0, %v1107
      %v1109 = vpop.f32.mrb[0].mxu0
      %v1110 = vpop.f32.mrb[0].mxu0
      %v1111 = vadd.f32 0.0, %v1110
      %v1112 = vpop.f32.mrb[0].mxu0
      %1113 = vmatprep.mubr.bf16.mxu0 0
      %1114 = vmatmul.mubr.bf16.gmra.mrb[0].mxu0 %v1011
      %v1115 = vpop.f32.mrb[0].mxu0
      %v1116 = vadd.f32 0.0, %v1115
      %v1117 = vpop.f32.mrb[0].mxu0
      %v1118 = vpop.f32.mrb[0].mxu0
      %v1119 = vadd.f32 0.0, %v1118
      %v1120 = vpop.f32.mrb[0].mxu0
      %1121 = vmatprep.mubr.bf16.mxu0 0
      %1122 = vmatmul.mubr.bf16.gmra.mrb[0].mxu0 %v1014
      %v1123 = vpop.f32.mrb[0].mxu0
      %v1124 = vadd.f32 0.0, %v1123
      %v1125 = vpop.f32.mrb[0].mxu0
      %v1126 = vpop.f32.mrb[0].mxu0
      %v1127 = vadd.f32 0.0, %v1126
      %v1128 = vpop.f32.mrb[0].mxu0
      %1129 = vmatprep.mubr.bf16.mxu0 0
      %1130 = vmatmul.mubr.bf16.gmra.mrb[0].mxu0 %v1017
      %v1131 = vpop.f32.mrb[0].mxu0
      %v1132 = vadd.f32 0.0, %v1131
      %v1133 = vpop.f32.mrb[0].mxu0
      %v1134 = vpop.f32.mrb[0].mxu0
      %v1135 = vadd.f32 0.0, %v1134
      %v1136 = vpop.f32.mrb[0].mxu0
      %1137 = vmatprep.mubr.bf16.mxu0 0
      %1138 = vmatmul.mubr.bf16.gmra.mrb[0].mxu0 %v1020
      %v1139 = vpop.f32.mrb[0].mxu0
      %v1140 = vadd.f32 0.0, %v1139
      %v1141 = vpop.f32.mrb[0].mxu0
      %v1142 = vpop.f32.mrb[0].mxu0
      %v1143 = vadd.f32 0.0, %v1142
      %v1144 = vpop.f32.mrb[0].mxu0
      %1145 = vmatprep.mubr.bf16.mxu0 0
      %1146 = vmatmul.mubr.bf16.gmra.mrb[0].mxu0 %v1023
      %v1147 = vpop.f32.mrb[0].mxu0
      %v1148 = vadd.f32 0.0, %v1147
      %v1149 = vpop.f32.mrb[0].mxu0
      %v1150 = vpop.f32.mrb[0].mxu0
      %v1151 = vadd.f32 0.0, %v1150
      %v1152 = vpop.f32.mrb[0].mxu0
      %1153 = vmatprep.mubr.bf16.mxu0 0
      %1154 = vmatmul.mubr.bf16.gmra.mrb[0].mxu0 %v1026
      %v1155 = vpop.f32.mrb[0].mxu0
      %v1156 = vadd.f32 0.0, %v1155
      %v1157 = vpop.f32.mrb[0].mxu0
      %v1158 = vpop.f32.mrb[0].mxu0
      %v1159 = vadd.f32 0.0, %v1158
      %v1160 = vpop.f32.mrb[0].mxu0
      %1161 = vmatprep.mubr.bf16.mxu0 0
      %1162 = vmatmul.mubr.bf16.gmra.mrb[0].mxu0 %v1029
      %v1163 = vpop.f32.mrb[0].mxu0
      %v1164 = vadd.f32 0.0, %v1163
      %v1165 = vpop.f32.mrb[0].mxu0
      %v1166 = vpop.f32.mrb[0].mxu0
      %v1167 = vadd.f32 0.0, %v1166
      %v1168 = vpop.f32.mrb[0].mxu0
      %1169 = vmatprep.mubr.bf16.mxu0 0
      %1170 = vmatmul.mubr.bf16.gmra.mrb[0].mxu0 %v1032
      %v1171 = vpop.f32.mrb[0].mxu0
      %v1172 = vadd.f32 0.0, %v1171
      %v1173 = vpop.f32.mrb[0].mxu0
      %v1174 = vpop.f32.mrb[0].mxu0
      %v1175 = vadd.f32 0.0, %v1174
      %v1176 = vpop.f32.mrb[0].mxu0
      %1177 = vmatprep.mubr.bf16.mxu0 0
      %1178 = vmatmul.mubr.bf16.gmra.mrb[0].mxu0 %v1035
      %v1179 = vpop.f32.mrb[0].mxu0
      %v1180 = vadd.f32 0.0, %v1179
      %v1181 = vpop.f32.mrb[0].mxu0
      %v1182 = vpop.f32.mrb[0].mxu0
      %v1183 = vadd.f32 0.0, %v1182
      %v1184 = vpop.f32.mrb[0].mxu0
      %1185 = vmatprep.mubr.bf16.mxu0 0
      %1186 = vmatmul.mubr.bf16.gmra.mrb[0].mxu0 %v1038
      %v1187 = vpop.f32.mrb[0].mxu0
      %v1188 = vadd.f32 0.0, %v1187
      %v1189 = vpop.f32.mrb[0].mxu0
      %v1190 = vpop.f32.mrb[0].mxu0
      %v1191 = vadd.f32 0.0, %v1190
      %v1192 = vpop.f32.mrb[0].mxu0
      %1193 = vmatprep.mubr.bf16.mxu0 0
      %1194 = vmatmul.mubr.bf16.gmra.mrb[0].mxu0 %v1041
      %v1195 = vpop.f32.mrb[0].mxu0
      %v1196 = vadd.f32 0.0, %v1195
      %v1197 = vpop.f32.mrb[0].mxu0
      %v1198 = vpop.f32.mrb[0].mxu0
      %v1199 = vadd.f32 0.0, %v1198
      %v1200 = vpop.f32.mrb[0].mxu0
      %1201 = vmatprep.mubr.bf16.mxu0 0
      %1202 = vmatmul.mubr.bf16.gmra.mrb[0].mxu0 %v1044
      %v1203 = vpop.f32.mrb[0].mxu0
      %v1204 = vadd.f32 0.0, %v1203
      %v1205 = vpop.f32.mrb[0].mxu0
      %v1206 = vpop.f32.mrb[0].mxu0
      %v1207 = vadd.f32 0.0, %v1206
      %v1208 = vpop.f32.mrb[0].mxu0
      %1209 = vdwg.mxu0
      %v1210 = vadd.f32 %v738, %v1084
      %v1211 = vadd.f32 %v741, %v1087
      %v1212 = vadd.f32 %v746, %v1092
      %v1213 = vadd.f32 %v749, %v1095
      %v1214 = vadd.f32 %v754, %v1100
      %v1215 = vadd.f32 %v757, %v1103
      %v1216 = vadd.f32 %v762, %v1108
      %v1217 = vadd.f32 %v765, %v1111
      %v1218 = vadd.f32 %v770, %v1116
      %v1219 = vadd.f32 %v773, %v1119
      %v1220 = vadd.f32 %v778, %v1124
      %v1221 = vadd.f32 %v781, %v1127
      %v1222 = vadd.f32 %v786, %v1132
      %v1223 = vadd.f32 %v789, %v1135
      %v1224 = vadd.f32 %v794, %v1140
      %v1225 = vadd.f32 %v797, %v1143
      %v1226 = vadd.f32 %v802, %v1148
      %v1227 = vadd.f32 %v805, %v1151
      %v1228 = vadd.f32 %v810, %v1156
      %v1229 = vadd.f32 %v813, %v1159
      %v1230 = vadd.f32 %v818, %v1164
      %v1231 = vadd.f32 %v821, %v1167
      %v1232 = vadd.f32 %v826, %v1172
      %v1233 = vadd.f32 %v829, %v1175
      %v1234 = vadd.f32 %v834, %v1180
      %v1235 = vadd.f32 %v837, %v1183
      %v1236 = vadd.f32 %v842, %v1188
      %v1237 = vadd.f32 %v845, %v1191
      %v1238 = vadd.f32 %v850, %v1196
      %v1239 = vadd.f32 %v853, %v1199
      %v1240 = vadd.f32 %v858, %v1204
      %v1241 = vadd.f32 %v861, %v1207
      %s1242 = scalar_lea.vmem %s165, 24
      %v1243 = vld [vmem:[%s1242] sm:$0xf]
      %v1244 = vld [vmem:[%s1242 + $0x4] sm:$0xf]
      %v1245 = vld [vmem:[%s1242 + $0x8] sm:$0xf]
      %v1246 = vld [vmem:[%s1242 + $0xc] sm:$0xf]
      %v1247 = vld [vmem:[%s1242 + $0x10] sm:$0xf]
      %v1248 = vld [vmem:[%s1242 + $0x14] sm:$0xf]
      %v1249 = vld [vmem:[%s1242 + $0x18] sm:$0xf]
      %v1250 = vld [vmem:[%s1242 + $0x1c] sm:$0xf]
      %v1251 = vld [vmem:[%s1242 + $0x20] sm:$0xf]
      %v1252 = vld [vmem:[%s1242 + $0x24] sm:$0xf]
      %v1253 = vld [vmem:[%s1242 + $0x28] sm:$0xf]
      %v1254 = vld [vmem:[%s1242 + $0x2c] sm:$0xf]
      %v1255 = vld [vmem:[%s1242 + $0x30] sm:$0xf]
      %v1256 = vld [vmem:[%s1242 + $0x34] sm:$0xf]
      %v1257 = vld [vmem:[%s1242 + $0x38] sm:$0xf]
      %v1258 = vld [vmem:[%s1242 + $0x3c] sm:$0xf]
      %v1259 = vld [vmem:[%s1242 + $0x40] sm:$0xf]
      %v1260 = vld [vmem:[%s1242 + $0x44] sm:$0xf]
      %v1261 = vld [vmem:[%s1242 + $0x48] sm:$0xf]
      %v1262 = vld [vmem:[%s1242 + $0x4c] sm:$0xf]
      %v1263 = vld [vmem:[%s1242 + $0x50] sm:$0xf]
      %v1264 = vld [vmem:[%s1242 + $0x54] sm:$0xf]
      %v1265 = vld [vmem:[%s1242 + $0x58] sm:$0xf]
      %v1266 = vld [vmem:[%s1242 + $0x5c] sm:$0xf]
      %v1267 = vld [vmem:[%s1242 + $0x60] sm:$0xf]
      %v1268 = vld [vmem:[%s1242 + $0x64] sm:$0xf]
      %v1269 = vld [vmem:[%s1242 + $0x68] sm:$0xf]
      %v1270 = vld [vmem:[%s1242 + $0x6c] sm:$0xf]
      %v1271 = vld [vmem:[%s1242 + $0x70] sm:$0xf]
      %v1272 = vld [vmem:[%s1242 + $0x74] sm:$0xf]
      %v1273 = vld [vmem:[%s1242 + $0x78] sm:$0xf]
      %v1274 = vld [vmem:[%s1242 + $0x7c] sm:$0xf]
      %s1275 = scalar_lea.vmem %s1, 60
      %v1276 = vld [vmem:[%s1275] sm:$0xf]
      %v1277 = vld [vmem:[%s1275 + $0x4] sm:$0xf]
      %v1278 = vld [vmem:[%s1275 + $0x8] sm:$0xf]
      %v1279 = vld [vmem:[%s1275 + $0xc] sm:$0xf]
      %v1280 = vld [vmem:[%s1275 + $0x10] sm:$0xf]
      %v1313 = vunpack.c.l.b16 %v1243
      %v1314 = vunpack.c.l.b16 %v1244
      %v1315 = vunpack.c.l.b16 %v1245
      %v1316 = vunpack.c.l.b16 %v1246
      %v1317 = vunpack.c.l.b16 %v1247
      %v1318 = vunpack.c.l.b16 %v1248
      %v1319 = vunpack.c.l.b16 %v1249
      %v1320 = vunpack.c.l.b16 %v1250
      %v1321 = vunpack.c.l.b16 %v1251
      %v1322 = vunpack.c.l.b16 %v1252
      %v1323 = vunpack.c.l.b16 %v1253
      %v1324 = vunpack.c.l.b16 %v1254
      %v1325 = vunpack.c.l.b16 %v1255
      %v1326 = vunpack.c.l.b16 %v1256
      %v1327 = vunpack.c.l.b16 %v1257
      %v1328 = vunpack.c.l.b16 %v1258
      %v1329 = vunpack.c.l.b16 %v1259
      %v1330 = vunpack.c.l.b16 %v1260
      %v1331 = vunpack.c.l.b16 %v1261
      %v1332 = vunpack.c.l.b16 %v1262
      %v1333 = vunpack.c.l.b16 %v1263
      %v1334 = vunpack.c.l.b16 %v1264
      %v1335 = vunpack.c.l.b16 %v1265
      %v1336 = vunpack.c.l.b16 %v1266
      %v1337 = vunpack.c.l.b16 %v1267
      %v1338 = vunpack.c.l.b16 %v1268
      %v1339 = vunpack.c.l.b16 %v1269
      %v1340 = vunpack.c.l.b16 %v1270
      %v1341 = vunpack.c.l.b16 %v1271
      %v1342 = vunpack.c.l.b16 %v1272
      %v1343 = vunpack.c.l.b16 %v1273
      %v1344 = vunpack.c.l.b16 %v1274
      %v1345 = vpack.c.b16 %v1314, %v1313
      %v1346 = vpack.c.b16 %v1316, %v1315
      %v1347 = vpack.c.b16 %v1318, %v1317
      %v1348 = vpack.c.b16 %v1320, %v1319
      %v1349 = vpack.c.b16 %v1322, %v1321
      %v1350 = vpack.c.b16 %v1324, %v1323
      %v1351 = vpack.c.b16 %v1326, %v1325
      %v1352 = vpack.c.b16 %v1328, %v1327
      %v1353 = vpack.c.b16 %v1330, %v1329
      %v1354 = vpack.c.b16 %v1332, %v1331
      %v1355 = vpack.c.b16 %v1334, %v1333
      %v1356 = vpack.c.b16 %v1336, %v1335
      %v1357 = vpack.c.b16 %v1338, %v1337
      %v1358 = vpack.c.b16 %v1340, %v1339
      %v1359 = vpack.c.b16 %v1342, %v1341
      %v1360 = vpack.c.b16 %v1344, %v1343
      %v1366 = vunpack.c.l.b16 %v1276
      %v1367 = vunpack.c.l.b16 %v1277
      %v1368 = vunpack.c.l.b16 %v1278
      %v1369 = vunpack.c.l.b16 %v1279
      %v1370 = vunpack.c.l.b16 %v1280
      %v1371 = vpack.c.b16 %v1367, %v1366
      %v1372 = vpack.c.b16 %v1369, %v1368
      %v1373 = vpack.c.b16 %v1370, %v1370
      %v1377 = vsel %vm343, %v1345, 0
      %v1380 = vsel %vm343, %v1346, 0
      %v1383 = vsel %vm343, %v1347, 0
      %v1386 = vsel %vm343, %v1348, 0
      %v1389 = vsel %vm343, %v1349, 0
      %v1392 = vsel %vm343, %v1350, 0
      %v1395 = vsel %vm343, %v1351, 0
      %v1398 = vsel %vm343, %v1352, 0
      %v1401 = vsel %vm343, %v1353, 0
      %v1404 = vsel %vm343, %v1354, 0
      %v1407 = vsel %vm343, %v1355, 0
      %v1410 = vsel %vm343, %v1356, 0
      %v1413 = vsel %vm343, %v1357, 0
      %v1416 = vsel %vm343, %v1358, 0
      %v1419 = vsel %vm343, %v1359, 0
      %v1422 = vsel %vm343, %v1360, 0
      %v1425 = vsel %vm392, %v1373, 0
      %1427 = vmatprep.subr.bf16.mxu0 0
      %1428 = vmatpush1.bf16.msra.mxu0 %v1371
      %1429 = vmatprep.subr.bf16.mxu0 0
      %1430 = vmatpush1.bf16.msra.mxu0 %v1372
      %1431 = vmatprep.subr.bf16.mxu0 0
      %1432 = vmatpush1.bf16.msra.mxu0 %v1425
      %1433 = vmatprep.subr.bf16.mxu0 0
      %1434 = vmatpush1.bf16.msra.mxu0 0
      %1435 = vmatprep.subr.bf16.mxu0 0
      %1436 = vmatpush1.bf16.msra.mxu0 0
      %1437 = vmatprep.subr.bf16.mxu0 0
      %1438 = vmatpush1.bf16.msra.mxu0 0
      %1439 = vmatprep.subr.bf16.mxu0 0
      %1440 = vmatpush1.bf16.msra.mxu0 0
      %1441 = vmatprep.subr.bf16.mxu0 0
      %1442 = vmatpush1.bf16.msra.mxu0 0
      %1443 = vmatprep.subr.bf16.mxu0 0
      %1444 = vmatpush1.bf16.msra.mxu0 0
      %1445 = vmatprep.subr.bf16.mxu0 0
      %1446 = vmatpush1.bf16.msra.mxu0 0
      %1447 = vmatprep.subr.bf16.mxu0 0
      %1448 = vmatpush1.bf16.msra.mxu0 0
      %1449 = vmatprep.subr.bf16.mxu0 0
      %1450 = vmatpush1.bf16.msra.mxu0 0
      %1451 = vmatprep.subr.bf16.mxu0 0
      %1452 = vmatpush1.bf16.msra.mxu0 0
      %1453 = vmatprep.subr.bf16.mxu0 0
      %1454 = vmatpush1.bf16.msra.mxu0 0
      %1455 = vmatprep.subr.bf16.mxu0 0
      %1456 = vmatpush1.bf16.msra.mxu0 0
      %1457 = vmatprep.subr.bf16.mxu0 0
      %1458 = vmatpush1.bf16.msra.mxu0 0
      %1459 = vmatprep.mubr.bf16.mxu0 0
      %1460 = vmatmul.mubr.bf16.gmra.mrb[0].mxu0 %v1377
      %v1461 = vpop.f32.mrb[0].mxu0
      %v1462 = vadd.f32 0.0, %v1461
      %v1463 = vpop.f32.mrb[0].mxu0
      %v1464 = vpop.f32.mrb[0].mxu0
      %v1465 = vadd.f32 0.0, %v1464
      %v1466 = vpop.f32.mrb[0].mxu0
      %1467 = vmatprep.mubr.bf16.mxu0 0
      %1468 = vmatmul.mubr.bf16.gmra.mrb[0].mxu0 %v1380
      %v1469 = vpop.f32.mrb[0].mxu0
      %v1470 = vadd.f32 0.0, %v1469
      %v1471 = vpop.f32.mrb[0].mxu0
      %v1472 = vpop.f32.mrb[0].mxu0
      %v1473 = vadd.f32 0.0, %v1472
      %v1474 = vpop.f32.mrb[0].mxu0
      %1475 = vmatprep.mubr.bf16.mxu0 0
      %1476 = vmatmul.mubr.bf16.gmra.mrb[0].mxu0 %v1383
      %v1477 = vpop.f32.mrb[0].mxu0
      %v1478 = vadd.f32 0.0, %v1477
      %v1479 = vpop.f32.mrb[0].mxu0
      %v1480 = vpop.f32.mrb[0].mxu0
      %v1481 = vadd.f32 0.0, %v1480
      %v1482 = vpop.f32.mrb[0].mxu0
      %1483 = vmatprep.mubr.bf16.mxu0 0
      %1484 = vmatmul.mubr.bf16.gmra.mrb[0].mxu0 %v1386
      %v1485 = vpop.f32.mrb[0].mxu0
      %v1486 = vadd.f32 0.0, %v1485
      %v1487 = vpop.f32.mrb[0].mxu0
      %v1488 = vpop.f32.mrb[0].mxu0
      %v1489 = vadd.f32 0.0, %v1488
      %v1490 = vpop.f32.mrb[0].mxu0
      %1491 = vmatprep.mubr.bf16.mxu0 0
      %1492 = vmatmul.mubr.bf16.gmra.mrb[0].mxu0 %v1389
      %v1493 = vpop.f32.mrb[0].mxu0
      %v1494 = vadd.f32 0.0, %v1493
      %v1495 = vpop.f32.mrb[0].mxu0
      %v1496 = vpop.f32.mrb[0].mxu0
      %v1497 = vadd.f32 0.0, %v1496
      %v1498 = vpop.f32.mrb[0].mxu0
      %1499 = vmatprep.mubr.bf16.mxu0 0
      %1500 = vmatmul.mubr.bf16.gmra.mrb[0].mxu0 %v1392
      %v1501 = vpop.f32.mrb[0].mxu0
      %v1502 = vadd.f32 0.0, %v1501
      %v1503 = vpop.f32.mrb[0].mxu0
      %v1504 = vpop.f32.mrb[0].mxu0
      %v1505 = vadd.f32 0.0, %v1504
      %v1506 = vpop.f32.mrb[0].mxu0
      %1507 = vmatprep.mubr.bf16.mxu0 0
      %1508 = vmatmul.mubr.bf16.gmra.mrb[0].mxu0 %v1395
      %v1509 = vpop.f32.mrb[0].mxu0
      %v1510 = vadd.f32 0.0, %v1509
      %v1511 = vpop.f32.mrb[0].mxu0
      %v1512 = vpop.f32.mrb[0].mxu0
      %v1513 = vadd.f32 0.0, %v1512
      %v1514 = vpop.f32.mrb[0].mxu0
      %1515 = vmatprep.mubr.bf16.mxu0 0
      %1516 = vmatmul.mubr.bf16.gmra.mrb[0].mxu0 %v1398
      %v1517 = vpop.f32.mrb[0].mxu0
      %v1518 = vadd.f32 0.0, %v1517
      %v1519 = vpop.f32.mrb[0].mxu0
      %v1520 = vpop.f32.mrb[0].mxu0
      %v1521 = vadd.f32 0.0, %v1520
      %v1522 = vpop.f32.mrb[0].mxu0
      %1523 = vmatprep.mubr.bf16.mxu0 0
      %1524 = vmatmul.mubr.bf16.gmra.mrb[0].mxu0 %v1401
      %v1525 = vpop.f32.mrb[0].mxu0
      %v1526 = vadd.f32 0.0, %v1525
      %v1527 = vpop.f32.mrb[0].mxu0
      %v1528 = vpop.f32.mrb[0].mxu0
      %v1529 = vadd.f32 0.0, %v1528
      %v1530 = vpop.f32.mrb[0].mxu0
      %1531 = vmatprep.mubr.bf16.mxu0 0
      %1532 = vmatmul.mubr.bf16.gmra.mrb[0].mxu0 %v1404
      %v1533 = vpop.f32.mrb[0].mxu0
      %v1534 = vadd.f32 0.0, %v1533
      %v1535 = vpop.f32.mrb[0].mxu0
      %v1536 = vpop.f32.mrb[0].mxu0
      %v1537 = vadd.f32 0.0, %v1536
      %v1538 = vpop.f32.mrb[0].mxu0
      %1539 = vmatprep.mubr.bf16.mxu0 0
      %1540 = vmatmul.mubr.bf16.gmra.mrb[0].mxu0 %v1407
      %v1541 = vpop.f32.mrb[0].mxu0
      %v1542 = vadd.f32 0.0, %v1541
      %v1543 = vpop.f32.mrb[0].mxu0
      %v1544 = vpop.f32.mrb[0].mxu0
      %v1545 = vadd.f32 0.0, %v1544
      %v1546 = vpop.f32.mrb[0].mxu0
      %1547 = vmatprep.mubr.bf16.mxu0 0
      %1548 = vmatmul.mubr.bf16.gmra.mrb[0].mxu0 %v1410
      %v1549 = vpop.f32.mrb[0].mxu0
      %v1550 = vadd.f32 0.0, %v1549
      %v1551 = vpop.f32.mrb[0].mxu0
      %v1552 = vpop.f32.mrb[0].mxu0
      %v1553 = vadd.f32 0.0, %v1552
      %v1554 = vpop.f32.mrb[0].mxu0
      %1555 = vmatprep.mubr.bf16.mxu0 0
      %1556 = vmatmul.mubr.bf16.gmra.mrb[0].mxu0 %v1413
      %v1557 = vpop.f32.mrb[0].mxu0
      %v1558 = vadd.f32 0.0, %v1557
      %v1559 = vpop.f32.mrb[0].mxu0
      %v1560 = vpop.f32.mrb[0].mxu0
      %v1561 = vadd.f32 0.0, %v1560
      %v1562 = vpop.f32.mrb[0].mxu0
      %1563 = vmatprep.mubr.bf16.mxu0 0
      %1564 = vmatmul.mubr.bf16.gmra.mrb[0].mxu0 %v1416
      %v1565 = vpop.f32.mrb[0].mxu0
      %v1566 = vadd.f32 0.0, %v1565
      %v1567 = vpop.f32.mrb[0].mxu0
      %v1568 = vpop.f32.mrb[0].mxu0
      %v1569 = vadd.f32 0.0, %v1568
      %v1570 = vpop.f32.mrb[0].mxu0
      %1571 = vmatprep.mubr.bf16.mxu0 0
      %1572 = vmatmul.mubr.bf16.gmra.mrb[0].mxu0 %v1419
      %v1573 = vpop.f32.mrb[0].mxu0
      %v1574 = vadd.f32 0.0, %v1573
      %v1575 = vpop.f32.mrb[0].mxu0
      %v1576 = vpop.f32.mrb[0].mxu0
      %v1577 = vadd.f32 0.0, %v1576
      %v1578 = vpop.f32.mrb[0].mxu0
      %1579 = vmatprep.mubr.bf16.mxu0 0
      %1580 = vmatmul.mubr.bf16.gmra.mrb[0].mxu0 %v1422
      %v1581 = vpop.f32.mrb[0].mxu0
      %v1582 = vadd.f32 0.0, %v1581
      %v1583 = vpop.f32.mrb[0].mxu0
      %v1584 = vpop.f32.mrb[0].mxu0
      %v1585 = vadd.f32 0.0, %v1584
      %v1586 = vpop.f32.mrb[0].mxu0
      %1587 = vdwg.mxu0
      %v1588 = vadd.f32 %v1210, %v1462
      %v1589 = vadd.f32 %v1211, %v1465
      %v1590 = vadd.f32 %v1212, %v1470
      %v1591 = vadd.f32 %v1213, %v1473
      %v1592 = vadd.f32 %v1214, %v1478
      %v1593 = vadd.f32 %v1215, %v1481
      %v1594 = vadd.f32 %v1216, %v1486
      %v1595 = vadd.f32 %v1217, %v1489
      %v1596 = vadd.f32 %v1218, %v1494
      %v1597 = vadd.f32 %v1219, %v1497
      %v1598 = vadd.f32 %v1220, %v1502
      %v1599 = vadd.f32 %v1221, %v1505
      %v1600 = vadd.f32 %v1222, %v1510
      %v1601 = vadd.f32 %v1223, %v1513
      %v1602 = vadd.f32 %v1224, %v1518
      %v1603 = vadd.f32 %v1225, %v1521
      %v1604 = vadd.f32 %v1226, %v1526
      %v1605 = vadd.f32 %v1227, %v1529
      %v1606 = vadd.f32 %v1228, %v1534
      %v1607 = vadd.f32 %v1229, %v1537
      %v1608 = vadd.f32 %v1230, %v1542
      %v1609 = vadd.f32 %v1231, %v1545
      %v1610 = vadd.f32 %v1232, %v1550
      %v1611 = vadd.f32 %v1233, %v1553
      %v1612 = vadd.f32 %v1234, %v1558
      %v1613 = vadd.f32 %v1235, %v1561
      %v1614 = vadd.f32 %v1236, %v1566
      %v1615 = vadd.f32 %v1237, %v1569
      %v1616 = vadd.f32 %v1238, %v1574
      %v1617 = vadd.f32 %v1239, %v1577
      %v1618 = vadd.f32 %v1240, %v1582
      %v1619 = vadd.f32 %v1241, %v1585
      %s1620 = scalar_lea.vmem %s165, 32
      %v1621 = vld [vmem:[%s1620] sm:$0xf]
      %v1622 = vld [vmem:[%s1620 + $0x4] sm:$0xf]
      %v1623 = vld [vmem:[%s1620 + $0x8] sm:$0xf]
      %v1624 = vld [vmem:[%s1620 + $0xc] sm:$0xf]
      %v1625 = vld [vmem:[%s1620 + $0x10] sm:$0xf]
      %v1626 = vld [vmem:[%s1620 + $0x14] sm:$0xf]
      %v1627 = vld [vmem:[%s1620 + $0x18] sm:$0xf]
      %v1628 = vld [vmem:[%s1620 + $0x1c] sm:$0xf]
      %v1629 = vld [vmem:[%s1620 + $0x20] sm:$0xf]
      %v1630 = vld [vmem:[%s1620 + $0x24] sm:$0xf]
      %v1631 = vld [vmem:[%s1620 + $0x28] sm:$0xf]
      %v1632 = vld [vmem:[%s1620 + $0x2c] sm:$0xf]
      %v1633 = vld [vmem:[%s1620 + $0x30] sm:$0xf]
      %v1634 = vld [vmem:[%s1620 + $0x34] sm:$0xf]
      %v1635 = vld [vmem:[%s1620 + $0x38] sm:$0xf]
      %v1636 = vld [vmem:[%s1620 + $0x3c] sm:$0xf]
      %v1637 = vld [vmem:[%s1620 + $0x40] sm:$0xf]
      %v1638 = vld [vmem:[%s1620 + $0x44] sm:$0xf]
      %v1639 = vld [vmem:[%s1620 + $0x48] sm:$0xf]
      %v1640 = vld [vmem:[%s1620 + $0x4c] sm:$0xf]
      %v1641 = vld [vmem:[%s1620 + $0x50] sm:$0xf]
      %v1642 = vld [vmem:[%s1620 + $0x54] sm:$0xf]
      %v1643 = vld [vmem:[%s1620 + $0x58] sm:$0xf]
      %v1644 = vld [vmem:[%s1620 + $0x5c] sm:$0xf]
      %v1645 = vld [vmem:[%s1620 + $0x60] sm:$0xf]
      %v1646 = vld [vmem:[%s1620 + $0x64] sm:$0xf]
      %v1647 = vld [vmem:[%s1620 + $0x68] sm:$0xf]
      %v1648 = vld [vmem:[%s1620 + $0x6c] sm:$0xf]
      %v1649 = vld [vmem:[%s1620 + $0x70] sm:$0xf]
      %v1650 = vld [vmem:[%s1620 + $0x74] sm:$0xf]
      %v1651 = vld [vmem:[%s1620 + $0x78] sm:$0xf]
      %v1652 = vld [vmem:[%s1620 + $0x7c] sm:$0xf]
      %s1653 = scalar_lea.vmem %s1, 80
      %v1654 = vld [vmem:[%s1653] sm:$0xf]
      %v1655 = vld [vmem:[%s1653 + $0x4] sm:$0xf]
      %v1656 = vld [vmem:[%s1653 + $0x8] sm:$0xf]
      %v1657 = vld [vmem:[%s1653 + $0xc] sm:$0xf]
      %v1658 = vld [vmem:[%s1653 + $0x10] sm:$0xf]
      %v1691 = vunpack.c.l.b16 %v1621
      %v1692 = vunpack.c.l.b16 %v1622
      %v1693 = vunpack.c.l.b16 %v1623
      %v1694 = vunpack.c.l.b16 %v1624
      %v1695 = vunpack.c.l.b16 %v1625
      %v1696 = vunpack.c.l.b16 %v1626
      %v1697 = vunpack.c.l.b16 %v1627
      %v1698 = vunpack.c.l.b16 %v1628
      %v1699 = vunpack.c.l.b16 %v1629
      %v1700 = vunpack.c.l.b16 %v1630
      %v1701 = vunpack.c.l.b16 %v1631
      %v1702 = vunpack.c.l.b16 %v1632
      %v1703 = vunpack.c.l.b16 %v1633
      %v1704 = vunpack.c.l.b16 %v1634
      %v1705 = vunpack.c.l.b16 %v1635
      %v1706 = vunpack.c.l.b16 %v1636
      %v1707 = vunpack.c.l.b16 %v1637
      %v1708 = vunpack.c.l.b16 %v1638
      %v1709 = vunpack.c.l.b16 %v1639
      %v1710 = vunpack.c.l.b16 %v1640
      %v1711 = vunpack.c.l.b16 %v1641
      %v1712 = vunpack.c.l.b16 %v1642
      %v1713 = vunpack.c.l.b16 %v1643
      %v1714 = vunpack.c.l.b16 %v1644
      %v1715 = vunpack.c.l.b16 %v1645
      %v1716 = vunpack.c.l.b16 %v1646
      %v1717 = vunpack.c.l.b16 %v1647
      %v1718 = vunpack.c.l.b16 %v1648
      %v1719 = vunpack.c.l.b16 %v1649
      %v1720 = vunpack.c.l.b16 %v1650
      %v1721 = vunpack.c.l.b16 %v1651
      %v1722 = vunpack.c.l.b16 %v1652
      %v1723 = vpack.c.b16 %v1692, %v1691
      %v1724 = vpack.c.b16 %v1694, %v1693
      %v1725 = vpack.c.b16 %v1696, %v1695
      %v1726 = vpack.c.b16 %v1698, %v1697
      %v1727 = vpack.c.b16 %v1700, %v1699
      %v1728 = vpack.c.b16 %v1702, %v1701
      %v1729 = vpack.c.b16 %v1704, %v1703
      %v1730 = vpack.c.b16 %v1706, %v1705
      %v1731 = vpack.c.b16 %v1708, %v1707
      %v1732 = vpack.c.b16 %v1710, %v1709
      %v1733 = vpack.c.b16 %v1712, %v1711
      %v1734 = vpack.c.b16 %v1714, %v1713
      %v1735 = vpack.c.b16 %v1716, %v1715
      %v1736 = vpack.c.b16 %v1718, %v1717
      %v1737 = vpack.c.b16 %v1720, %v1719
      %v1738 = vpack.c.b16 %v1722, %v1721
      %v1744 = vunpack.c.l.b16 %v1654
      %v1745 = vunpack.c.l.b16 %v1655
      %v1746 = vunpack.c.l.b16 %v1656
      %v1747 = vunpack.c.l.b16 %v1657
      %v1748 = vunpack.c.l.b16 %v1658
      %v1749 = vpack.c.b16 %v1745, %v1744
      %v1750 = vpack.c.b16 %v1747, %v1746
      %v1751 = vpack.c.b16 %v1748, %v1748
      %v1755 = vsel %vm343, %v1723, 0
      %v1758 = vsel %vm343, %v1724, 0
      %v1761 = vsel %vm343, %v1725, 0
      %v1764 = vsel %vm343, %v1726, 0
      %v1767 = vsel %vm343, %v1727, 0
      %v1770 = vsel %vm343, %v1728, 0
      %v1773 = vsel %vm343, %v1729, 0
      %v1776 = vsel %vm343, %v1730, 0
      %v1779 = vsel %vm343, %v1731, 0
      %v1782 = vsel %vm343, %v1732, 0
      %v1785 = vsel %vm343, %v1733, 0
      %v1788 = vsel %vm343, %v1734, 0
      %v1791 = vsel %vm343, %v1735, 0
      %v1794 = vsel %vm343, %v1736, 0
      %v1797 = vsel %vm343, %v1737, 0
      %v1800 = vsel %vm343, %v1738, 0
      %v1803 = vsel %vm392, %v1751, 0
      %1805 = vmatprep.subr.bf16.mxu0 0
      %1806 = vmatpush1.bf16.msra.mxu0 %v1749
      %1807 = vmatprep.subr.bf16.mxu0 0
      %1808 = vmatpush1.bf16.msra.mxu0 %v1750
      %1809 = vmatprep.subr.bf16.mxu0 0
      %1810 = vmatpush1.bf16.msra.mxu0 %v1803
      %1811 = vmatprep.subr.bf16.mxu0 0
      %1812 = vmatpush1.bf16.msra.mxu0 0
      %1813 = vmatprep.subr.bf16.mxu0 0
      %1814 = vmatpush1.bf16.msra.mxu0 0
      %1815 = vmatprep.subr.bf16.mxu0 0
      %1816 = vmatpush1.bf16.msra.mxu0 0
      %1817 = vmatprep.subr.bf16.mxu0 0
      %1818 = vmatpush1.bf16.msra.mxu0 0
      %1819 = vmatprep.subr.bf16.mxu0 0
      %1820 = vmatpush1.bf16.msra.mxu0 0
      %1821 = vmatprep.subr.bf16.mxu0 0
      %1822 = vmatpush1.bf16.msra.mxu0 0
      %1823 = vmatprep.subr.bf16.mxu0 0
      %1824 = vmatpush1.bf16.msra.mxu0 0
      %1825 = vmatprep.subr.bf16.mxu0 0
      %1826 = vmatpush1.bf16.msra.mxu0 0
      %1827 = vmatprep.subr.bf16.mxu0 0
      %1828 = vmatpush1.bf16.msra.mxu0 0
      %1829 = vmatprep.subr.bf16.mxu0 0
      %1830 = vmatpush1.bf16.msra.mxu0 0
      %1831 = vmatprep.subr.bf16.mxu0 0
      %1832 = vmatpush1.bf16.msra.mxu0 0
      %1833 = vmatprep.subr.bf16.mxu0 0
      %1834 = vmatpush1.bf16.msra.mxu0 0
      %1835 = vmatprep.subr.bf16.mxu0 0
      %1836 = vmatpush1.bf16.msra.mxu0 0
      %1837 = vmatprep.mubr.bf16.mxu0 0
      %1838 = vmatmul.mubr.bf16.gmra.mrb[0].mxu0 %v1755
      %v1839 = vpop.f32.mrb[0].mxu0
      %v1840 = vadd.f32 0.0, %v1839
      %v1841 = vpop.f32.mrb[0].mxu0
      %v1842 = vpop.f32.mrb[0].mxu0
      %v1843 = vadd.f32 0.0, %v1842
      %v1844 = vpop.f32.mrb[0].mxu0
      %1845 = vmatprep.mubr.bf16.mxu0 0
      %1846 = vmatmul.mubr.bf16.gmra.mrb[0].mxu0 %v1758
      %v1847 = vpop.f32.mrb[0].mxu0
      %v1848 = vadd.f32 0.0, %v1847
      %v1849 = vpop.f32.mrb[0].mxu0
      %v1850 = vpop.f32.mrb[0].mxu0
      %v1851 = vadd.f32 0.0, %v1850
      %v1852 = vpop.f32.mrb[0].mxu0
      %1853 = vmatprep.mubr.bf16.mxu0 0
      %1854 = vmatmul.mubr.bf16.gmra.mrb[0].mxu0 %v1761
      %v1855 = vpop.f32.mrb[0].mxu0
      %v1856 = vadd.f32 0.0, %v1855
      %v1857 = vpop.f32.mrb[0].mxu0
      %v1858 = vpop.f32.mrb[0].mxu0
      %v1859 = vadd.f32 0.0, %v1858
      %v1860 = vpop.f32.mrb[0].mxu0
      %1861 = vmatprep.mubr.bf16.mxu0 0
      %1862 = vmatmul.mubr.bf16.gmra.mrb[0].mxu0 %v1764
      %v1863 = vpop.f32.mrb[0].mxu0
      %v1864 = vadd.f32 0.0, %v1863
      %v1865 = vpop.f32.mrb[0].mxu0
      %v1866 = vpop.f32.mrb[0].mxu0
      %v1867 = vadd.f32 0.0, %v1866
      %v1868 = vpop.f32.mrb[0].mxu0
      %1869 = vmatprep.mubr.bf16.mxu0 0
      %1870 = vmatmul.mubr.bf16.gmra.mrb[0].mxu0 %v1767
      %v1871 = vpop.f32.mrb[0].mxu0
      %v1872 = vadd.f32 0.0, %v1871
      %v1873 = vpop.f32.mrb[0].mxu0
      %v1874 = vpop.f32.mrb[0].mxu0
      %v1875 = vadd.f32 0.0, %v1874
      %v1876 = vpop.f32.mrb[0].mxu0
      %1877 = vmatprep.mubr.bf16.mxu0 0
      %1878 = vmatmul.mubr.bf16.gmra.mrb[0].mxu0 %v1770
      %v1879 = vpop.f32.mrb[0].mxu0
      %v1880 = vadd.f32 0.0, %v1879
      %v1881 = vpop.f32.mrb[0].mxu0
      %v1882 = vpop.f32.mrb[0].mxu0
      %v1883 = vadd.f32 0.0, %v1882
      %v1884 = vpop.f32.mrb[0].mxu0
      %1885 = vmatprep.mubr.bf16.mxu0 0
      %1886 = vmatmul.mubr.bf16.gmra.mrb[0].mxu0 %v1773
      %v1887 = vpop.f32.mrb[0].mxu0
      %v1888 = vadd.f32 0.0, %v1887
      %v1889 = vpop.f32.mrb[0].mxu0
      %v1890 = vpop.f32.mrb[0].mxu0
      %v1891 = vadd.f32 0.0, %v1890
      %v1892 = vpop.f32.mrb[0].mxu0
      %1893 = vmatprep.mubr.bf16.mxu0 0
      %1894 = vmatmul.mubr.bf16.gmra.mrb[0].mxu0 %v1776
      %v1895 = vpop.f32.mrb[0].mxu0
      %v1896 = vadd.f32 0.0, %v1895
      %v1897 = vpop.f32.mrb[0].mxu0
      %v1898 = vpop.f32.mrb[0].mxu0
      %v1899 = vadd.f32 0.0, %v1898
      %v1900 = vpop.f32.mrb[0].mxu0
      %1901 = vmatprep.mubr.bf16.mxu0 0
      %1902 = vmatmul.mubr.bf16.gmra.mrb[0].mxu0 %v1779
      %v1903 = vpop.f32.mrb[0].mxu0
      %v1904 = vadd.f32 0.0, %v1903
      %v1905 = vpop.f32.mrb[0].mxu0
      %v1906 = vpop.f32.mrb[0].mxu0
      %v1907 = vadd.f32 0.0, %v1906
      %v1908 = vpop.f32.mrb[0].mxu0
      %1909 = vmatprep.mubr.bf16.mxu0 0
      %1910 = vmatmul.mubr.bf16.gmra.mrb[0].mxu0 %v1782
      %v1911 = vpop.f32.mrb[0].mxu0
      %v1912 = vadd.f32 0.0, %v1911
      %v1913 = vpop.f32.mrb[0].mxu0
      %v1914 = vpop.f32.mrb[0].mxu0
      %v1915 = vadd.f32 0.0, %v1914
      %v1916 = vpop.f32.mrb[0].mxu0
      %1917 = vmatprep.mubr.bf16.mxu0 0
      %1918 = vmatmul.mubr.bf16.gmra.mrb[0].mxu0 %v1785
      %v1919 = vpop.f32.mrb[0].mxu0
      %v1920 = vadd.f32 0.0, %v1919
      %v1921 = vpop.f32.mrb[0].mxu0
      %v1922 = vpop.f32.mrb[0].mxu0
      %v1923 = vadd.f32 0.0, %v1922
      %v1924 = vpop.f32.mrb[0].mxu0
      %1925 = vmatprep.mubr.bf16.mxu0 0
      %1926 = vmatmul.mubr.bf16.gmra.mrb[0].mxu0 %v1788
      %v1927 = vpop.f32.mrb[0].mxu0
      %v1928 = vadd.f32 0.0, %v1927
      %v1929 = vpop.f32.mrb[0].mxu0
      %v1930 = vpop.f32.mrb[0].mxu0
      %v1931 = vadd.f32 0.0, %v1930
      %v1932 = vpop.f32.mrb[0].mxu0
      %1933 = vmatprep.mubr.bf16.mxu0 0
      %1934 = vmatmul.mubr.bf16.gmra.mrb[0].mxu0 %v1791
      %v1935 = vpop.f32.mrb[0].mxu0
      %v1936 = vadd.f32 0.0, %v1935
      %v1937 = vpop.f32.mrb[0].mxu0
      %v1938 = vpop.f32.mrb[0].mxu0
      %v1939 = vadd.f32 0.0, %v1938
      %v1940 = vpop.f32.mrb[0].mxu0
      %1941 = vmatprep.mubr.bf16.mxu0 0
      %1942 = vmatmul.mubr.bf16.gmra.mrb[0].mxu0 %v1794
      %v1943 = vpop.f32.mrb[0].mxu0
      %v1944 = vadd.f32 0.0, %v1943
      %v1945 = vpop.f32.mrb[0].mxu0
      %v1946 = vpop.f32.mrb[0].mxu0
      %v1947 = vadd.f32 0.0, %v1946
      %v1948 = vpop.f32.mrb[0].mxu0
      %1949 = vmatprep.mubr.bf16.mxu0 0
      %1950 = vmatmul.mubr.bf16.gmra.mrb[0].mxu0 %v1797
      %v1951 = vpop.f32.mrb[0].mxu0
      %v1952 = vadd.f32 0.0, %v1951
      %v1953 = vpop.f32.mrb[0].mxu0
      %v1954 = vpop.f32.mrb[0].mxu0
      %v1955 = vadd.f32 0.0, %v1954
      %v1956 = vpop.f32.mrb[0].mxu0
      %1957 = vmatprep.mubr.bf16.mxu0 0
      %1958 = vmatmul.mubr.bf16.gmra.mrb[0].mxu0 %v1800
      %v1959 = vpop.f32.mrb[0].mxu0
      %v1960 = vadd.f32 0.0, %v1959
      %v1961 = vpop.f32.mrb[0].mxu0
      %v1962 = vpop.f32.mrb[0].mxu0
      %v1963 = vadd.f32 0.0, %v1962
      %v1964 = vpop.f32.mrb[0].mxu0
      %1965 = vdwg.mxu0
      %v1966 = vadd.f32 %v1588, %v1840
      %v1967 = vadd.f32 %v1589, %v1843
      %v1968 = vadd.f32 %v1590, %v1848
      %v1969 = vadd.f32 %v1591, %v1851
      %v1970 = vadd.f32 %v1592, %v1856
      %v1971 = vadd.f32 %v1593, %v1859
      %v1972 = vadd.f32 %v1594, %v1864
      %v1973 = vadd.f32 %v1595, %v1867
      %v1974 = vadd.f32 %v1596, %v1872
      %v1975 = vadd.f32 %v1597, %v1875
      %v1976 = vadd.f32 %v1598, %v1880
      %v1977 = vadd.f32 %v1599, %v1883
      %v1978 = vadd.f32 %v1600, %v1888
      %v1979 = vadd.f32 %v1601, %v1891
      %v1980 = vadd.f32 %v1602, %v1896
      %v1981 = vadd.f32 %v1603, %v1899
      %v1982 = vadd.f32 %v1604, %v1904
      %v1983 = vadd.f32 %v1605, %v1907
      %v1984 = vadd.f32 %v1606, %v1912
      %v1985 = vadd.f32 %v1607, %v1915
      %v1986 = vadd.f32 %v1608, %v1920
      %v1987 = vadd.f32 %v1609, %v1923
      %v1988 = vadd.f32 %v1610, %v1928
      %v1989 = vadd.f32 %v1611, %v1931
      %v1990 = vadd.f32 %v1612, %v1936
      %v1991 = vadd.f32 %v1613, %v1939
      %v1992 = vadd.f32 %v1614, %v1944
      %v1993 = vadd.f32 %v1615, %v1947
      %v1994 = vadd.f32 %v1616, %v1952
      %v1995 = vadd.f32 %v1617, %v1955
      %v1996 = vadd.f32 %v1618, %v1960
      %v1997 = vadd.f32 %v1619, %v1963
      %v1998 = vld [vmem:[%s2] sm:$0x1]
      %v2000 = vlaneseq
      %v2001 = vshrl.u32 %v2000, 7
      %v2002 = vsub.s32 0, %v2001
      %v2003 = vrot.slane %v1998, %v2002
      %v2005 = vadd.f32 %v1966, %v2003
      %v2006 = vadd.f32 %v1967, %v2003
      %v2007 = vadd.f32 %v1968, %v2003
      %v2008 = vadd.f32 %v1969, %v2003
      %v2009 = vadd.f32 %v1970, %v2003
      %v2010 = vadd.f32 %v1971, %v2003
      %v2011 = vadd.f32 %v1972, %v2003
      %v2012 = vadd.f32 %v1973, %v2003
      %v2013 = vadd.f32 %v1974, %v2003
      %v2014 = vadd.f32 %v1975, %v2003
      %v2015 = vadd.f32 %v1976, %v2003
      %v2016 = vadd.f32 %v1977, %v2003
      %v2017 = vadd.f32 %v1978, %v2003
      %v2018 = vadd.f32 %v1979, %v2003
      %v2019 = vadd.f32 %v1980, %v2003
      %v2020 = vadd.f32 %v1981, %v2003
      %v2021 = vadd.f32 %v1982, %v2003
      %v2022 = vadd.f32 %v1983, %v2003
      %v2023 = vadd.f32 %v1984, %v2003
      %v2024 = vadd.f32 %v1985, %v2003
      %v2025 = vadd.f32 %v1986, %v2003
      %v2026 = vadd.f32 %v1987, %v2003
      %v2027 = vadd.f32 %v1988, %v2003
      %v2028 = vadd.f32 %v1989, %v2003
      %v2029 = vadd.f32 %v1990, %v2003
      %v2030 = vadd.f32 %v1991, %v2003
      %v2031 = vadd.f32 %v1992, %v2003
      %v2032 = vadd.f32 %v1993, %v2003
      %v2033 = vadd.f32 %v1994, %v2003
      %v2034 = vadd.f32 %v1995, %v2003
      %v2035 = vadd.f32 %v1996, %v2003
      %v2036 = vadd.f32 %v1997, %v2003
      %v2037 = vmax.f32 %v2005, 0.0
      %v2038 = vmax.f32 %v2006, 0.0
      %v2039 = vmax.f32 %v2007, 0.0
      %v2040 = vmax.f32 %v2008, 0.0
      %v2041 = vmax.f32 %v2009, 0.0
      %v2042 = vmax.f32 %v2010, 0.0
      %v2043 = vmax.f32 %v2011, 0.0
      %v2044 = vmax.f32 %v2012, 0.0
      %v2045 = vmax.f32 %v2013, 0.0
      %v2046 = vmax.f32 %v2014, 0.0
      %v2047 = vmax.f32 %v2015, 0.0
      %v2048 = vmax.f32 %v2016, 0.0
      %v2049 = vmax.f32 %v2017, 0.0
      %v2050 = vmax.f32 %v2018, 0.0
      %v2051 = vmax.f32 %v2019, 0.0
      %v2052 = vmax.f32 %v2020, 0.0
      %v2053 = vmax.f32 %v2021, 0.0
      %v2054 = vmax.f32 %v2022, 0.0
      %v2055 = vmax.f32 %v2023, 0.0
      %v2056 = vmax.f32 %v2024, 0.0
      %v2057 = vmax.f32 %v2025, 0.0
      %v2058 = vmax.f32 %v2026, 0.0
      %v2059 = vmax.f32 %v2027, 0.0
      %v2060 = vmax.f32 %v2028, 0.0
      %v2061 = vmax.f32 %v2029, 0.0
      %v2062 = vmax.f32 %v2030, 0.0
      %v2063 = vmax.f32 %v2031, 0.0
      %v2064 = vmax.f32 %v2032, 0.0
      %v2065 = vmax.f32 %v2033, 0.0
      %v2066 = vmax.f32 %v2034, 0.0
      %v2067 = vmax.f32 %v2035, 0.0
      %v2068 = vmax.f32 %v2036, 0.0
      %v2069 = vmax.f32 %v2037, %v2039
      %v2070 = vmax.f32 %v2038, %v2040
      %v2071 = vmax.f32 %v2041, %v2043
      %v2072 = vmax.f32 %v2042, %v2044
      %v2073 = vmax.f32 %v2045, %v2047
      %v2074 = vmax.f32 %v2046, %v2048
      %v2075 = vmax.f32 %v2049, %v2051
      %v2076 = vmax.f32 %v2050, %v2052
      %v2077 = vmax.f32 %v2053, %v2055
      %v2078 = vmax.f32 %v2054, %v2056
      %v2079 = vmax.f32 %v2057, %v2059
      %v2080 = vmax.f32 %v2058, %v2060
      %v2081 = vmax.f32 %v2061, %v2063
      %v2082 = vmax.f32 %v2062, %v2064
      %v2083 = vmax.f32 %v2065, %v2067
      %v2084 = vmax.f32 %v2066, %v2068
      %vm2085 = vcmask 261120
      %2086 = vst.msk [vmem:[#allocation2] sm:$0xff] %vm2085, %v2069
      %2087 = vst.msk [vmem:[#allocation2 + $0x8] sm:$0xff] %vm2085, %v2070
      %2088 = vst.msk [vmem:[#allocation2 + $0x10] sm:$0xff] %vm2085, %v2071
      %2089 = vst.msk [vmem:[#allocation2 + $0x18] sm:$0xff] %vm2085, %v2072
      %2090 = vst.msk [vmem:[#allocation2 + $0x20] sm:$0xff] %vm2085, %v2073
      %2091 = vst.msk [vmem:[#allocation2 + $0x28] sm:$0xff] %vm2085, %v2074
      %2092 = vst.msk [vmem:[#allocation2 + $0x30] sm:$0xff] %vm2085, %v2075
      %2093 = vst.msk [vmem:[#allocation2 + $0x38] sm:$0xff] %vm2085, %v2076
      %2094 = vst.msk [vmem:[#allocation2 + $0x40] sm:$0xff] %vm2085, %v2077
      %2095 = vst.msk [vmem:[#allocation2 + $0x48] sm:$0xff] %vm2085, %v2078
      %2096 = vst.msk [vmem:[#allocation2 + $0x50] sm:$0xff] %vm2085, %v2079
      %2097 = vst.msk [vmem:[#allocation2 + $0x58] sm:$0xff] %vm2085, %v2080
      %2098 = vst.msk [vmem:[#allocation2 + $0x60] sm:$0xff] %vm2085, %v2081
      %2099 = vst.msk [vmem:[#allocation2 + $0x68] sm:$0xff] %vm2085, %v2082
      %2100 = vst.msk [vmem:[#allocation2 + $0x70] sm:$0xff] %vm2085, %v2083
      %2101 = vst.msk [vmem:[#allocation2 + $0x78] sm:$0xff] %vm2085, %v2084
      %v2102 = vld [vmem:[#allocation2] ss:$2 sm:$0xff]
      %s2103 = scalar_lea.vmem [#allocation2], 16
      %v2104 = vld [vmem:[%s2103] ss:$2 sm:$0xff]
      %s2105 = scalar_lea.vmem [#allocation2], 32
      %v2106 = vld [vmem:[%s2105] ss:$2 sm:$0xff]
      %s2107 = scalar_lea.vmem [#allocation2], 48
      %v2108 = vld [vmem:[%s2107] ss:$2 sm:$0xff]
      %s2109 = scalar_lea.vmem [#allocation2], 64
      %v2110 = vld [vmem:[%s2109] ss:$2 sm:$0xff]
      %s2111 = scalar_lea.vmem [#allocation2], 80
      %v2112 = vld [vmem:[%s2111] ss:$2 sm:$0xff]
      %s2113 = scalar_lea.vmem [#allocation2], 96
      %v2114 = vld [vmem:[%s2113] ss:$2 sm:$0xff]
      %s2115 = scalar_lea.vmem [#allocation2], 112
      %v2116 = vld [vmem:[%s2115] ss:$2 sm:$0xff]
      %s2117 = scalar_lea.vmem [#allocation2], 1
      %v2118 = vld [vmem:[%s2117] ss:$2 sm:$0xff]
      %s2119 = scalar_lea.vmem [#allocation2], 17
      %v2120 = vld [vmem:[%s2119] ss:$2 sm:$0xff]
      %s2121 = scalar_lea.vmem [#allocation2], 33
      %v2122 = vld [vmem:[%s2121] ss:$2 sm:$0xff]
      %s2123 = scalar_lea.vmem [#allocation2], 49
      %v2124 = vld [vmem:[%s2123] ss:$2 sm:$0xff]
      %s2125 = scalar_lea.vmem [#allocation2], 65
      %v2126 = vld [vmem:[%s2125] ss:$2 sm:$0xff]
      %s2127 = scalar_lea.vmem [#allocation2], 81
      %v2128 = vld [vmem:[%s2127] ss:$2 sm:$0xff]
      %s2129 = scalar_lea.vmem [#allocation2], 97
      %v2130 = vld [vmem:[%s2129] ss:$2 sm:$0xff]
      %s2131 = scalar_lea.vmem [#allocation2], 113
      %v2132 = vld [vmem:[%s2131] ss:$2 sm:$0xff]
      %v2133 = vmax.f32 %v2102, %v2118
      %v2134 = vmax.f32 %v2104, %v2120
      %v2135 = vmax.f32 %v2106, %v2122
      %v2136 = vmax.f32 %v2108, %v2124
      %v2137 = vmax.f32 %v2110, %v2126
      %v2138 = vmax.f32 %v2112, %v2128
      %v2139 = vmax.f32 %v2114, %v2130
      %v2140 = vmax.f32 %v2116, %v2132
      %v2141 = vpack.c.bf16 %v2133, %v2133
      %v2142 = vpack.c.bf16 %v2134, %v2134
      %v2143 = vpack.c.bf16 %v2135, %v2135
      %v2144 = vpack.c.bf16 %v2136, %v2136
      %v2145 = vpack.c.bf16 %v2137, %v2137
      %v2146 = vpack.c.bf16 %v2138, %v2138
      %v2147 = vpack.c.bf16 %v2139, %v2139
      %v2148 = vpack.c.bf16 %v2140, %v2140
      %vm2149 = vcmask 257024
      %2150 = vst.msk [vmem:[%s170] sm:$0xf] %vm2149, %v2141
      %2151 = vst.msk [vmem:[%s170 + $0x4] sm:$0xf] %vm2149, %v2142
      %2152 = vst.msk [vmem:[%s170 + $0x8] sm:$0xf] %vm2149, %v2143
      %2153 = vst.msk [vmem:[%s170 + $0xc] sm:$0xf] %vm2149, %v2144
      %2154 = vst.msk [vmem:[%s170 + $0x10] sm:$0xf] %vm2149, %v2145
      %2155 = vst.msk [vmem:[%s170 + $0x14] sm:$0xf] %vm2149, %v2146
      %2156 = vst.msk [vmem:[%s170 + $0x18] sm:$0xf] %vm2149, %v2147
      %2157 = vst.msk [vmem:[%s170 + $0x1c] sm:$0xf] %vm2149, %v2148
      %p2158 = scmp.lt.s32.totalorder %s14, 1
      %s2159 = scalar_select %p2158, %s14, 1
      %s2160 = smul.addr %s2159, 8
      %s2161 = smul.addr %s2160, 4
      %s2162 = scalar_lea.vmem %s3, %s2161
      // Predicated region
      $region33: #{complex_cnn_forward.3} parent=31 // pred_check
        %p2163 = pneg %p100
      $region34: #{complex_cnn_forward.3} parent=31 // pred_check_branch
        %2165 = sbr.rel (%p2163) target = $region36
      $region35: #{complex_cnn_forward.3} parent=31 // pred_region
        _
      $region36: #{complex_cnn_forward.3} parent=31 // pred_fallthru
        _
    $region32: #{complex_cnn_forward.3} parent=5 // pred_fallthru
      _
    %p2166 = scmp.le.s32.totalorder 2, %s9
    // Predicated region
    $region37: #{complex_cnn_forward.3} parent=5 // pred_check
      %p2167 = pneg %p2166
    $region38: #{complex_cnn_forward.3} parent=5 // pred_check_branch
      %2169 = sbr.rel (%p2167) target = $region40
    $region39: #{complex_cnn_forward.3} parent=5 // pred_region
      %s2170 = ssub.s32 %s9, 2
      // Predicated region
      $region41: #{complex_cnn_forward.3} parent=39 // pred_check
        %p2171 = pneg %p106
      $region42: #{complex_cnn_forward.3} parent=39 // pred_check_branch
        %2173 = sbr.rel (%p2171) target = $region44
      $region43: #{complex_cnn_forward.3} parent=39 // pred_region
        %p2174 = scmp.lt.s32.totalorder %s15, 1
        %s2175 = scalar_select %p2174, %s15, 1
        %s2176 = smul.addr %s2175, 8
        %s2177 = smul.addr %s2176, 4
        %s2178 = scalar_lea.vmem %s3, %s2177
      $region44: #{complex_cnn_forward.3} parent=39 // pred_fallthru
        _
    $region40: #{complex_cnn_forward.3} parent=5 // pred_fallthru
      _
  $region6: #{complex_cnn_forward.3} parent=0 // loop_footer
    %s13 = sadd.s32 1, %s9
  $region7: #{complex_cnn_forward.3} parent=0 // loop_footer_branch
    %8 = sbr.rel target = $region3
  $region8: #{complex_cnn_forward.3} parent=0 // loop_exit
    _

// kernel: complex_cnn_forward.4
$region0: #{complex_cnn_forward.4}
  #allocation0 [shape = 'u32[]', space=smem, size = 0x4, offset = 0x4, fixed_abs, tag = 'smem constant byte address 0x4 - core index']
  #allocation1 [shape = 'u32[144,128]{1,0:T(1,128)}', space=vmem, size = 0x12000, scoped, tag = 'internal scratch']
  #allocation2 [shape = 'f32[1,4,8,64]{3,2,1,0:T(8,128)}', space=vmem, size = 0x4000, scoped, tag = 'scratch operand']
  %s0 = inlined_call_operand.vmem [shape: bf16[2,12,8,160], index: 0, kind: input, shape index: {}]
  %s1 = inlined_call_operand.vmem [shape: bf16[5,160,64], index: 1, kind: input, shape index: {}]
  %s2 = inlined_call_operand.vmem [shape: f32[1,64], index: 2, kind: input, shape index: {}]
  %s3 = inlined_call_operand.vmem [shape: bf16[2,4,4,64], index: 3, kind: output, shape index: {}]
  %s4 = sld [smem:[#allocation0]]
  $region45: #{complex_cnn_forward.4} parent=0
    _
  %s6 = ssub.s32 1, %s4
  %s7 = scalar_select 0, %s6, %s4
  loop: start=0, step=1, limit=4
  $region2: #{complex_cnn_forward.4} parent=0 // loop_pre_header
    _
  $region3: #{complex_cnn_forward.4} parent=0 // loop_header
    %s9 = sphi 0, %s13
    %p10 = scmp.ge.s32.totalorder %s9, 4
    %s19 = sphi 0, %s21
    %s22 = sphi 0, %s19
    %s23 = sphi 0, %s22
    %s39 = sphi 0, %s23
    %s43 = sphi 0, %s43
    %s45 = sphi 0, %s43
    %s46 = sphi 0, %s45
    %s60 = sphi 0, %s46
    %s64 = sphi 0, %s64
    %s66 = sphi 0, %s64
    %s67 = sphi 0, %s66
    %s81 = sphi 0, %s67
    %s87 = sphi 0, %s89
    %s90 = sphi 0, %s87
    %s91 = sphi 0, %s90
    %s107 = sphi 0, %s91
  $region4: #{complex_cnn_forward.4} parent=0 // loop_header_branch
    %12 = sbr.rel (%p10) target = $region8
  $region5: #{complex_cnn_forward.4} parent=0 // loop_body
    %s14 = ssub.s32 %s9, 1
    %s15 = ssub.s32 %s9, 2
    %s16 = sadd.s32 %s9, 1
    %s17 = ssub.s32 %s9, %s16
    %p18 = scmp.eq.s32.totalorder %s17, 0
    %s20 = sadd.s32 %s19, 1
    %s21 = scalar_select %p18, %s19, %s20
    %p24 = pneg %p18
    %p25 = scmp.eq.s32.totalorder %s9, 1
    %p26 = por %p24, %p25
    %p27 = scmp.ne.s32.totalorder %s19, %s22
    %p28 = scmp.eq.s32.totalorder %s9, 0
    %p29 = por %p27, %p28
    %p30 = scmp.ne.s32.totalorder %s19, %s22
    %p31 = scmp.eq.s32.totalorder %s14, 1
    %p32 = por %p30, %p31
    %p33 = scmp.ne.s32.totalorder %s22, %s23
    %p34 = scmp.eq.s32.totalorder %s14, 0
    %p35 = por %p33, %p34
    %p36 = scmp.ne.s32.totalorder %s22, %s23
    %p37 = scmp.eq.s32.totalorder %s15, 1
    %p38 = por %p36, %p37
    %p40 = scmp.ne.s32.totalorder %s23, %s39
    %p41 = scmp.eq.s32.totalorder %s15, 0
    %p42 = por %p40, %p41
    %s44 = sadd.s32 %s43, 1
    %p47 = scmp.eq.s32.totalorder %s9, 1
    %p48 = scmp.ne.s32.totalorder %s43, %s45
    %p49 = scmp.eq.s32.totalorder %s9, 0
    %p50 = por %p48, %p49
    %p51 = scmp.ne.s32.totalorder %s43, %s45
    %p52 = scmp.eq.s32.totalorder %s14, 1
    %p53 = por %p51, %p52
    %p54 = scmp.ne.s32.totalorder %s45, %s46
    %p55 = scmp.eq.s32.totalorder %s14, 0
    %p56 = por %p54, %p55
    %p57 = scmp.ne.s32.totalorder %s45, %s46
    %p58 = scmp.eq.s32.totalorder %s15, 1
    %p59 = por %p57, %p58
    %p61 = scmp.ne.s32.totalorder %s46, %s60
    %p62 = scmp.eq.s32.totalorder %s15, 0
    %p63 = por %p61, %p62
    %s65 = sadd.s32 %s64, 1
    %p68 = scmp.eq.s32.totalorder %s9, 1
    %p69 = scmp.ne.s32.totalorder %s64, %s66
    %p70 = scmp.eq.s32.totalorder %s9, 0
    %p71 = por %p69, %p70
    %p72 = scmp.ne.s32.totalorder %s64, %s66
    %p73 = scmp.eq.s32.totalorder %s14, 1
    %p74 = por %p72, %p73
    %p75 = scmp.ne.s32.totalorder %s66, %s67
    %p76 = scmp.eq.s32.totalorder %s14, 0
    %p77 = por %p75, %p76
    %p78 = scmp.ne.s32.totalorder %s66, %s67
    %p79 = scmp.eq.s32.totalorder %s15, 1
    %p80 = por %p78, %p79
    %p82 = scmp.ne.s32.totalorder %s67, %s81
    %p83 = scmp.eq.s32.totalorder %s15, 0
    %p84 = por %p82, %p83
    %s85 = ssub.s32 %s9, %s16
    %p86 = scmp.eq.s32.totalorder %s85, 0
    %s88 = sadd.s32 %s87, 1
    %s89 = scalar_select %p86, %s87, %s88
    %p92 = pneg %p86
    %p93 = scmp.eq.s32.totalorder %s9, 1
    %p94 = por %p92, %p93
    %p95 = scmp.ne.s32.totalorder %s87, %s90
    %p96 = scmp.eq.s32.totalorder %s9, 0
    %p97 = por %p95, %p96
    %p98 = scmp.ne.s32.totalorder %s87, %s90
    %p99 = scmp.eq.s32.totalorder %s14, 1
    %p100 = por %p98, %p99
    %p101 = scmp.ne.s32.totalorder %s90, %s91
    %p102 = scmp.eq.s32.totalorder %s14, 0
    %p103 = por %p101, %p102
    %p104 = scmp.ne.s32.totalorder %s90, %s91
    %p105 = scmp.eq.s32.totalorder %s15, 1
    %p106 = por %p104, %p105
    %p108 = scmp.ne.s32.totalorder %s91, %s107
    %p109 = scmp.eq.s32.totalorder %s15, 0
    %p110 = por %p108, %p109
    %p111 = scmp.le.s32.totalorder 1, %s9
    %p112 = scmp.lt.s32.totalorder %s9, 3
    %p113 = pnand %p111, %p112
    %p114 = pneg %p113
    // Predicated region
    $region9: #{complex_cnn_forward.4} parent=5 // pred_check
      _
    $region10: #{complex_cnn_forward.4} parent=5 // pred_check_branch
      %116 = sbr.rel (%p113) target = $region12
    $region11: #{complex_cnn_forward.4} parent=5 // pred_region
      %s117 = ssub.s32 %s9, 1
      // Predicated region
      $region13: #{complex_cnn_forward.4} parent=11 // pred_check
        %p118 = pneg %p56
      $region14: #{complex_cnn_forward.4} parent=11 // pred_check_branch
        %120 = sbr.rel (%p118) target = $region16
      $region15: #{complex_cnn_forward.4} parent=11 // pred_region
        _
      $region16: #{complex_cnn_forward.4} parent=11 // pred_fallthru
        _
      // Predicated region
      $region17: #{complex_cnn_forward.4} parent=11 // pred_check
        %p121 = pneg %p77
      $region18: #{complex_cnn_forward.4} parent=11 // pred_check_branch
        %123 = sbr.rel (%p121) target = $region20
      $region19: #{complex_cnn_forward.4} parent=11 // pred_region
        _
      $region20: #{complex_cnn_forward.4} parent=11 // pred_fallthru
        _
    $region12: #{complex_cnn_forward.4} parent=5 // pred_fallthru
      _
    %p124 = scmp.lt.s32.totalorder %s9, 2
    // Predicated region
    $region21: #{complex_cnn_forward.4} parent=5 // pred_check
      %p125 = pneg %p124
    $region22: #{complex_cnn_forward.4} parent=5 // pred_check_branch
      %127 = sbr.rel (%p125) target = $region24
    $region23: #{complex_cnn_forward.4} parent=5 // pred_region
      // Predicated region
      $region25: #{complex_cnn_forward.4} parent=23 // pred_check
        %p128 = pneg %p29
      $region26: #{complex_cnn_forward.4} parent=23 // pred_check_branch
        %130 = sbr.rel (%p128) target = $region28
      $region27: #{complex_cnn_forward.4} parent=23 // pred_region
        %p131 = scmp.lt.s32.totalorder %s9, 1
        %s132 = scalar_select %p131, %s9, 1
        %s133 = smul.addr %s132, 24
        %s134 = smul.addr %s133, 4
        %s135 = scalar_lea.vmem %s0, %s134
      $region28: #{complex_cnn_forward.4} parent=23 // pred_fallthru
        _
    $region24: #{complex_cnn_forward.4} parent=5 // pred_fallthru
      _
    %p136 = scmp.le.s32.totalorder 1, %s9
    %p137 = scmp.lt.s32.totalorder %s9, 3
    %p138 = pnand %p136, %p137
    %p139 = pneg %p138
    // Predicated region
    $region29: #{complex_cnn_forward.4} parent=5 // pred_check
      _
    $region30: #{complex_cnn_forward.4} parent=5 // pred_check_branch
      %141 = sbr.rel (%p138) target = $region32
    $region31: #{complex_cnn_forward.4} parent=5 // pred_region
      %s142 = ssub.s32 %s9, 1
      %p143 = scmp.lt.s32.totalorder %s14, 1
      %s144 = scalar_select %p143, %s14, 1
      %s145 = smul.addr %s144, 24
      %s146 = smul.addr %s145, 4
      %s147 = scalar_lea.vmem %s0, %s146
      %p148 = pneg %p35
      %p149 = pneg %p32
      %p150 = pneg %p56
      %p151 = pneg %p53
      %p152 = pneg %p77
      %p153 = pneg %p74
      %p154 = pneg %p103
      %p155 = pneg %p100
      %p156 = scmp.lt.s32.totalorder %s14, 1
      %s157 = scalar_select %p156, %s14, 1
      %s158 = smul.addr %s157, 4
      %s159 = smul.addr %s158, 2
      %s160 = scalar_lea.vmem %s3, %s159
      %p161 = scmp.lt.s32.totalorder %s14, 1
      %s162 = scalar_select %p161, %s14, 1
      %s163 = smul.addr %s162, 24
      %s164 = smul.addr %s163, 4
      %s165 = scalar_lea.vmem %s0, %s164
      %p166 = scmp.lt.s32.totalorder %s14, 1
      %s167 = scalar_select %p166, %s14, 1
      %s168 = smul.addr %s167, 4
      %s169 = smul.addr %s168, 2
      %s170 = scalar_lea.vmem %s3, %s169
      %v172 = vld [vmem:[%s165] sm:$0xff]
      %v173 = vld [vmem:[%s165 + $0x8] sm:$0xff]
      %v174 = vld [vmem:[%s165 + $0x10] sm:$0xff]
      %v175 = vld [vmem:[%s165 + $0x18] sm:$0xff]
      %v176 = vld [vmem:[%s165 + $0x20] sm:$0xff]
      %v177 = vld [vmem:[%s165 + $0x28] sm:$0xff]
      %v178 = vld [vmem:[%s165 + $0x30] sm:$0xff]
      %v179 = vld [vmem:[%s165 + $0x38] sm:$0xff]
      %v180 = vld [vmem:[%s1] sm:$0xf]
      %v181 = vld [vmem:[%s1 + $0x4] sm:$0xf]
      %v182 = vld [vmem:[%s1 + $0x8] sm:$0xf]
      %v183 = vld [vmem:[%s1 + $0xc] sm:$0xf]
      %v184 = vld [vmem:[%s1 + $0x10] sm:$0xf]
      %v185 = vld [vmem:[%s1 + $0x14] sm:$0xf]
      %v186 = vld [vmem:[%s1 + $0x18] sm:$0xf]
      %v187 = vld [vmem:[%s1 + $0x1c] sm:$0xf]
      %v188 = vld [vmem:[%s1 + $0x20] sm:$0xf]
      %v189 = vld [vmem:[%s1 + $0x24] sm:$0xf]
      %v190 = vld [vmem:[%s1 + $0x28] sm:$0xf]
      %v191 = vld [vmem:[%s1 + $0x2c] sm:$0xf]
      %v192 = vld [vmem:[%s1 + $0x30] sm:$0xf]
      %v193 = vld [vmem:[%s1 + $0x34] sm:$0xf]
      %v194 = vld [vmem:[%s1 + $0x38] sm:$0xf]
      %v195 = vld [vmem:[%s1 + $0x3c] sm:$0xf]
      %v196 = vld [vmem:[%s1 + $0x40] sm:$0xf]
      %v197 = vld [vmem:[%s1 + $0x44] sm:$0xf]
      %v198 = vld [vmem:[%s1 + $0x48] sm:$0xf]
      %v199 = vld [vmem:[%s1 + $0x4c] sm:$0xf]
      %s200 = scalar_lea.vmem %s165, 8
      %v201 = vld [vmem:[%s200] sm:$0xff]
      %v202 = vld [vmem:[%s200 + $0x8] sm:$0xff]
      %v203 = vld [vmem:[%s200 + $0x10] sm:$0xff]
      %v204 = vld [vmem:[%s200 + $0x18] sm:$0xff]
      %v205 = vld [vmem:[%s200 + $0x20] sm:$0xff]
      %v206 = vld [vmem:[%s200 + $0x28] sm:$0xff]
      %v207 = vld [vmem:[%s200 + $0x30] sm:$0xff]
      %v208 = vld [vmem:[%s200 + $0x38] sm:$0xff]
      %s209 = scalar_lea.vmem %s1, 80
      %v210 = vld [vmem:[%s209] sm:$0xf]
      %v211 = vld [vmem:[%s209 + $0x4] sm:$0xf]
      %v212 = vld [vmem:[%s209 + $0x8] sm:$0xf]
      %v213 = vld [vmem:[%s209 + $0xc] sm:$0xf]
      %v214 = vld [vmem:[%s209 + $0x10] sm:$0xf]
      %v215 = vld [vmem:[%s209 + $0x14] sm:$0xf]
      %v216 = vld [vmem:[%s209 + $0x18] sm:$0xf]
      %v217 = vld [vmem:[%s209 + $0x1c] sm:$0xf]
      %v218 = vld [vmem:[%s209 + $0x20] sm:$0xf]
      %v219 = vld [vmem:[%s209 + $0x24] sm:$0xf]
      %v220 = vld [vmem:[%s209 + $0x28] sm:$0xf]
      %v221 = vld [vmem:[%s209 + $0x2c] sm:$0xf]
      %v222 = vld [vmem:[%s209 + $0x30] sm:$0xf]
      %v223 = vld [vmem:[%s209 + $0x34] sm:$0xf]
      %v224 = vld [vmem:[%s209 + $0x38] sm:$0xf]
      %v225 = vld [vmem:[%s209 + $0x3c] sm:$0xf]
      %v226 = vld [vmem:[%s209 + $0x40] sm:$0xf]
      %v227 = vld [vmem:[%s209 + $0x44] sm:$0xf]
      %v228 = vld [vmem:[%s209 + $0x48] sm:$0xf]
      %v229 = vld [vmem:[%s209 + $0x4c] sm:$0xf]
      %v238 = vunpack.c.l.b16 %v201
      %v239 = vunpack.c.h.b16 %v201
      %v240 = vunpack.c.l.b16 %v202
      %v241 = vunpack.c.h.b16 %v202
      %v242 = vunpack.c.l.b16 %v203
      %v243 = vunpack.c.h.b16 %v203
      %v244 = vunpack.c.l.b16 %v204
      %v245 = vunpack.c.h.b16 %v204
      %v246 = vunpack.c.l.b16 %v205
      %v247 = vunpack.c.h.b16 %v205
      %v248 = vunpack.c.l.b16 %v206
      %v249 = vunpack.c.h.b16 %v206
      %v250 = vunpack.c.l.b16 %v207
      %v251 = vunpack.c.h.b16 %v207
      %v252 = vunpack.c.l.b16 %v208
      %v253 = vunpack.c.h.b16 %v208
      %v254 = vpack.c.b16 %v240, %v238
      %v255 = vpack.c.b16 %v241, %v239
      %v256 = vpack.c.b16 %v244, %v242
      %v257 = vpack.c.b16 %v245, %v243
      %v258 = vpack.c.b16 %v248, %v246
      %v259 = vpack.c.b16 %v249, %v247
      %v260 = vpack.c.b16 %v252, %v250
      %v261 = vpack.c.b16 %v253, %v251
      %v286 = vunpack.c.l.b16 %v210
      %v287 = vunpack.c.l.b16 %v211
      %v288 = vunpack.c.l.b16 %v212
      %v289 = vunpack.c.l.b16 %v213
      %v290 = vunpack.c.l.b16 %v214
      %v291 = vunpack.c.l.b16 %v215
      %v292 = vunpack.c.l.b16 %v216
      %v293 = vunpack.c.l.b16 %v217
      %v294 = vunpack.c.l.b16 %v218
      %v295 = vunpack.c.l.b16 %v219
      %v296 = vunpack.c.l.b16 %v220
      %v297 = vunpack.c.l.b16 %v221
      %v298 = vunpack.c.l.b16 %v222
      %v299 = vunpack.c.l.b16 %v223
      %v300 = vunpack.c.l.b16 %v224
      %v301 = vunpack.c.l.b16 %v225
      %v302 = vunpack.c.l.b16 %v226
      %v303 = vunpack.c.l.b16 %v227
      %v304 = vunpack.c.l.b16 %v228
      %v305 = vunpack.c.l.b16 %v229
      %v306 = vpack.c.b16 %v287, %v286
      %v307 = vpack.c.b16 %v289, %v288
      %v308 = vpack.c.b16 %v291, %v290
      %v309 = vpack.c.b16 %v293, %v292
      %v310 = vpack.c.b16 %v295, %v294
      %v311 = vpack.c.b16 %v297, %v296
      %v312 = vpack.c.b16 %v299, %v298
      %v313 = vpack.c.b16 %v301, %v300
      %v314 = vpack.c.b16 %v303, %v302
      %v315 = vpack.c.b16 %v305, %v304
      %vm326 = vcmask 261120
      %v328 = vsel %vm326, %v255, 0
      %v331 = vsel %vm326, %v257, 0
      %v334 = vsel %vm326, %v259, 0
      %v337 = vsel %vm326, %v261, 0
      %339 = vmatprep.subr.bf16.mxu0 0
      %340 = vmatpush1.bf16.msra.mxu0 %v306
      %341 = vmatprep.subr.bf16.mxu0 0
      %342 = vmatpush1.bf16.msra.mxu0 %v307
      %343 = vmatprep.subr.bf16.mxu0 0
      %344 = vmatpush1.bf16.msra.mxu0 %v308
      %345 = vmatprep.subr.bf16.mxu0 0
      %346 = vmatpush1.bf16.msra.mxu0 %v309
      %347 = vmatprep.subr.bf16.mxu0 0
      %348 = vmatpush1.bf16.msra.mxu0 %v310
      %349 = vmatprep.subr.bf16.mxu0 0
      %350 = vmatpush1.bf16.msra.mxu0 %v311
      %351 = vmatprep.subr.bf16.mxu0 0
      %352 = vmatpush1.bf16.msra.mxu0 %v312
      %353 = vmatprep.subr.bf16.mxu0 0
      %354 = vmatpush1.bf16.msra.mxu0 %v313
      %355 = vmatprep.subr.bf16.mxu0 0
      %356 = vmatpush1.bf16.msra.mxu0 %v314
      %357 = vmatprep.subr.bf16.mxu0 0
      %358 = vmatpush1.bf16.msra.mxu0 %v315
      %359 = vmatprep.subr.bf16.mxu0 0
      %360 = vmatpush1.bf16.msra.mxu0 0
      %361 = vmatprep.subr.bf16.mxu0 0
      %362 = vmatpush1.bf16.msra.mxu0 0
      %363 = vmatprep.subr.bf16.mxu0 0
      %364 = vmatpush1.bf16.msra.mxu0 0
      %365 = vmatprep.subr.bf16.mxu0 0
      %366 = vmatpush1.bf16.msra.mxu0 0
      %367 = vmatprep.subr.bf16.mxu0 0
      %368 = vmatpush1.bf16.msra.mxu0 0
      %369 = vmatprep.subr.bf16.mxu0 0
      %370 = vmatpush1.bf16.msra.mxu0 0
      %371 = vmatprep.mubr.bf16.mxu0 %v328
      %372 = vmatmul.mubr.bf16.gmra.mrb[0].mxu0 %v254
      %v373 = vpop.f32.mrb[0].mxu0
      %v374 = vadd.f32 0.0, %v373
      %v375 = vpop.f32.mrb[0].mxu0
      %v376 = vpop.f32.mrb[0].mxu0
      %v377 = vadd.f32 0.0, %v376
      %v378 = vpop.f32.mrb[0].mxu0
      %379 = vmatprep.mubr.bf16.mxu0 %v331
      %380 = vmatmul.mubr.bf16.gmra.mrb[0].mxu0 %v256
      %v381 = vpop.f32.mrb[0].mxu0
      %v382 = vadd.f32 0.0, %v381
      %v383 = vpop.f32.mrb[0].mxu0
      %v384 = vpop.f32.mrb[0].mxu0
      %v385 = vadd.f32 0.0, %v384
      %v386 = vpop.f32.mrb[0].mxu0
      %387 = vmatprep.mubr.bf16.mxu0 %v334
      %388 = vmatmul.mubr.bf16.gmra.mrb[0].mxu0 %v258
      %v389 = vpop.f32.mrb[0].mxu0
      %v390 = vadd.f32 0.0, %v389
      %v391 = vpop.f32.mrb[0].mxu0
      %v392 = vpop.f32.mrb[0].mxu0
      %v393 = vadd.f32 0.0, %v392
      %v394 = vpop.f32.mrb[0].mxu0
      %395 = vmatprep.mubr.bf16.mxu0 %v337
      %396 = vmatmul.mubr.bf16.gmra.mrb[0].mxu0 %v260
      %v397 = vpop.f32.mrb[0].mxu0
      %v398 = vadd.f32 0.0, %v397
      %v399 = vpop.f32.mrb[0].mxu0
      %v400 = vpop.f32.mrb[0].mxu0
      %v401 = vadd.f32 0.0, %v400
      %v402 = vpop.f32.mrb[0].mxu0
      %403 = vdwg.mxu0
      %v412 = vunpack.c.l.b16 %v172
      %v413 = vunpack.c.h.b16 %v172
      %v414 = vunpack.c.l.b16 %v173
      %v415 = vunpack.c.h.b16 %v173
      %v416 = vunpack.c.l.b16 %v174
      %v417 = vunpack.c.h.b16 %v174
      %v418 = vunpack.c.l.b16 %v175
      %v419 = vunpack.c.h.b16 %v175
      %v420 = vunpack.c.l.b16 %v176
      %v421 = vunpack.c.h.b16 %v176
      %v422 = vunpack.c.l.b16 %v177
      %v423 = vunpack.c.h.b16 %v177
      %v424 = vunpack.c.l.b16 %v178
      %v425 = vunpack.c.h.b16 %v178
      %v426 = vunpack.c.l.b16 %v179
      %v427 = vunpack.c.h.b16 %v179
      %v428 = vpack.c.b16 %v414, %v412
      %v429 = vpack.c.b16 %v415, %v413
      %v430 = vpack.c.b16 %v418, %v416
      %v431 = vpack.c.b16 %v419, %v417
      %v432 = vpack.c.b16 %v422, %v420
      %v433 = vpack.c.b16 %v423, %v421
      %v434 = vpack.c.b16 %v426, %v424
      %v435 = vpack.c.b16 %v427, %v425
      %v460 = vunpack.c.l.b16 %v180
      %v461 = vunpack.c.l.b16 %v181
      %v462 = vunpack.c.l.b16 %v182
      %v463 = vunpack.c.l.b16 %v183
      %v464 = vunpack.c.l.b16 %v184
      %v465 = vunpack.c.l.b16 %v185
      %v466 = vunpack.c.l.b16 %v186
      %v467 = vunpack.c.l.b16 %v187
      %v468 = vunpack.c.l.b16 %v188
      %v469 = vunpack.c.l.b16 %v189
      %v470 = vunpack.c.l.b16 %v190
      %v471 = vunpack.c.l.b16 %v191
      %v472 = vunpack.c.l.b16 %v192
      %v473 = vunpack.c.l.b16 %v193
      %v474 = vunpack.c.l.b16 %v194
      %v475 = vunpack.c.l.b16 %v195
      %v476 = vunpack.c.l.b16 %v196
      %v477 = vunpack.c.l.b16 %v197
      %v478 = vunpack.c.l.b16 %v198
      %v479 = vunpack.c.l.b16 %v199
      %v480 = vpack.c.b16 %v461, %v460
      %v481 = vpack.c.b16 %v463, %v462
      %v482 = vpack.c.b16 %v465, %v464
      %v483 = vpack.c.b16 %v467, %v466
      %v484 = vpack.c.b16 %v469, %v468
      %v485 = vpack.c.b16 %v471, %v470
      %v486 = vpack.c.b16 %v473, %v472
      %v487 = vpack.c.b16 %v475, %v474
      %v488 = vpack.c.b16 %v477, %v476
      %v489 = vpack.c.b16 %v479, %v478
      %v501 = vsel %vm326, %v429, 0
      %v504 = vsel %vm326, %v431, 0
      %v507 = vsel %vm326, %v433, 0
      %v510 = vsel %vm326, %v435, 0
      %512 = vmatprep.subr.bf16.mxu0 0
      %513 = vmatpush1.bf16.msra.mxu0 %v480
      %514 = vmatprep.subr.bf16.mxu0 0
      %515 = vmatpush1.bf16.msra.mxu0 %v481
      %516 = vmatprep.subr.bf16.mxu0 0
      %517 = vmatpush1.bf16.msra.mxu0 %v482
      %518 = vmatprep.subr.bf16.mxu0 0
      %519 = vmatpush1.bf16.msra.mxu0 %v483
      %520 = vmatprep.subr.bf16.mxu0 0
      %521 = vmatpush1.bf16.msra.mxu0 %v484
      %522 = vmatprep.subr.bf16.mxu0 0
      %523 = vmatpush1.bf16.msra.mxu0 %v485
      %524 = vmatprep.subr.bf16.mxu0 0
      %525 = vmatpush1.bf16.msra.mxu0 %v486
      %526 = vmatprep.subr.bf16.mxu0 0
      %527 = vmatpush1.bf16.msra.mxu0 %v487
      %528 = vmatprep.subr.bf16.mxu0 0
      %529 = vmatpush1.bf16.msra.mxu0 %v488
      %530 = vmatprep.subr.bf16.mxu0 0
      %531 = vmatpush1.bf16.msra.mxu0 %v489
      %532 = vmatprep.subr.bf16.mxu0 0
      %533 = vmatpush1.bf16.msra.mxu0 0
      %534 = vmatprep.subr.bf16.mxu0 0
      %535 = vmatpush1.bf16.msra.mxu0 0
      %536 = vmatprep.subr.bf16.mxu0 0
      %537 = vmatpush1.bf16.msra.mxu0 0
      %538 = vmatprep.subr.bf16.mxu0 0
      %539 = vmatpush1.bf16.msra.mxu0 0
      %540 = vmatprep.subr.bf16.mxu0 0
      %541 = vmatpush1.bf16.msra.mxu0 0
      %542 = vmatprep.subr.bf16.mxu0 0
      %543 = vmatpush1.bf16.msra.mxu0 0
      %544 = vmatprep.mubr.bf16.mxu0 %v501
      %545 = vmatmul.mubr.bf16.gmra.mrb[0].mxu0 %v428
      %v546 = vpop.f32.mrb[0].mxu0
      %v547 = vadd.f32 %v374, %v546
      %v548 = vpop.f32.mrb[0].mxu0
      %v549 = vpop.f32.mrb[0].mxu0
      %v550 = vadd.f32 %v377, %v549
      %v551 = vpop.f32.mrb[0].mxu0
      %552 = vmatprep.mubr.bf16.mxu0 %v504
      %553 = vmatmul.mubr.bf16.gmra.mrb[0].mxu0 %v430
      %v554 = vpop.f32.mrb[0].mxu0
      %v555 = vadd.f32 %v382, %v554
      %v556 = vpop.f32.mrb[0].mxu0
      %v557 = vpop.f32.mrb[0].mxu0
      %v558 = vadd.f32 %v385, %v557
      %v559 = vpop.f32.mrb[0].mxu0
      %560 = vmatprep.mubr.bf16.mxu0 %v507
      %561 = vmatmul.mubr.bf16.gmra.mrb[0].mxu0 %v432
      %v562 = vpop.f32.mrb[0].mxu0
      %v563 = vadd.f32 %v390, %v562
      %v564 = vpop.f32.mrb[0].mxu0
      %v565 = vpop.f32.mrb[0].mxu0
      %v566 = vadd.f32 %v393, %v565
      %v567 = vpop.f32.mrb[0].mxu0
      %568 = vmatprep.mubr.bf16.mxu0 %v510
      %569 = vmatmul.mubr.bf16.gmra.mrb[0].mxu0 %v434
      %v570 = vpop.f32.mrb[0].mxu0
      %v571 = vadd.f32 %v398, %v570
      %v572 = vpop.f32.mrb[0].mxu0
      %v573 = vpop.f32.mrb[0].mxu0
      %v574 = vadd.f32 %v401, %v573
      %v575 = vpop.f32.mrb[0].mxu0
      %576 = vdwg.mxu0
      %s577 = scalar_lea.vmem %s165, 16
      %v578 = vld [vmem:[%s577] sm:$0xff]
      %v579 = vld [vmem:[%s577 + $0x8] sm:$0xff]
      %v580 = vld [vmem:[%s577 + $0x10] sm:$0xff]
      %v581 = vld [vmem:[%s577 + $0x18] sm:$0xff]
      %v582 = vld [vmem:[%s577 + $0x20] sm:$0xff]
      %v583 = vld [vmem:[%s577 + $0x28] sm:$0xff]
      %v584 = vld [vmem:[%s577 + $0x30] sm:$0xff]
      %v585 = vld [vmem:[%s577 + $0x38] sm:$0xff]
      %s586 = scalar_lea.vmem %s1, 160
      %v587 = vld [vmem:[%s586] sm:$0xf]
      %v588 = vld [vmem:[%s586 + $0x4] sm:$0xf]
      %v589 = vld [vmem:[%s586 + $0x8] sm:$0xf]
      %v590 = vld [vmem:[%s586 + $0xc] sm:$0xf]
      %v591 = vld [vmem:[%s586 + $0x10] sm:$0xf]
      %v592 = vld [vmem:[%s586 + $0x14] sm:$0xf]
      %v593 = vld [vmem:[%s586 + $0x18] sm:$0xf]
      %v594 = vld [vmem:[%s586 + $0x1c] sm:$0xf]
      %v595 = vld [vmem:[%s586 + $0x20] sm:$0xf]
      %v596 = vld [vmem:[%s586 + $0x24] sm:$0xf]
      %v597 = vld [vmem:[%s586 + $0x28] sm:$0xf]
      %v598 = vld [vmem:[%s586 + $0x2c] sm:$0xf]
      %v599 = vld [vmem:[%s586 + $0x30] sm:$0xf]
      %v600 = vld [vmem:[%s586 + $0x34] sm:$0xf]
      %v601 = vld [vmem:[%s586 + $0x38] sm:$0xf]
      %v602 = vld [vmem:[%s586 + $0x3c] sm:$0xf]
      %v603 = vld [vmem:[%s586 + $0x40] sm:$0xf]
      %v604 = vld [vmem:[%s586 + $0x44] sm:$0xf]
      %v605 = vld [vmem:[%s586 + $0x48] sm:$0xf]
      %v606 = vld [vmem:[%s586 + $0x4c] sm:$0xf]
      %v615 = vunpack.c.l.b16 %v578
      %v616 = vunpack.c.h.b16 %v578
      %v617 = vunpack.c.l.b16 %v579
      %v618 = vunpack.c.h.b16 %v579
      %v619 = vunpack.c.l.b16 %v580
      %v620 = vunpack.c.h.b16 %v580
      %v621 = vunpack.c.l.b16 %v581
      %v622 = vunpack.c.h.b16 %v581
      %v623 = vunpack.c.l.b16 %v582
      %v624 = vunpack.c.h.b16 %v582
      %v625 = vunpack.c.l.b16 %v583
      %v626 = vunpack.c.h.b16 %v583
      %v627 = vunpack.c.l.b16 %v584
      %v628 = vunpack.c.h.b16 %v584
      %v629 = vunpack.c.l.b16 %v585
      %v630 = vunpack.c.h.b16 %v585
      %v631 = vpack.c.b16 %v617, %v615
      %v632 = vpack.c.b16 %v618, %v616
      %v633 = vpack.c.b16 %v621, %v619
      %v634 = vpack.c.b16 %v622, %v620
      %v635 = vpack.c.b16 %v625, %v623
      %v636 = vpack.c.b16 %v626, %v624
      %v637 = vpack.c.b16 %v629, %v627
      %v638 = vpack.c.b16 %v630, %v628
      %v663 = vunpack.c.l.b16 %v587
      %v664 = vunpack.c.l.b16 %v588
      %v665 = vunpack.c.l.b16 %v589
      %v666 = vunpack.c.l.b16 %v590
      %v667 = vunpack.c.l.b16 %v591
      %v668 = vunpack.c.l.b16 %v592
      %v669 = vunpack.c.l.b16 %v593
      %v670 = vunpack.c.l.b16 %v594
      %v671 = vunpack.c.l.b16 %v595
      %v672 = vunpack.c.l.b16 %v596
      %v673 = vunpack.c.l.b16 %v597
      %v674 = vunpack.c.l.b16 %v598
      %v675 = vunpack.c.l.b16 %v599
      %v676 = vunpack.c.l.b16 %v600
      %v677 = vunpack.c.l.b16 %v601
      %v678 = vunpack.c.l.b16 %v602
      %v679 = vunpack.c.l.b16 %v603
      %v680 = vunpack.c.l.b16 %v604
      %v681 = vunpack.c.l.b16 %v605
      %v682 = vunpack.c.l.b16 %v606
      %v683 = vpack.c.b16 %v664, %v663
      %v684 = vpack.c.b16 %v666, %v665
      %v685 = vpack.c.b16 %v668, %v667
      %v686 = vpack.c.b16 %v670, %v669
      %v687 = vpack.c.b16 %v672, %v671
      %v688 = vpack.c.b16 %v674, %v673
      %v689 = vpack.c.b16 %v676, %v675
      %v690 = vpack.c.b16 %v678, %v677
      %v691 = vpack.c.b16 %v680, %v679
      %v692 = vpack.c.b16 %v682, %v681
      %v704 = vsel %vm326, %v632, 0
      %v707 = vsel %vm326, %v634, 0
      %v710 = vsel %vm326, %v636, 0
      %v713 = vsel %vm326, %v638, 0
      %715 = vmatprep.subr.bf16.mxu0 0
      %716 = vmatpush1.bf16.msra.mxu0 %v683
      %717 = vmatprep.subr.bf16.mxu0 0
      %718 = vmatpush1.bf16.msra.mxu0 %v684
      %719 = vmatprep.subr.bf16.mxu0 0
      %720 = vmatpush1.bf16.msra.mxu0 %v685
      %721 = vmatprep.subr.bf16.mxu0 0
      %722 = vmatpush1.bf16.msra.mxu0 %v686
      %723 = vmatprep.subr.bf16.mxu0 0
      %724 = vmatpush1.bf16.msra.mxu0 %v687
      %725 = vmatprep.subr.bf16.mxu0 0
      %726 = vmatpush1.bf16.msra.mxu0 %v688
      %727 = vmatprep.subr.bf16.mxu0 0
      %728 = vmatpush1.bf16.msra.mxu0 %v689
      %729 = vmatprep.subr.bf16.mxu0 0
      %730 = vmatpush1.bf16.msra.mxu0 %v690
      %731 = vmatprep.subr.bf16.mxu0 0
      %732 = vmatpush1.bf16.msra.mxu0 %v691
      %733 = vmatprep.subr.bf16.mxu0 0
      %734 = vmatpush1.bf16.msra.mxu0 %v692
      %735 = vmatprep.subr.bf16.mxu0 0
      %736 = vmatpush1.bf16.msra.mxu0 0
      %737 = vmatprep.subr.bf16.mxu0 0
      %738 = vmatpush1.bf16.msra.mxu0 0
      %739 = vmatprep.subr.bf16.mxu0 0
      %740 = vmatpush1.bf16.msra.mxu0 0
      %741 = vmatprep.subr.bf16.mxu0 0
      %742 = vmatpush1.bf16.msra.mxu0 0
      %743 = vmatprep.subr.bf16.mxu0 0
      %744 = vmatpush1.bf16.msra.mxu0 0
      %745 = vmatprep.subr.bf16.mxu0 0
      %746 = vmatpush1.bf16.msra.mxu0 0
      %747 = vmatprep.mubr.bf16.mxu0 %v704
      %748 = vmatmul.mubr.bf16.gmra.mrb[0].mxu0 %v631
      %v749 = vpop.f32.mrb[0].mxu0
      %v750 = vadd.f32 0.0, %v749
      %v751 = vpop.f32.mrb[0].mxu0
      %v752 = vpop.f32.mrb[0].mxu0
      %v753 = vadd.f32 0.0, %v752
      %v754 = vpop.f32.mrb[0].mxu0
      %755 = vmatprep.mubr.bf16.mxu0 %v707
      %756 = vmatmul.mubr.bf16.gmra.mrb[0].mxu0 %v633
      %v757 = vpop.f32.mrb[0].mxu0
      %v758 = vadd.f32 0.0, %v757
      %v759 = vpop.f32.mrb[0].mxu0
      %v760 = vpop.f32.mrb[0].mxu0
      %v761 = vadd.f32 0.0, %v760
      %v762 = vpop.f32.mrb[0].mxu0
      %763 = vmatprep.mubr.bf16.mxu0 %v710
      %764 = vmatmul.mubr.bf16.gmra.mrb[0].mxu0 %v635
      %v765 = vpop.f32.mrb[0].mxu0
      %v766 = vadd.f32 0.0, %v765
      %v767 = vpop.f32.mrb[0].mxu0
      %v768 = vpop.f32.mrb[0].mxu0
      %v769 = vadd.f32 0.0, %v768
      %v770 = vpop.f32.mrb[0].mxu0
      %771 = vmatprep.mubr.bf16.mxu0 %v713
      %772 = vmatmul.mubr.bf16.gmra.mrb[0].mxu0 %v637
      %v773 = vpop.f32.mrb[0].mxu0
      %v774 = vadd.f32 0.0, %v773
      %v775 = vpop.f32.mrb[0].mxu0
      %v776 = vpop.f32.mrb[0].mxu0
      %v777 = vadd.f32 0.0, %v776
      %v778 = vpop.f32.mrb[0].mxu0
      %779 = vdwg.mxu0
      %v780 = vadd.f32 %v547, %v750
      %v781 = vadd.f32 %v550, %v753
      %v782 = vadd.f32 %v555, %v758
      %v783 = vadd.f32 %v558, %v761
      %v784 = vadd.f32 %v563, %v766
      %v785 = vadd.f32 %v566, %v769
      %v786 = vadd.f32 %v571, %v774
      %v787 = vadd.f32 %v574, %v777
      %s788 = scalar_lea.vmem %s165, 24
      %v789 = vld [vmem:[%s788] sm:$0xff]
      %v790 = vld [vmem:[%s788 + $0x8] sm:$0xff]
      %v791 = vld [vmem:[%s788 + $0x10] sm:$0xff]
      %v792 = vld [vmem:[%s788 + $0x18] sm:$0xff]
      %v793 = vld [vmem:[%s788 + $0x20] sm:$0xff]
      %v794 = vld [vmem:[%s788 + $0x28] sm:$0xff]
      %v795 = vld [vmem:[%s788 + $0x30] sm:$0xff]
      %v796 = vld [vmem:[%s788 + $0x38] sm:$0xff]
      %s797 = scalar_lea.vmem %s1, 240
      %v798 = vld [vmem:[%s797] sm:$0xf]
      %v799 = vld [vmem:[%s797 + $0x4] sm:$0xf]
      %v800 = vld [vmem:[%s797 + $0x8] sm:$0xf]
      %v801 = vld [vmem:[%s797 + $0xc] sm:$0xf]
      %v802 = vld [vmem:[%s797 + $0x10] sm:$0xf]
      %v803 = vld [vmem:[%s797 + $0x14] sm:$0xf]
      %v804 = vld [vmem:[%s797 + $0x18] sm:$0xf]
      %v805 = vld [vmem:[%s797 + $0x1c] sm:$0xf]
      %v806 = vld [vmem:[%s797 + $0x20] sm:$0xf]
      %v807 = vld [vmem:[%s797 + $0x24] sm:$0xf]
      %v808 = vld [vmem:[%s797 + $0x28] sm:$0xf]
      %v809 = vld [vmem:[%s797 + $0x2c] sm:$0xf]
      %v810 = vld [vmem:[%s797 + $0x30] sm:$0xf]
      %v811 = vld [vmem:[%s797 + $0x34] sm:$0xf]
      %v812 = vld [vmem:[%s797 + $0x38] sm:$0xf]
      %v813 = vld [vmem:[%s797 + $0x3c] sm:$0xf]
      %v814 = vld [vmem:[%s797 + $0x40] sm:$0xf]
      %v815 = vld [vmem:[%s797 + $0x44] sm:$0xf]
      %v816 = vld [vmem:[%s797 + $0x48] sm:$0xf]
      %v817 = vld [vmem:[%s797 + $0x4c] sm:$0xf]
      %v826 = vunpack.c.l.b16 %v789
      %v827 = vunpack.c.h.b16 %v789
      %v828 = vunpack.c.l.b16 %v790
      %v829 = vunpack.c.h.b16 %v790
      %v830 = vunpack.c.l.b16 %v791
      %v831 = vunpack.c.h.b16 %v791
      %v832 = vunpack.c.l.b16 %v792
      %v833 = vunpack.c.h.b16 %v792
      %v834 = vunpack.c.l.b16 %v793
      %v835 = vunpack.c.h.b16 %v793
      %v836 = vunpack.c.l.b16 %v794
      %v837 = vunpack.c.h.b16 %v794
      %v838 = vunpack.c.l.b16 %v795
      %v839 = vunpack.c.h.b16 %v795
      %v840 = vunpack.c.l.b16 %v796
      %v841 = vunpack.c.h.b16 %v796
      %v842 = vpack.c.b16 %v828, %v826
      %v843 = vpack.c.b16 %v829, %v827
      %v844 = vpack.c.b16 %v832, %v830
      %v845 = vpack.c.b16 %v833, %v831
      %v846 = vpack.c.b16 %v836, %v834
      %v847 = vpack.c.b16 %v837, %v835
      %v848 = vpack.c.b16 %v840, %v838
      %v849 = vpack.c.b16 %v841, %v839
      %v874 = vunpack.c.l.b16 %v798
      %v875 = vunpack.c.l.b16 %v799
      %v876 = vunpack.c.l.b16 %v800
      %v877 = vunpack.c.l.b16 %v801
      %v878 = vunpack.c.l.b16 %v802
      %v879 = vunpack.c.l.b16 %v803
      %v880 = vunpack.c.l.b16 %v804
      %v881 = vunpack.c.l.b16 %v805
      %v882 = vunpack.c.l.b16 %v806
      %v883 = vunpack.c.l.b16 %v807
      %v884 = vunpack.c.l.b16 %v808
      %v885 = vunpack.c.l.b16 %v809
      %v886 = vunpack.c.l.b16 %v810
      %v887 = vunpack.c.l.b16 %v811
      %v888 = vunpack.c.l.b16 %v812
      %v889 = vunpack.c.l.b16 %v813
      %v890 = vunpack.c.l.b16 %v814
      %v891 = vunpack.c.l.b16 %v815
      %v892 = vunpack.c.l.b16 %v816
      %v893 = vunpack.c.l.b16 %v817
      %v894 = vpack.c.b16 %v875, %v874
      %v895 = vpack.c.b16 %v877, %v876
      %v896 = vpack.c.b16 %v879, %v878
      %v897 = vpack.c.b16 %v881, %v880
      %v898 = vpack.c.b16 %v883, %v882
      %v899 = vpack.c.b16 %v885, %v884
      %v900 = vpack.c.b16 %v887, %v886
      %v901 = vpack.c.b16 %v889, %v888
      %v902 = vpack.c.b16 %v891, %v890
      %v903 = vpack.c.b16 %v893, %v892
      %v915 = vsel %vm326, %v843, 0
      %v918 = vsel %vm326, %v845, 0
      %v921 = vsel %vm326, %v847, 0
      %v924 = vsel %vm326, %v849, 0
      %926 = vmatprep.subr.bf16.mxu0 0
      %927 = vmatpush1.bf16.msra.mxu0 %v894
      %928 = vmatprep.subr.bf16.mxu0 0
      %929 = vmatpush1.bf16.msra.mxu0 %v895
      %930 = vmatprep.subr.bf16.mxu0 0
      %931 = vmatpush1.bf16.msra.mxu0 %v896
      %932 = vmatprep.subr.bf16.mxu0 0
      %933 = vmatpush1.bf16.msra.mxu0 %v897
      %934 = vmatprep.subr.bf16.mxu0 0
      %935 = vmatpush1.bf16.msra.mxu0 %v898
      %936 = vmatprep.subr.bf16.mxu0 0
      %937 = vmatpush1.bf16.msra.mxu0 %v899
      %938 = vmatprep.subr.bf16.mxu0 0
      %939 = vmatpush1.bf16.msra.mxu0 %v900
      %940 = vmatprep.subr.bf16.mxu0 0
      %941 = vmatpush1.bf16.msra.mxu0 %v901
      %942 = vmatprep.subr.bf16.mxu0 0
      %943 = vmatpush1.bf16.msra.mxu0 %v902
      %944 = vmatprep.subr.bf16.mxu0 0
      %945 = vmatpush1.bf16.msra.mxu0 %v903
      %946 = vmatprep.subr.bf16.mxu0 0
      %947 = vmatpush1.bf16.msra.mxu0 0
      %948 = vmatprep.subr.bf16.mxu0 0
      %949 = vmatpush1.bf16.msra.mxu0 0
      %950 = vmatprep.subr.bf16.mxu0 0
      %951 = vmatpush1.bf16.msra.mxu0 0
      %952 = vmatprep.subr.bf16.mxu0 0
      %953 = vmatpush1.bf16.msra.mxu0 0
      %954 = vmatprep.subr.bf16.mxu0 0
      %955 = vmatpush1.bf16.msra.mxu0 0
      %956 = vmatprep.subr.bf16.mxu0 0
      %957 = vmatpush1.bf16.msra.mxu0 0
      %958 = vmatprep.mubr.bf16.mxu0 %v915
      %959 = vmatmul.mubr.bf16.gmra.mrb[0].mxu0 %v842
      %v960 = vpop.f32.mrb[0].mxu0
      %v961 = vadd.f32 0.0, %v960
      %v962 = vpop.f32.mrb[0].mxu0
      %v963 = vpop.f32.mrb[0].mxu0
      %v964 = vadd.f32 0.0, %v963
      %v965 = vpop.f32.mrb[0].mxu0
      %966 = vmatprep.mubr.bf16.mxu0 %v918
      %967 = vmatmul.mubr.bf16.gmra.mrb[0].mxu0 %v844
      %v968 = vpop.f32.mrb[0].mxu0
      %v969 = vadd.f32 0.0, %v968
      %v970 = vpop.f32.mrb[0].mxu0
      %v971 = vpop.f32.mrb[0].mxu0
      %v972 = vadd.f32 0.0, %v971
      %v973 = vpop.f32.mrb[0].mxu0
      %974 = vmatprep.mubr.bf16.mxu0 %v921
      %975 = vmatmul.mubr.bf16.gmra.mrb[0].mxu0 %v846
      %v976 = vpop.f32.mrb[0].mxu0
      %v977 = vadd.f32 0.0, %v976
      %v978 = vpop.f32.mrb[0].mxu0
      %v979 = vpop.f32.mrb[0].mxu0
      %v980 = vadd.f32 0.0, %v979
      %v981 = vpop.f32.mrb[0].mxu0
      %982 = vmatprep.mubr.bf16.mxu0 %v924
      %983 = vmatmul.mubr.bf16.gmra.mrb[0].mxu0 %v848
      %v984 = vpop.f32.mrb[0].mxu0
      %v985 = vadd.f32 0.0, %v984
      %v986 = vpop.f32.mrb[0].mxu0
      %v987 = vpop.f32.mrb[0].mxu0
      %v988 = vadd.f32 0.0, %v987
      %v989 = vpop.f32.mrb[0].mxu0
      %990 = vdwg.mxu0
      %v991 = vadd.f32 %v780, %v961
      %v992 = vadd.f32 %v781, %v964
      %v993 = vadd.f32 %v782, %v969
      %v994 = vadd.f32 %v783, %v972
      %v995 = vadd.f32 %v784, %v977
      %v996 = vadd.f32 %v785, %v980
      %v997 = vadd.f32 %v786, %v985
      %v998 = vadd.f32 %v787, %v988
      %s999 = scalar_lea.vmem %s165, 32
      %v1000 = vld [vmem:[%s999] sm:$0xff]
      %v1001 = vld [vmem:[%s999 + $0x8] sm:$0xff]
      %v1002 = vld [vmem:[%s999 + $0x10] sm:$0xff]
      %v1003 = vld [vmem:[%s999 + $0x18] sm:$0xff]
      %v1004 = vld [vmem:[%s999 + $0x20] sm:$0xff]
      %v1005 = vld [vmem:[%s999 + $0x28] sm:$0xff]
      %v1006 = vld [vmem:[%s999 + $0x30] sm:$0xff]
      %v1007 = vld [vmem:[%s999 + $0x38] sm:$0xff]
      %s1008 = scalar_lea.vmem %s1, 320
      %v1009 = vld [vmem:[%s1008] sm:$0xf]
      %v1010 = vld [vmem:[%s1008 + $0x4] sm:$0xf]
      %v1011 = vld [vmem:[%s1008 + $0x8] sm:$0xf]
      %v1012 = vld [vmem:[%s1008 + $0xc] sm:$0xf]
      %v1013 = vld [vmem:[%s1008 + $0x10] sm:$0xf]
      %v1014 = vld [vmem:[%s1008 + $0x14] sm:$0xf]
      %v1015 = vld [vmem:[%s1008 + $0x18] sm:$0xf]
      %v1016 = vld [vmem:[%s1008 + $0x1c] sm:$0xf]
      %v1017 = vld [vmem:[%s1008 + $0x20] sm:$0xf]
      %v1018 = vld [vmem:[%s1008 + $0x24] sm:$0xf]
      %v1019 = vld [vmem:[%s1008 + $0x28] sm:$0xf]
      %v1020 = vld [vmem:[%s1008 + $0x2c] sm:$0xf]
      %v1021 = vld [vmem:[%s1008 + $0x30] sm:$0xf]
      %v1022 = vld [vmem:[%s1008 + $0x34] sm:$0xf]
      %v1023 = vld [vmem:[%s1008 + $0x38] sm:$0xf]
      %v1024 = vld [vmem:[%s1008 + $0x3c] sm:$0xf]
      %v1025 = vld [vmem:[%s1008 + $0x40] sm:$0xf]
      %v1026 = vld [vmem:[%s1008 + $0x44] sm:$0xf]
      %v1027 = vld [vmem:[%s1008 + $0x48] sm:$0xf]
      %v1028 = vld [vmem:[%s1008 + $0x4c] sm:$0xf]
      %v1037 = vunpack.c.l.b16 %v1000
      %v1038 = vunpack.c.h.b16 %v1000
      %v1039 = vunpack.c.l.b16 %v1001
      %v1040 = vunpack.c.h.b16 %v1001
      %v1041 = vunpack.c.l.b16 %v1002
      %v1042 = vunpack.c.h.b16 %v1002
      %v1043 = vunpack.c.l.b16 %v1003
      %v1044 = vunpack.c.h.b16 %v1003
      %v1045 = vunpack.c.l.b16 %v1004
      %v1046 = vunpack.c.h.b16 %v1004
      %v1047 = vunpack.c.l.b16 %v1005
      %v1048 = vunpack.c.h.b16 %v1005
      %v1049 = vunpack.c.l.b16 %v1006
      %v1050 = vunpack.c.h.b16 %v1006
      %v1051 = vunpack.c.l.b16 %v1007
      %v1052 = vunpack.c.h.b16 %v1007
      %v1053 = vpack.c.b16 %v1039, %v1037
      %v1054 = vpack.c.b16 %v1040, %v1038
      %v1055 = vpack.c.b16 %v1043, %v1041
      %v1056 = vpack.c.b16 %v1044, %v1042
      %v1057 = vpack.c.b16 %v1047, %v1045
      %v1058 = vpack.c.b16 %v1048, %v1046
      %v1059 = vpack.c.b16 %v1051, %v1049
      %v1060 = vpack.c.b16 %v1052, %v1050
      %v1085 = vunpack.c.l.b16 %v1009
      %v1086 = vunpack.c.l.b16 %v1010
      %v1087 = vunpack.c.l.b16 %v1011
      %v1088 = vunpack.c.l.b16 %v1012
      %v1089 = vunpack.c.l.b16 %v1013
      %v1090 = vunpack.c.l.b16 %v1014
      %v1091 = vunpack.c.l.b16 %v1015
      %v1092 = vunpack.c.l.b16 %v1016
      %v1093 = vunpack.c.l.b16 %v1017
      %v1094 = vunpack.c.l.b16 %v1018
      %v1095 = vunpack.c.l.b16 %v1019
      %v1096 = vunpack.c.l.b16 %v1020
      %v1097 = vunpack.c.l.b16 %v1021
      %v1098 = vunpack.c.l.b16 %v1022
      %v1099 = vunpack.c.l.b16 %v1023
      %v1100 = vunpack.c.l.b16 %v1024
      %v1101 = vunpack.c.l.b16 %v1025
      %v1102 = vunpack.c.l.b16 %v1026
      %v1103 = vunpack.c.l.b16 %v1027
      %v1104 = vunpack.c.l.b16 %v1028
      %v1105 = vpack.c.b16 %v1086, %v1085
      %v1106 = vpack.c.b16 %v1088, %v1087
      %v1107 = vpack.c.b16 %v1090, %v1089
      %v1108 = vpack.c.b16 %v1092, %v1091
      %v1109 = vpack.c.b16 %v1094, %v1093
      %v1110 = vpack.c.b16 %v1096, %v1095
      %v1111 = vpack.c.b16 %v1098, %v1097
      %v1112 = vpack.c.b16 %v1100, %v1099
      %v1113 = vpack.c.b16 %v1102, %v1101
      %v1114 = vpack.c.b16 %v1104, %v1103
      %v1126 = vsel %vm326, %v1054, 0
      %v1129 = vsel %vm326, %v1056, 0
      %v1132 = vsel %vm326, %v1058, 0
      %v1135 = vsel %vm326, %v1060, 0
      %1137 = vmatprep.subr.bf16.mxu0 0
      %1138 = vmatpush1.bf16.msra.mxu0 %v1105
      %1139 = vmatprep.subr.bf16.mxu0 0
      %1140 = vmatpush1.bf16.msra.mxu0 %v1106
      %1141 = vmatprep.subr.bf16.mxu0 0
      %1142 = vmatpush1.bf16.msra.mxu0 %v1107
      %1143 = vmatprep.subr.bf16.mxu0 0
      %1144 = vmatpush1.bf16.msra.mxu0 %v1108
      %1145 = vmatprep.subr.bf16.mxu0 0
      %1146 = vmatpush1.bf16.msra.mxu0 %v1109
      %1147 = vmatprep.subr.bf16.mxu0 0
      %1148 = vmatpush1.bf16.msra.mxu0 %v1110
      %1149 = vmatprep.subr.bf16.mxu0 0
      %1150 = vmatpush1.bf16.msra.mxu0 %v1111
      %1151 = vmatprep.subr.bf16.mxu0 0
      %1152 = vmatpush1.bf16.msra.mxu0 %v1112
      %1153 = vmatprep.subr.bf16.mxu0 0
      %1154 = vmatpush1.bf16.msra.mxu0 %v1113
      %1155 = vmatprep.subr.bf16.mxu0 0
      %1156 = vmatpush1.bf16.msra.mxu0 %v1114
      %1157 = vmatprep.subr.bf16.mxu0 0
      %1158 = vmatpush1.bf16.msra.mxu0 0
      %1159 = vmatprep.subr.bf16.mxu0 0
      %1160 = vmatpush1.bf16.msra.mxu0 0
      %1161 = vmatprep.subr.bf16.mxu0 0
      %1162 = vmatpush1.bf16.msra.mxu0 0
      %1163 = vmatprep.subr.bf16.mxu0 0
      %1164 = vmatpush1.bf16.msra.mxu0 0
      %1165 = vmatprep.subr.bf16.mxu0 0
      %1166 = vmatpush1.bf16.msra.mxu0 0
      %1167 = vmatprep.subr.bf16.mxu0 0
      %1168 = vmatpush1.bf16.msra.mxu0 0
      %1169 = vmatprep.mubr.bf16.mxu0 %v1126
      %1170 = vmatmul.mubr.bf16.gmra.mrb[0].mxu0 %v1053
      %v1171 = vpop.f32.mrb[0].mxu0
      %v1172 = vadd.f32 0.0, %v1171
      %v1173 = vpop.f32.mrb[0].mxu0
      %v1174 = vpop.f32.mrb[0].mxu0
      %v1175 = vadd.f32 0.0, %v1174
      %v1176 = vpop.f32.mrb[0].mxu0
      %1177 = vmatprep.mubr.bf16.mxu0 %v1129
      %1178 = vmatmul.mubr.bf16.gmra.mrb[0].mxu0 %v1055
      %v1179 = vpop.f32.mrb[0].mxu0
      %v1180 = vadd.f32 0.0, %v1179
      %v1181 = vpop.f32.mrb[0].mxu0
      %v1182 = vpop.f32.mrb[0].mxu0
      %v1183 = vadd.f32 0.0, %v1182
      %v1184 = vpop.f32.mrb[0].mxu0
      %1185 = vmatprep.mubr.bf16.mxu0 %v1132
      %1186 = vmatmul.mubr.bf16.gmra.mrb[0].mxu0 %v1057
      %v1187 = vpop.f32.mrb[0].mxu0
      %v1188 = vadd.f32 0.0, %v1187
      %v1189 = vpop.f32.mrb[0].mxu0
      %v1190 = vpop.f32.mrb[0].mxu0
      %v1191 = vadd.f32 0.0, %v1190
      %v1192 = vpop.f32.mrb[0].mxu0
      %1193 = vmatprep.mubr.bf16.mxu0 %v1135
      %1194 = vmatmul.mubr.bf16.gmra.mrb[0].mxu0 %v1059
      %v1195 = vpop.f32.mrb[0].mxu0
      %v1196 = vadd.f32 0.0, %v1195
      %v1197 = vpop.f32.mrb[0].mxu0
      %v1198 = vpop.f32.mrb[0].mxu0
      %v1199 = vadd.f32 0.0, %v1198
      %v1200 = vpop.f32.mrb[0].mxu0
      %1201 = vdwg.mxu0
      %v1202 = vadd.f32 %v991, %v1172
      %v1203 = vadd.f32 %v992, %v1175
      %v1204 = vadd.f32 %v993, %v1180
      %v1205 = vadd.f32 %v994, %v1183
      %v1206 = vadd.f32 %v995, %v1188
      %v1207 = vadd.f32 %v996, %v1191
      %v1208 = vadd.f32 %v997, %v1196
      %v1209 = vadd.f32 %v998, %v1199
      %v1210 = vld [vmem:[%s2] sm:$0x1]
      %v1212 = vlaneseq
      %v1213 = vshrl.u32 %v1212, 7
      %v1214 = vsub.s32 0, %v1213
      %v1215 = vrot.slane %v1210, %v1214
      %v1217 = vadd.f32 %v1202, %v1215
      %v1218 = vadd.f32 %v1203, %v1215
      %v1219 = vadd.f32 %v1204, %v1215
      %v1220 = vadd.f32 %v1205, %v1215
      %v1221 = vadd.f32 %v1206, %v1215
      %v1222 = vadd.f32 %v1207, %v1215
      %v1223 = vadd.f32 %v1208, %v1215
      %v1224 = vadd.f32 %v1209, %v1215
      %v1225 = vmax.f32 %v1217, 0.0
      %v1226 = vmax.f32 %v1218, 0.0
      %v1227 = vmax.f32 %v1219, 0.0
      %v1228 = vmax.f32 %v1220, 0.0
      %v1229 = vmax.f32 %v1221, 0.0
      %v1230 = vmax.f32 %v1222, 0.0
      %v1231 = vmax.f32 %v1223, 0.0
      %v1232 = vmax.f32 %v1224, 0.0
      %v1233 = vmax.f32 %v1225, %v1226
      %v1234 = vmax.f32 %v1227, %v1228
      %v1235 = vmax.f32 %v1229, %v1230
      %v1236 = vmax.f32 %v1231, %v1232
      %vm1237 = vcmask 523264
      %1238 = vst.msk [vmem:[#allocation2] sm:$0xff] %vm1237, %v1233
      %1239 = vst.msk [vmem:[#allocation2 + $0x8] sm:$0xff] %vm1237, %v1234
      %1240 = vst.msk [vmem:[#allocation2 + $0x10] sm:$0xff] %vm1237, %v1235
      %1241 = vst.msk [vmem:[#allocation2 + $0x18] sm:$0xff] %vm1237, %v1236
      %v1242 = vld [vmem:[#allocation2] ss:$2 sm:$0xf]
      %s1243 = scalar_lea.vmem [#allocation2], 8
      %v1244 = vld [vmem:[%s1243] ss:$2 sm:$0xf]
      %s1245 = scalar_lea.vmem [#allocation2], 16
      %v1246 = vld [vmem:[%s1245] ss:$2 sm:$0xf]
      %s1247 = scalar_lea.vmem [#allocation2], 24
      %v1248 = vld [vmem:[%s1247] ss:$2 sm:$0xf]
      %s1249 = scalar_lea.vmem [#allocation2], 1
      %v1250 = vld [vmem:[%s1249] ss:$2 sm:$0xf]
      %s1251 = scalar_lea.vmem [#allocation2], 9
      %v1252 = vld [vmem:[%s1251] ss:$2 sm:$0xf]
      %s1253 = scalar_lea.vmem [#allocation2], 17
      %v1254 = vld [vmem:[%s1253] ss:$2 sm:$0xf]
      %s1255 = scalar_lea.vmem [#allocation2], 25
      %v1256 = vld [vmem:[%s1255] ss:$2 sm:$0xf]
      %v1257 = vmax.f32 %v1242, %v1250
      %v1258 = vmax.f32 %v1244, %v1252
      %v1259 = vmax.f32 %v1246, %v1254
      %v1260 = vmax.f32 %v1248, %v1256
      %v1261 = vpack.c.bf16 %v1257, %v1257
      %v1262 = vpack.c.bf16 %v1258, %v1258
      %v1263 = vpack.c.bf16 %v1259, %v1259
      %v1264 = vpack.c.bf16 %v1260, %v1260
      %vm1265 = vcmask 517120
      %1266 = vst.msk [vmem:[%s170] sm:$0x3] %vm1265, %v1261
      %1267 = vst.msk [vmem:[%s170 + $0x2] sm:$0x3] %vm1265, %v1262
      %1268 = vst.msk [vmem:[%s170 + $0x4] sm:$0x3] %vm1265, %v1263
      %1269 = vst.msk [vmem:[%s170 + $0x6] sm:$0x3] %vm1265, %v1264
      %p1270 = scmp.lt.s32.totalorder %s14, 1
      %s1271 = scalar_select %p1270, %s14, 1
      %s1272 = smul.addr %s1271, 4
      %s1273 = smul.addr %s1272, 2
      %s1274 = scalar_lea.vmem %s3, %s1273
      // Predicated region
      $region33: #{complex_cnn_forward.4} parent=31 // pred_check
        %p1275 = pneg %p100
      $region34: #{complex_cnn_forward.4} parent=31 // pred_check_branch
        %1277 = sbr.rel (%p1275) target = $region36
      $region35: #{complex_cnn_forward.4} parent=31 // pred_region
        _
      $region36: #{complex_cnn_forward.4} parent=31 // pred_fallthru
        _
    $region32: #{complex_cnn_forward.4} parent=5 // pred_fallthru
      _
    %p1278 = scmp.le.s32.totalorder 2, %s9
    // Predicated region
    $region37: #{complex_cnn_forward.4} parent=5 // pred_check
      %p1279 = pneg %p1278
    $region38: #{complex_cnn_forward.4} parent=5 // pred_check_branch
      %1281 = sbr.rel (%p1279) target = $region40
    $region39: #{complex_cnn_forward.4} parent=5 // pred_region
      %s1282 = ssub.s32 %s9, 2
      // Predicated region
      $region41: #{complex_cnn_forward.4} parent=39 // pred_check
        %p1283 = pneg %p106
      $region42: #{complex_cnn_forward.4} parent=39 // pred_check_branch
        %1285 = sbr.rel (%p1283) target = $region44
      $region43: #{complex_cnn_forward.4} parent=39 // pred_region
        %p1286 = scmp.lt.s32.totalorder %s15, 1
        %s1287 = scalar_select %p1286, %s15, 1
        %s1288 = smul.addr %s1287, 4
        %s1289 = smul.addr %s1288, 2
        %s1290 = scalar_lea.vmem %s3, %s1289
      $region44: #{complex_cnn_forward.4} parent=39 // pred_fallthru
        _
    $region40: #{complex_cnn_forward.4} parent=5 // pred_fallthru
      _
  $region6: #{complex_cnn_forward.4} parent=0 // loop_footer
    %s13 = sadd.s32 1, %s9
  $region7: #{complex_cnn_forward.4} parent=0 // loop_footer_branch
    %8 = sbr.rel target = $region3
  $region8: #{complex_cnn_forward.4} parent=0 // loop_exit
    _

// kernel: complex_cnn_forward.5
$region0: #{complex_cnn_forward.5}
  #allocation0 [shape = 'u32[]', space=smem, size = 0x4, offset = 0x4, fixed_abs, tag = 'smem constant byte address 0x4 - core index']
  #allocation1 [shape = 'u32[144,128]{1,0:T(1,128)}', space=vmem, size = 0x12000, scoped, tag = 'internal scratch']
  #allocation2 [shape = 'f32[2,1024]{1,0:T(2,128)}', space=vmem, size = 0x2000, scoped, tag = 'scratch operand']
  %s0 = inlined_call_operand.vmem [shape: bf16[2,1024], index: 0, kind: input, shape index: {}]
  %s1 = inlined_call_operand.vmem [shape: bf16[1024,1024], index: 1, kind: input, shape index: {}]
  %s2 = inlined_call_operand.vmem [shape: f32[1,1024], index: 2, kind: input, shape index: {}]
  %s3 = inlined_call_operand.vmem [shape: bf16[1024,128], index: 3, kind: input, shape index: {}]
  %s4 = inlined_call_operand.vmem [shape: f32[1,128], index: 4, kind: input, shape index: {}]
  %s5 = inlined_call_operand.vmem [shape: f32[2,128], index: 5, kind: output, shape index: {}]
  %s6 = sld [smem:[#allocation0]]
  $region61: #{complex_cnn_forward.5} parent=0
    _
  %s8 = ssub.s32 1, %s6
  %s9 = scalar_select 0, %s8, %s6
  loop: start=0, step=1, limit=4
  $region2: #{complex_cnn_forward.5} parent=0 // loop_pre_header
    _
  $region3: #{complex_cnn_forward.5} parent=0 // loop_header
    %s11 = sphi 0, %s15
    %p12 = scmp.ge.s32.totalorder %s11, 4
    %s21 = sphi 0, %s23
    %s24 = sphi 0, %s21
    %s25 = sphi 0, %s24
    %s41 = sphi 0, %s25
    %s47 = sphi 0, %s49
    %s50 = sphi 0, %s47
    %s51 = sphi 0, %s50
    %s67 = sphi 0, %s51
    %s71 = sphi 0, %s71
    %s73 = sphi 0, %s71
    %s74 = sphi 0, %s73
    %s88 = sphi 0, %s74
    %s92 = sphi 0, %s92
    %s94 = sphi 0, %s92
    %s95 = sphi 0, %s94
    %s109 = sphi 0, %s95
    %s113 = sphi 0, %s113
    %s115 = sphi 0, %s113
    %s116 = sphi 0, %s115
    %s130 = sphi 0, %s116
    %s134 = sphi 0, %s134
    %s136 = sphi 0, %s134
    %s137 = sphi 0, %s136
    %s151 = sphi 0, %s137
  $region4: #{complex_cnn_forward.5} parent=0 // loop_header_branch
    %14 = sbr.rel (%p12) target = $region8
  $region5: #{complex_cnn_forward.5} parent=0 // loop_body
    %s16 = ssub.s32 %s11, 1
    %s17 = ssub.s32 %s11, 2
    %s18 = sadd.s32 %s11, 1
    %s19 = ssub.s32 %s11, %s18
    %p20 = scmp.eq.s32.totalorder %s19, 0
    %s22 = sadd.s32 %s21, 1
    %s23 = scalar_select %p20, %s21, %s22
    %p26 = pneg %p20
    %p27 = scmp.eq.s32.totalorder %s11, 1
    %p28 = por %p26, %p27
    %p29 = scmp.ne.s32.totalorder %s21, %s24
    %p30 = scmp.eq.s32.totalorder %s11, 0
    %p31 = por %p29, %p30
    %p32 = scmp.ne.s32.totalorder %s21, %s24
    %p33 = scmp.eq.s32.totalorder %s16, 1
    %p34 = por %p32, %p33
    %p35 = scmp.ne.s32.totalorder %s24, %s25
    %p36 = scmp.eq.s32.totalorder %s16, 0
    %p37 = por %p35, %p36
    %p38 = scmp.ne.s32.totalorder %s24, %s25
    %p39 = scmp.eq.s32.totalorder %s17, 1
    %p40 = por %p38, %p39
    %p42 = scmp.ne.s32.totalorder %s25, %s41
    %p43 = scmp.eq.s32.totalorder %s17, 0
    %p44 = por %p42, %p43
    %s45 = ssub.s32 %s11, %s18
    %p46 = scmp.eq.s32.totalorder %s45, 0
    %s48 = sadd.s32 %s47, 1
    %s49 = scalar_select %p46, %s47, %s48
    %p52 = pneg %p46
    %p53 = scmp.eq.s32.totalorder %s11, 1
    %p54 = por %p52, %p53
    %p55 = scmp.ne.s32.totalorder %s47, %s50
    %p56 = scmp.eq.s32.totalorder %s11, 0
    %p57 = por %p55, %p56
    %p58 = scmp.ne.s32.totalorder %s47, %s50
    %p59 = scmp.eq.s32.totalorder %s16, 1
    %p60 = por %p58, %p59
    %p61 = scmp.ne.s32.totalorder %s50, %s51
    %p62 = scmp.eq.s32.totalorder %s16, 0
    %p63 = por %p61, %p62
    %p64 = scmp.ne.s32.totalorder %s50, %s51
    %p65 = scmp.eq.s32.totalorder %s17, 1
    %p66 = por %p64, %p65
    %p68 = scmp.ne.s32.totalorder %s51, %s67
    %p69 = scmp.eq.s32.totalorder %s17, 0
    %p70 = por %p68, %p69
    %s72 = sadd.s32 %s71, 1
    %p75 = scmp.eq.s32.totalorder %s11, 1
    %p76 = scmp.ne.s32.totalorder %s71, %s73
    %p77 = scmp.eq.s32.totalorder %s11, 0
    %p78 = por %p76, %p77
    %p79 = scmp.ne.s32.totalorder %s71, %s73
    %p80 = scmp.eq.s32.totalorder %s16, 1
    %p81 = por %p79, %p80
    %p82 = scmp.ne.s32.totalorder %s73, %s74
    %p83 = scmp.eq.s32.totalorder %s16, 0
    %p84 = por %p82, %p83
    %p85 = scmp.ne.s32.totalorder %s73, %s74
    %p86 = scmp.eq.s32.totalorder %s17, 1
    %p87 = por %p85, %p86
    %p89 = scmp.ne.s32.totalorder %s74, %s88
    %p90 = scmp.eq.s32.totalorder %s17, 0
    %p91 = por %p89, %p90
    %s93 = sadd.s32 %s92, 1
    %p96 = scmp.eq.s32.totalorder %s11, 1
    %p97 = scmp.ne.s32.totalorder %s92, %s94
    %p98 = scmp.eq.s32.totalorder %s11, 0
    %p99 = por %p97, %p98
    %p100 = scmp.ne.s32.totalorder %s92, %s94
    %p101 = scmp.eq.s32.totalorder %s16, 1
    %p102 = por %p100, %p101
    %p103 = scmp.ne.s32.totalorder %s94, %s95
    %p104 = scmp.eq.s32.totalorder %s16, 0
    %p105 = por %p103, %p104
    %p106 = scmp.ne.s32.totalorder %s94, %s95
    %p107 = scmp.eq.s32.totalorder %s17, 1
    %p108 = por %p106, %p107
    %p110 = scmp.ne.s32.totalorder %s95, %s109
    %p111 = scmp.eq.s32.totalorder %s17, 0
    %p112 = por %p110, %p111
    %s114 = sadd.s32 %s113, 1
    %p117 = scmp.eq.s32.totalorder %s11, 1
    %p118 = scmp.ne.s32.totalorder %s113, %s115
    %p119 = scmp.eq.s32.totalorder %s11, 0
    %p120 = por %p118, %p119
    %p121 = scmp.ne.s32.totalorder %s113, %s115
    %p122 = scmp.eq.s32.totalorder %s16, 1
    %p123 = por %p121, %p122
    %p124 = scmp.ne.s32.totalorder %s115, %s116
    %p125 = scmp.eq.s32.totalorder %s16, 0
    %p126 = por %p124, %p125
    %p127 = scmp.ne.s32.totalorder %s115, %s116
    %p128 = scmp.eq.s32.totalorder %s17, 1
    %p129 = por %p127, %p128
    %p131 = scmp.ne.s32.totalorder %s116, %s130
    %p132 = scmp.eq.s32.totalorder %s17, 0
    %p133 = por %p131, %p132
    %s135 = sadd.s32 %s134, 1
    %p138 = scmp.eq.s32.totalorder %s11, 1
    %p139 = scmp.ne.s32.totalorder %s134, %s136
    %p140 = scmp.eq.s32.totalorder %s11, 0
    %p141 = por %p139, %p140
    %p142 = scmp.ne.s32.totalorder %s134, %s136
    %p143 = scmp.eq.s32.totalorder %s16, 1
    %p144 = por %p142, %p143
    %p145 = scmp.ne.s32.totalorder %s136, %s137
    %p146 = scmp.eq.s32.totalorder %s16, 0
    %p147 = por %p145, %p146
    %p148 = scmp.ne.s32.totalorder %s136, %s137
    %p149 = scmp.eq.s32.totalorder %s17, 1
    %p150 = por %p148, %p149
    %p152 = scmp.ne.s32.totalorder %s137, %s151
    %p153 = scmp.eq.s32.totalorder %s17, 0
    %p154 = por %p152, %p153
    %p155 = scmp.le.s32.totalorder 1, %s11
    %p156 = scmp.lt.s32.totalorder %s11, 3
    %p157 = pnand %p155, %p156
    %p158 = pneg %p157
    // Predicated region
    $region9: #{complex_cnn_forward.5} parent=5 // pred_check
      _
    $region10: #{complex_cnn_forward.5} parent=5 // pred_check_branch
      %160 = sbr.rel (%p157) target = $region12
    $region11: #{complex_cnn_forward.5} parent=5 // pred_region
      %s161 = ssub.s32 %s11, 1
      // Predicated region
      $region13: #{complex_cnn_forward.5} parent=11 // pred_check
        %p162 = pneg %p84
      $region14: #{complex_cnn_forward.5} parent=11 // pred_check_branch
        %164 = sbr.rel (%p162) target = $region16
      $region15: #{complex_cnn_forward.5} parent=11 // pred_region
        _
      $region16: #{complex_cnn_forward.5} parent=11 // pred_fallthru
        _
      // Predicated region
      $region17: #{complex_cnn_forward.5} parent=11 // pred_check
        %p165 = pneg %p105
      $region18: #{complex_cnn_forward.5} parent=11 // pred_check_branch
        %167 = sbr.rel (%p165) target = $region20
      $region19: #{complex_cnn_forward.5} parent=11 // pred_region
        _
      $region20: #{complex_cnn_forward.5} parent=11 // pred_fallthru
        _
      // Predicated region
      $region21: #{complex_cnn_forward.5} parent=11 // pred_check
        %p168 = pneg %p126
      $region22: #{complex_cnn_forward.5} parent=11 // pred_check_branch
        %170 = sbr.rel (%p168) target = $region24
      $region23: #{complex_cnn_forward.5} parent=11 // pred_region
        _
      $region24: #{complex_cnn_forward.5} parent=11 // pred_fallthru
        _
    $region12: #{complex_cnn_forward.5} parent=5 // pred_fallthru
      _
    %p171 = scmp.lt.s32.totalorder %s11, 2
    // Predicated region
    $region25: #{complex_cnn_forward.5} parent=5 // pred_check
      %p172 = pneg %p171
    $region26: #{complex_cnn_forward.5} parent=5 // pred_check_branch
      %174 = sbr.rel (%p172) target = $region28
    $region27: #{complex_cnn_forward.5} parent=5 // pred_region
      // Predicated region
      $region29: #{complex_cnn_forward.5} parent=27 // pred_check
        %p175 = pneg %p31
      $region30: #{complex_cnn_forward.5} parent=27 // pred_check_branch
        %177 = sbr.rel (%p175) target = $region32
      $region31: #{complex_cnn_forward.5} parent=27 // pred_region
        %s178 = smul.u32 4, %s11
        %p179 = scmp.lt.s32.totalorder %s178, 7
        %s180 = scalar_select %p179, %s178, 7
        %s181 = scalar_lea.vmem %s0, %s180
        %s182 = smul.u32 4, %s11
      $region32: #{complex_cnn_forward.5} parent=27 // pred_fallthru
        _
      // Predicated region
      $region33: #{complex_cnn_forward.5} parent=27 // pred_check
        %p183 = pneg %p57
      $region34: #{complex_cnn_forward.5} parent=27 // pred_check_branch
        %185 = sbr.rel (%p183) target = $region36
      $region35: #{complex_cnn_forward.5} parent=27 // pred_region
        %s186 = smul.u32 64, %s11
        %p187 = scmp.lt.s32.totalorder %s186, 127
        %s188 = scalar_select %p187, %s186, 127
        %s189 = smul.addr %s188, 8
        %s190 = smul.addr %s189, 4
        %s191 = scalar_lea.vmem %s1, %s190
        %s192 = smul.u32 64, %s11
      $region36: #{complex_cnn_forward.5} parent=27 // pred_fallthru
        _
    $region28: #{complex_cnn_forward.5} parent=5 // pred_fallthru
      _
    %p193 = scmp.le.s32.totalorder 1, %s11
    %p194 = scmp.lt.s32.totalorder %s11, 3
    %p195 = pnand %p193, %p194
    %p196 = pneg %p195
    // Predicated region
    $region37: #{complex_cnn_forward.5} parent=5 // pred_check
      _
    $region38: #{complex_cnn_forward.5} parent=5 // pred_check_branch
      %198 = sbr.rel (%p195) target = $region40
    $region39: #{complex_cnn_forward.5} parent=5 // pred_region
      %s199 = ssub.s32 %s11, 1
      %s200 = smul.u32 4, %s16
      %p201 = scmp.lt.s32.totalorder %s200, 7
      %s202 = scalar_select %p201, %s200, 7
      %s203 = scalar_lea.vmem %s0, %s202
      %p204 = pneg %p37
      %p205 = pneg %p34
      %s206 = smul.u32 64, %s16
      %p207 = scmp.lt.s32.totalorder %s206, 127
      %s208 = scalar_select %p207, %s206, 127
      %s209 = smul.addr %s208, 8
      %s210 = smul.addr %s209, 4
      %s211 = scalar_lea.vmem %s1, %s210
      %p212 = pneg %p63
      %p213 = pneg %p60
      %p214 = pneg %p84
      %p215 = pneg %p81
      %p216 = pneg %p105
      %p217 = pneg %p102
      %p218 = pneg %p126
      %p219 = pneg %p123
      %p220 = pneg %p147
      %p221 = pneg %p144
      %s222 = smul.u32 4, %s16
      %p223 = scmp.lt.s32.totalorder %s222, 7
      %s224 = scalar_select %p223, %s222, 7
      %s225 = scalar_lea.vmem %s0, %s224
      %s226 = smul.u32 4, %s16
      %s227 = smul.u32 64, %s16
      %p228 = scmp.lt.s32.totalorder %s227, 127
      %s229 = scalar_select %p228, %s227, 127
      %s230 = smul.addr %s229, 8
      %s231 = smul.addr %s230, 4
      %s232 = scalar_lea.vmem %s1, %s231
      %s233 = smul.u32 64, %s16
      %p235 = scmp.eq.s32.totalorder %s16, 0
      // Predicated region
      $region41: #{complex_cnn_forward.5} parent=39 // pred_check
        %p236 = pneg %p235
      $region42: #{complex_cnn_forward.5} parent=39 // pred_check_branch
        %238 = sbr.rel (%p236) target = $region44
      $region43: #{complex_cnn_forward.5} parent=39 // pred_region
        %239 = vst [vmem:[#allocation2] sm:$0xff] 0.0
        %240 = vst [vmem:[#allocation2 + $0x8] sm:$0xff] 0.0
      $region44: #{complex_cnn_forward.5} parent=39 // pred_fallthru
        _
      %v241 = vld [vmem:[#allocation2] sm:$0xff]
      %v242 = vld [vmem:[#allocation2 + $0x8] sm:$0xff]
      %v243 = vld [vmem:[%s225] sm:$0xf]
      %v244 = vld [vmem:[%s232] sm:$0xff]
      %v245 = vld [vmem:[%s232 + $0x8] sm:$0xff]
      %v246 = vld [vmem:[%s232 + $0x10] sm:$0xff]
      %v247 = vld [vmem:[%s232 + $0x18] sm:$0xff]
      %v248 = vld [vmem:[%s232 + $0x20] sm:$0xff]
      %v249 = vld [vmem:[%s232 + $0x28] sm:$0xff]
      %v250 = vld [vmem:[%s232 + $0x30] sm:$0xff]
      %v251 = vld [vmem:[%s232 + $0x38] sm:$0xff]
      %v252 = vld [vmem:[%s232 + $0x40] sm:$0xff]
      %v253 = vld [vmem:[%s232 + $0x48] sm:$0xff]
      %v254 = vld [vmem:[%s232 + $0x50] sm:$0xff]
      %v255 = vld [vmem:[%s232 + $0x58] sm:$0xff]
      %v256 = vld [vmem:[%s232 + $0x60] sm:$0xff]
      %v257 = vld [vmem:[%s232 + $0x68] sm:$0xff]
      %v258 = vld [vmem:[%s232 + $0x70] sm:$0xff]
      %v259 = vld [vmem:[%s232 + $0x78] sm:$0xff]
      %v260 = vld [vmem:[%s232 + $0x80] sm:$0xff]
      %v261 = vld [vmem:[%s232 + $0x88] sm:$0xff]
      %v262 = vld [vmem:[%s232 + $0x90] sm:$0xff]
      %v263 = vld [vmem:[%s232 + $0x98] sm:$0xff]
      %v264 = vld [vmem:[%s232 + $0xa0] sm:$0xff]
      %v265 = vld [vmem:[%s232 + $0xa8] sm:$0xff]
      %v266 = vld [vmem:[%s232 + $0xb0] sm:$0xff]
      %v267 = vld [vmem:[%s232 + $0xb8] sm:$0xff]
      %v268 = vld [vmem:[%s232 + $0xc0] sm:$0xff]
      %v269 = vld [vmem:[%s232 + $0xc8] sm:$0xff]
      %v270 = vld [vmem:[%s232 + $0xd0] sm:$0xff]
      %v271 = vld [vmem:[%s232 + $0xd8] sm:$0xff]
      %v272 = vld [vmem:[%s232 + $0xe0] sm:$0xff]
      %v273 = vld [vmem:[%s232 + $0xe8] sm:$0xff]
      %v274 = vld [vmem:[%s232 + $0xf0] sm:$0xff]
      %v275 = vld [vmem:[%s232 + $0xf8] sm:$0xff]
      %v276 = vld [vmem:[%s232 + $0x100] sm:$0xff]
      %v277 = vld [vmem:[%s232 + $0x108] sm:$0xff]
      %v278 = vld [vmem:[%s232 + $0x110] sm:$0xff]
      %v279 = vld [vmem:[%s232 + $0x118] sm:$0xff]
      %v280 = vld [vmem:[%s232 + $0x120] sm:$0xff]
      %v281 = vld [vmem:[%s232 + $0x128] sm:$0xff]
      %v282 = vld [vmem:[%s232 + $0x130] sm:$0xff]
      %v283 = vld [vmem:[%s232 + $0x138] sm:$0xff]
      %v284 = vld [vmem:[%s232 + $0x140] sm:$0xff]
      %v285 = vld [vmem:[%s232 + $0x148] sm:$0xff]
      %v286 = vld [vmem:[%s232 + $0x150] sm:$0xff]
      %v287 = vld [vmem:[%s232 + $0x158] sm:$0xff]
      %v288 = vld [vmem:[%s232 + $0x160] sm:$0xff]
      %v289 = vld [vmem:[%s232 + $0x168] sm:$0xff]
      %v290 = vld [vmem:[%s232 + $0x170] sm:$0xff]
      %v291 = vld [vmem:[%s232 + $0x178] sm:$0xff]
      %v292 = vld [vmem:[%s232 + $0x180] sm:$0xff]
      %v293 = vld [vmem:[%s232 + $0x188] sm:$0xff]
      %v294 = vld [vmem:[%s232 + $0x190] sm:$0xff]
      %v295 = vld [vmem:[%s232 + $0x198] sm:$0xff]
      %v296 = vld [vmem:[%s232 + $0x1a0] sm:$0xff]
      %v297 = vld [vmem:[%s232 + $0x1a8] sm:$0xff]
      %v298 = vld [vmem:[%s232 + $0x1b0] sm:$0xff]
      %v299 = vld [vmem:[%s232 + $0x1b8] sm:$0xff]
      %v300 = vld [vmem:[%s232 + $0x1c0] sm:$0xff]
      %v301 = vld [vmem:[%s232 + $0x1c8] sm:$0xff]
      %v302 = vld [vmem:[%s232 + $0x1d0] sm:$0xff]
      %v303 = vld [vmem:[%s232 + $0x1d8] sm:$0xff]
      %v304 = vld [vmem:[%s232 + $0x1e0] sm:$0xff]
      %v305 = vld [vmem:[%s232 + $0x1e8] sm:$0xff]
      %v306 = vld [vmem:[%s232 + $0x1f0] sm:$0xff]
      %v307 = vld [vmem:[%s232 + $0x1f8] sm:$0xff]
      %v308 = vld [vmem:[%s232 + $0x200] sm:$0xff]
      %v309 = vld [vmem:[%s232 + $0x208] sm:$0xff]
      %v310 = vld [vmem:[%s232 + $0x210] sm:$0xff]
      %v311 = vld [vmem:[%s232 + $0x218] sm:$0xff]
      %v312 = vld [vmem:[%s232 + $0x220] sm:$0xff]
      %v313 = vld [vmem:[%s232 + $0x228] sm:$0xff]
      %v314 = vld [vmem:[%s232 + $0x230] sm:$0xff]
      %v315 = vld [vmem:[%s232 + $0x238] sm:$0xff]
      %v316 = vld [vmem:[%s232 + $0x240] sm:$0xff]
      %v317 = vld [vmem:[%s232 + $0x248] sm:$0xff]
      %v318 = vld [vmem:[%s232 + $0x250] sm:$0xff]
      %v319 = vld [vmem:[%s232 + $0x258] sm:$0xff]
      %v320 = vld [vmem:[%s232 + $0x260] sm:$0xff]
      %v321 = vld [vmem:[%s232 + $0x268] sm:$0xff]
      %v322 = vld [vmem:[%s232 + $0x270] sm:$0xff]
      %v323 = vld [vmem:[%s232 + $0x278] sm:$0xff]
      %v324 = vld [vmem:[%s232 + $0x280] sm:$0xff]
      %v325 = vld [vmem:[%s232 + $0x288] sm:$0xff]
      %v326 = vld [vmem:[%s232 + $0x290] sm:$0xff]
      %v327 = vld [vmem:[%s232 + $0x298] sm:$0xff]
      %v328 = vld [vmem:[%s232 + $0x2a0] sm:$0xff]
      %v329 = vld [vmem:[%s232 + $0x2a8] sm:$0xff]
      %v330 = vld [vmem:[%s232 + $0x2b0] sm:$0xff]
      %v331 = vld [vmem:[%s232 + $0x2b8] sm:$0xff]
      %v332 = vld [vmem:[%s232 + $0x2c0] sm:$0xff]
      %v333 = vld [vmem:[%s232 + $0x2c8] sm:$0xff]
      %v334 = vld [vmem:[%s232 + $0x2d0] sm:$0xff]
      %v335 = vld [vmem:[%s232 + $0x2d8] sm:$0xff]
      %v336 = vld [vmem:[%s232 + $0x2e0] sm:$0xff]
      %v337 = vld [vmem:[%s232 + $0x2e8] sm:$0xff]
      %v338 = vld [vmem:[%s232 + $0x2f0] sm:$0xff]
      %v339 = vld [vmem:[%s232 + $0x2f8] sm:$0xff]
      %v340 = vld [vmem:[%s232 + $0x300] sm:$0xff]
      %v341 = vld [vmem:[%s232 + $0x308] sm:$0xff]
      %v342 = vld [vmem:[%s232 + $0x310] sm:$0xff]
      %v343 = vld [vmem:[%s232 + $0x318] sm:$0xff]
      %v344 = vld [vmem:[%s232 + $0x320] sm:$0xff]
      %v345 = vld [vmem:[%s232 + $0x328] sm:$0xff]
      %v346 = vld [vmem:[%s232 + $0x330] sm:$0xff]
      %v347 = vld [vmem:[%s232 + $0x338] sm:$0xff]
      %v348 = vld [vmem:[%s232 + $0x340] sm:$0xff]
      %v349 = vld [vmem:[%s232 + $0x348] sm:$0xff]
      %v350 = vld [vmem:[%s232 + $0x350] sm:$0xff]
      %v351 = vld [vmem:[%s232 + $0x358] sm:$0xff]
      %v352 = vld [vmem:[%s232 + $0x360] sm:$0xff]
      %v353 = vld [vmem:[%s232 + $0x368] sm:$0xff]
      %v354 = vld [vmem:[%s232 + $0x370] sm:$0xff]
      %v355 = vld [vmem:[%s232 + $0x378] sm:$0xff]
      %v356 = vld [vmem:[%s232 + $0x380] sm:$0xff]
      %v357 = vld [vmem:[%s232 + $0x388] sm:$0xff]
      %v358 = vld [vmem:[%s232 + $0x390] sm:$0xff]
      %v359 = vld [vmem:[%s232 + $0x398] sm:$0xff]
      %v360 = vld [vmem:[%s232 + $0x3a0] sm:$0xff]
      %v361 = vld [vmem:[%s232 + $0x3a8] sm:$0xff]
      %v362 = vld [vmem:[%s232 + $0x3b0] sm:$0xff]
      %v363 = vld [vmem:[%s232 + $0x3b8] sm:$0xff]
      %v364 = vld [vmem:[%s232 + $0x3c0] sm:$0xff]
      %v365 = vld [vmem:[%s232 + $0x3c8] sm:$0xff]
      %v366 = vld [vmem:[%s232 + $0x3d0] sm:$0xff]
      %v367 = vld [vmem:[%s232 + $0x3d8] sm:$0xff]
      %v368 = vld [vmem:[%s232 + $0x3e0] sm:$0xff]
      %v369 = vld [vmem:[%s232 + $0x3e8] sm:$0xff]
      %v370 = vld [vmem:[%s232 + $0x3f0] sm:$0xff]
      %v371 = vld [vmem:[%s232 + $0x3f8] sm:$0xff]
      %v372 = vld [vmem:[%s232 + $0x400] sm:$0xff]
      %v373 = vld [vmem:[%s232 + $0x408] sm:$0xff]
      %v374 = vld [vmem:[%s232 + $0x410] sm:$0xff]
      %v375 = vld [vmem:[%s232 + $0x418] sm:$0xff]
      %v376 = vld [vmem:[%s232 + $0x420] sm:$0xff]
      %v377 = vld [vmem:[%s232 + $0x428] sm:$0xff]
      %v378 = vld [vmem:[%s232 + $0x430] sm:$0xff]
      %v379 = vld [vmem:[%s232 + $0x438] sm:$0xff]
      %v380 = vld [vmem:[%s232 + $0x440] sm:$0xff]
      %v381 = vld [vmem:[%s232 + $0x448] sm:$0xff]
      %v382 = vld [vmem:[%s232 + $0x450] sm:$0xff]
      %v383 = vld [vmem:[%s232 + $0x458] sm:$0xff]
      %v384 = vld [vmem:[%s232 + $0x460] sm:$0xff]
      %v385 = vld [vmem:[%s232 + $0x468] sm:$0xff]
      %v386 = vld [vmem:[%s232 + $0x470] sm:$0xff]
      %v387 = vld [vmem:[%s232 + $0x478] sm:$0xff]
      %v388 = vld [vmem:[%s232 + $0x480] sm:$0xff]
      %v389 = vld [vmem:[%s232 + $0x488] sm:$0xff]
      %v390 = vld [vmem:[%s232 + $0x490] sm:$0xff]
      %v391 = vld [vmem:[%s232 + $0x498] sm:$0xff]
      %v392 = vld [vmem:[%s232 + $0x4a0] sm:$0xff]
      %v393 = vld [vmem:[%s232 + $0x4a8] sm:$0xff]
      %v394 = vld [vmem:[%s232 + $0x4b0] sm:$0xff]
      %v395 = vld [vmem:[%s232 + $0x4b8] sm:$0xff]
      %v396 = vld [vmem:[%s232 + $0x4c0] sm:$0xff]
      %v397 = vld [vmem:[%s232 + $0x4c8] sm:$0xff]
      %v398 = vld [vmem:[%s232 + $0x4d0] sm:$0xff]
      %v399 = vld [vmem:[%s232 + $0x4d8] sm:$0xff]
      %v400 = vld [vmem:[%s232 + $0x4e0] sm:$0xff]
      %v401 = vld [vmem:[%s232 + $0x4e8] sm:$0xff]
      %v402 = vld [vmem:[%s232 + $0x4f0] sm:$0xff]
      %v403 = vld [vmem:[%s232 + $0x4f8] sm:$0xff]
      %v404 = vld [vmem:[%s232 + $0x500] sm:$0xff]
      %v405 = vld [vmem:[%s232 + $0x508] sm:$0xff]
      %v406 = vld [vmem:[%s232 + $0x510] sm:$0xff]
      %v407 = vld [vmem:[%s232 + $0x518] sm:$0xff]
      %v408 = vld [vmem:[%s232 + $0x520] sm:$0xff]
      %v409 = vld [vmem:[%s232 + $0x528] sm:$0xff]
      %v410 = vld [vmem:[%s232 + $0x530] sm:$0xff]
      %v411 = vld [vmem:[%s232 + $0x538] sm:$0xff]
      %v412 = vld [vmem:[%s232 + $0x540] sm:$0xff]
      %v413 = vld [vmem:[%s232 + $0x548] sm:$0xff]
      %v414 = vld [vmem:[%s232 + $0x550] sm:$0xff]
      %v415 = vld [vmem:[%s232 + $0x558] sm:$0xff]
      %v416 = vld [vmem:[%s232 + $0x560] sm:$0xff]
      %v417 = vld [vmem:[%s232 + $0x568] sm:$0xff]
      %v418 = vld [vmem:[%s232 + $0x570] sm:$0xff]
      %v419 = vld [vmem:[%s232 + $0x578] sm:$0xff]
      %v420 = vld [vmem:[%s232 + $0x580] sm:$0xff]
      %v421 = vld [vmem:[%s232 + $0x588] sm:$0xff]
      %v422 = vld [vmem:[%s232 + $0x590] sm:$0xff]
      %v423 = vld [vmem:[%s232 + $0x598] sm:$0xff]
      %v424 = vld [vmem:[%s232 + $0x5a0] sm:$0xff]
      %v425 = vld [vmem:[%s232 + $0x5a8] sm:$0xff]
      %v426 = vld [vmem:[%s232 + $0x5b0] sm:$0xff]
      %v427 = vld [vmem:[%s232 + $0x5b8] sm:$0xff]
      %v428 = vld [vmem:[%s232 + $0x5c0] sm:$0xff]
      %v429 = vld [vmem:[%s232 + $0x5c8] sm:$0xff]
      %v430 = vld [vmem:[%s232 + $0x5d0] sm:$0xff]
      %v431 = vld [vmem:[%s232 + $0x5d8] sm:$0xff]
      %v432 = vld [vmem:[%s232 + $0x5e0] sm:$0xff]
      %v433 = vld [vmem:[%s232 + $0x5e8] sm:$0xff]
      %v434 = vld [vmem:[%s232 + $0x5f0] sm:$0xff]
      %v435 = vld [vmem:[%s232 + $0x5f8] sm:$0xff]
      %v436 = vld [vmem:[%s232 + $0x600] sm:$0xff]
      %v437 = vld [vmem:[%s232 + $0x608] sm:$0xff]
      %v438 = vld [vmem:[%s232 + $0x610] sm:$0xff]
      %v439 = vld [vmem:[%s232 + $0x618] sm:$0xff]
      %v440 = vld [vmem:[%s232 + $0x620] sm:$0xff]
      %v441 = vld [vmem:[%s232 + $0x628] sm:$0xff]
      %v442 = vld [vmem:[%s232 + $0x630] sm:$0xff]
      %v443 = vld [vmem:[%s232 + $0x638] sm:$0xff]
      %v444 = vld [vmem:[%s232 + $0x640] sm:$0xff]
      %v445 = vld [vmem:[%s232 + $0x648] sm:$0xff]
      %v446 = vld [vmem:[%s232 + $0x650] sm:$0xff]
      %v447 = vld [vmem:[%s232 + $0x658] sm:$0xff]
      %v448 = vld [vmem:[%s232 + $0x660] sm:$0xff]
      %v449 = vld [vmem:[%s232 + $0x668] sm:$0xff]
      %v450 = vld [vmem:[%s232 + $0x670] sm:$0xff]
      %v451 = vld [vmem:[%s232 + $0x678] sm:$0xff]
      %v452 = vld [vmem:[%s232 + $0x680] sm:$0xff]
      %v453 = vld [vmem:[%s232 + $0x688] sm:$0xff]
      %v454 = vld [vmem:[%s232 + $0x690] sm:$0xff]
      %v455 = vld [vmem:[%s232 + $0x698] sm:$0xff]
      %v456 = vld [vmem:[%s232 + $0x6a0] sm:$0xff]
      %v457 = vld [vmem:[%s232 + $0x6a8] sm:$0xff]
      %v458 = vld [vmem:[%s232 + $0x6b0] sm:$0xff]
      %v459 = vld [vmem:[%s232 + $0x6b8] sm:$0xff]
      %v460 = vld [vmem:[%s232 + $0x6c0] sm:$0xff]
      %v461 = vld [vmem:[%s232 + $0x6c8] sm:$0xff]
      %v462 = vld [vmem:[%s232 + $0x6d0] sm:$0xff]
      %v463 = vld [vmem:[%s232 + $0x6d8] sm:$0xff]
      %v464 = vld [vmem:[%s232 + $0x6e0] sm:$0xff]
      %v465 = vld [vmem:[%s232 + $0x6e8] sm:$0xff]
      %v466 = vld [vmem:[%s232 + $0x6f0] sm:$0xff]
      %v467 = vld [vmem:[%s232 + $0x6f8] sm:$0xff]
      %v468 = vld [vmem:[%s232 + $0x700] sm:$0xff]
      %v469 = vld [vmem:[%s232 + $0x708] sm:$0xff]
      %v470 = vld [vmem:[%s232 + $0x710] sm:$0xff]
      %v471 = vld [vmem:[%s232 + $0x718] sm:$0xff]
      %v472 = vld [vmem:[%s232 + $0x720] sm:$0xff]
      %v473 = vld [vmem:[%s232 + $0x728] sm:$0xff]
      %v474 = vld [vmem:[%s232 + $0x730] sm:$0xff]
      %v475 = vld [vmem:[%s232 + $0x738] sm:$0xff]
      %v476 = vld [vmem:[%s232 + $0x740] sm:$0xff]
      %v477 = vld [vmem:[%s232 + $0x748] sm:$0xff]
      %v478 = vld [vmem:[%s232 + $0x750] sm:$0xff]
      %v479 = vld [vmem:[%s232 + $0x758] sm:$0xff]
      %v480 = vld [vmem:[%s232 + $0x760] sm:$0xff]
      %v481 = vld [vmem:[%s232 + $0x768] sm:$0xff]
      %v482 = vld [vmem:[%s232 + $0x770] sm:$0xff]
      %v483 = vld [vmem:[%s232 + $0x778] sm:$0xff]
      %v484 = vld [vmem:[%s232 + $0x780] sm:$0xff]
      %v485 = vld [vmem:[%s232 + $0x788] sm:$0xff]
      %v486 = vld [vmem:[%s232 + $0x790] sm:$0xff]
      %v487 = vld [vmem:[%s232 + $0x798] sm:$0xff]
      %v488 = vld [vmem:[%s232 + $0x7a0] sm:$0xff]
      %v489 = vld [vmem:[%s232 + $0x7a8] sm:$0xff]
      %v490 = vld [vmem:[%s232 + $0x7b0] sm:$0xff]
      %v491 = vld [vmem:[%s232 + $0x7b8] sm:$0xff]
      %v492 = vld [vmem:[%s232 + $0x7c0] sm:$0xff]
      %v493 = vld [vmem:[%s232 + $0x7c8] sm:$0xff]
      %v494 = vld [vmem:[%s232 + $0x7d0] sm:$0xff]
      %v495 = vld [vmem:[%s232 + $0x7d8] sm:$0xff]
      %v496 = vld [vmem:[%s232 + $0x7e0] sm:$0xff]
      %v497 = vld [vmem:[%s232 + $0x7e8] sm:$0xff]
      %v498 = vld [vmem:[%s232 + $0x7f0] sm:$0xff]
      %v499 = vld [vmem:[%s232 + $0x7f8] sm:$0xff]
      %v502 = vunpack.c.l.s4 1966171168
      %v503 = vunpack.c.0.s8 %v502
      %v504 = vlaneseq
      %v505 = vshrl.u32 %v504, 7
      %v506 = vsub.s32 %v503, %v505
      %v507 = vrot.slane %v243, %v506
      %v508 = vcombine.high %v507, %v507
      %v510 = vunpack.c.l.s4 1966171168
      %v511 = vunpack.c.0.s8 %v510
      %v512 = vlaneseq
      %v513 = vshrl.u32 %v512, 7
      %v514 = vsub.s32 %v511, %v513
      %v515 = vrot.slane %v507, %v514
      %v517 = vunpack.c.l.s4 1966171168
      %v518 = vunpack.c.0.s8 %v517
      %v519 = vlaneseq
      %v520 = vshrl.u32 %v519, 7
      %v521 = vsub.s32 %v518, %v520
      %v522 = vrot.slane %v508, %v521
      %v523 = vcombine.high %v515, %v515
      %v524 = vcombine.high %v522, %v522
      %v785 = vunpack.c.l.b16 %v244
      %v786 = vunpack.c.h.b16 %v244
      %v787 = vunpack.c.l.b16 %v245
      %v788 = vunpack.c.h.b16 %v245
      %v789 = vunpack.c.l.b16 %v246
      %v790 = vunpack.c.h.b16 %v246
      %v791 = vunpack.c.l.b16 %v247
      %v792 = vunpack.c.h.b16 %v247
      %v793 = vunpack.c.l.b16 %v248
      %v794 = vunpack.c.h.b16 %v248
      %v795 = vunpack.c.l.b16 %v249
      %v796 = vunpack.c.h.b16 %v249
      %v797 = vunpack.c.l.b16 %v250
      %v798 = vunpack.c.h.b16 %v250
      %v799 = vunpack.c.l.b16 %v251
      %v800 = vunpack.c.h.b16 %v251
      %v801 = vunpack.c.l.b16 %v252
      %v802 = vunpack.c.h.b16 %v252
      %v803 = vunpack.c.l.b16 %v253
      %v804 = vunpack.c.h.b16 %v253
      %v805 = vunpack.c.l.b16 %v254
      %v806 = vunpack.c.h.b16 %v254
      %v807 = vunpack.c.l.b16 %v255
      %v808 = vunpack.c.h.b16 %v255
      %v809 = vunpack.c.l.b16 %v256
      %v810 = vunpack.c.h.b16 %v256
      %v811 = vunpack.c.l.b16 %v257
      %v812 = vunpack.c.h.b16 %v257
      %v813 = vunpack.c.l.b16 %v258
      %v814 = vunpack.c.h.b16 %v258
      %v815 = vunpack.c.l.b16 %v259
      %v816 = vunpack.c.h.b16 %v259
      %v817 = vunpack.c.l.b16 %v260
      %v818 = vunpack.c.h.b16 %v260
      %v819 = vunpack.c.l.b16 %v261
      %v820 = vunpack.c.h.b16 %v261
      %v821 = vunpack.c.l.b16 %v262
      %v822 = vunpack.c.h.b16 %v262
      %v823 = vunpack.c.l.b16 %v263
      %v824 = vunpack.c.h.b16 %v263
      %v825 = vunpack.c.l.b16 %v264
      %v826 = vunpack.c.h.b16 %v264
      %v827 = vunpack.c.l.b16 %v265
      %v828 = vunpack.c.h.b16 %v265
      %v829 = vunpack.c.l.b16 %v266
      %v830 = vunpack.c.h.b16 %v266
      %v831 = vunpack.c.l.b16 %v267
      %v832 = vunpack.c.h.b16 %v267
      %v833 = vunpack.c.l.b16 %v268
      %v834 = vunpack.c.h.b16 %v268
      %v835 = vunpack.c.l.b16 %v269
      %v836 = vunpack.c.h.b16 %v269
      %v837 = vunpack.c.l.b16 %v270
      %v838 = vunpack.c.h.b16 %v270
      %v839 = vunpack.c.l.b16 %v271
      %v840 = vunpack.c.h.b16 %v271
      %v841 = vunpack.c.l.b16 %v272
      %v842 = vunpack.c.h.b16 %v272
      %v843 = vunpack.c.l.b16 %v273
      %v844 = vunpack.c.h.b16 %v273
      %v845 = vunpack.c.l.b16 %v274
      %v846 = vunpack.c.h.b16 %v274
      %v847 = vunpack.c.l.b16 %v275
      %v848 = vunpack.c.h.b16 %v275
      %v849 = vunpack.c.l.b16 %v276
      %v850 = vunpack.c.h.b16 %v276
      %v851 = vunpack.c.l.b16 %v277
      %v852 = vunpack.c.h.b16 %v277
      %v853 = vunpack.c.l.b16 %v278
      %v854 = vunpack.c.h.b16 %v278
      %v855 = vunpack.c.l.b16 %v279
      %v856 = vunpack.c.h.b16 %v279
      %v857 = vunpack.c.l.b16 %v280
      %v858 = vunpack.c.h.b16 %v280
      %v859 = vunpack.c.l.b16 %v281
      %v860 = vunpack.c.h.b16 %v281
      %v861 = vunpack.c.l.b16 %v282
      %v862 = vunpack.c.h.b16 %v282
      %v863 = vunpack.c.l.b16 %v283
      %v864 = vunpack.c.h.b16 %v283
      %v865 = vunpack.c.l.b16 %v284
      %v866 = vunpack.c.h.b16 %v284
      %v867 = vunpack.c.l.b16 %v285
      %v868 = vunpack.c.h.b16 %v285
      %v869 = vunpack.c.l.b16 %v286
      %v870 = vunpack.c.h.b16 %v286
      %v871 = vunpack.c.l.b16 %v287
      %v872 = vunpack.c.h.b16 %v287
      %v873 = vunpack.c.l.b16 %v288
      %v874 = vunpack.c.h.b16 %v288
      %v875 = vunpack.c.l.b16 %v289
      %v876 = vunpack.c.h.b16 %v289
      %v877 = vunpack.c.l.b16 %v290
      %v878 = vunpack.c.h.b16 %v290
      %v879 = vunpack.c.l.b16 %v291
      %v880 = vunpack.c.h.b16 %v291
      %v881 = vunpack.c.l.b16 %v292
      %v882 = vunpack.c.h.b16 %v292
      %v883 = vunpack.c.l.b16 %v293
      %v884 = vunpack.c.h.b16 %v293
      %v885 = vunpack.c.l.b16 %v294
      %v886 = vunpack.c.h.b16 %v294
      %v887 = vunpack.c.l.b16 %v295
      %v888 = vunpack.c.h.b16 %v295
      %v889 = vunpack.c.l.b16 %v296
      %v890 = vunpack.c.h.b16 %v296
      %v891 = vunpack.c.l.b16 %v297
      %v892 = vunpack.c.h.b16 %v297
      %v893 = vunpack.c.l.b16 %v298
      %v894 = vunpack.c.h.b16 %v298
      %v895 = vunpack.c.l.b16 %v299
      %v896 = vunpack.c.h.b16 %v299
      %v897 = vunpack.c.l.b16 %v300
      %v898 = vunpack.c.h.b16 %v300
      %v899 = vunpack.c.l.b16 %v301
      %v900 = vunpack.c.h.b16 %v301
      %v901 = vunpack.c.l.b16 %v302
      %v902 = vunpack.c.h.b16 %v302
      %v903 = vunpack.c.l.b16 %v303
      %v904 = vunpack.c.h.b16 %v303
      %v905 = vunpack.c.l.b16 %v304
      %v906 = vunpack.c.h.b16 %v304
      %v907 = vunpack.c.l.b16 %v305
      %v908 = vunpack.c.h.b16 %v305
      %v909 = vunpack.c.l.b16 %v306
      %v910 = vunpack.c.h.b16 %v306
      %v911 = vunpack.c.l.b16 %v307
      %v912 = vunpack.c.h.b16 %v307
      %v913 = vunpack.c.l.b16 %v308
      %v914 = vunpack.c.h.b16 %v308
      %v915 = vunpack.c.l.b16 %v309
      %v916 = vunpack.c.h.b16 %v309
      %v917 = vunpack.c.l.b16 %v310
      %v918 = vunpack.c.h.b16 %v310
      %v919 = vunpack.c.l.b16 %v311
      %v920 = vunpack.c.h.b16 %v311
      %v921 = vunpack.c.l.b16 %v312
      %v922 = vunpack.c.h.b16 %v312
      %v923 = vunpack.c.l.b16 %v313
      %v924 = vunpack.c.h.b16 %v313
      %v925 = vunpack.c.l.b16 %v314
      %v926 = vunpack.c.h.b16 %v314
      %v927 = vunpack.c.l.b16 %v315
      %v928 = vunpack.c.h.b16 %v315
      %v929 = vunpack.c.l.b16 %v316
      %v930 = vunpack.c.h.b16 %v316
      %v931 = vunpack.c.l.b16 %v317
      %v932 = vunpack.c.h.b16 %v317
      %v933 = vunpack.c.l.b16 %v318
      %v934 = vunpack.c.h.b16 %v318
      %v935 = vunpack.c.l.b16 %v319
      %v936 = vunpack.c.h.b16 %v319
      %v937 = vunpack.c.l.b16 %v320
      %v938 = vunpack.c.h.b16 %v320
      %v939 = vunpack.c.l.b16 %v321
      %v940 = vunpack.c.h.b16 %v321
      %v941 = vunpack.c.l.b16 %v322
      %v942 = vunpack.c.h.b16 %v322
      %v943 = vunpack.c.l.b16 %v323
      %v944 = vunpack.c.h.b16 %v323
      %v945 = vunpack.c.l.b16 %v324
      %v946 = vunpack.c.h.b16 %v324
      %v947 = vunpack.c.l.b16 %v325
      %v948 = vunpack.c.h.b16 %v325
      %v949 = vunpack.c.l.b16 %v326
      %v950 = vunpack.c.h.b16 %v326
      %v951 = vunpack.c.l.b16 %v327
      %v952 = vunpack.c.h.b16 %v327
      %v953 = vunpack.c.l.b16 %v328
      %v954 = vunpack.c.h.b16 %v328
      %v955 = vunpack.c.l.b16 %v329
      %v956 = vunpack.c.h.b16 %v329
      %v957 = vunpack.c.l.b16 %v330
      %v958 = vunpack.c.h.b16 %v330
      %v959 = vunpack.c.l.b16 %v331
      %v960 = vunpack.c.h.b16 %v331
      %v961 = vunpack.c.l.b16 %v332
      %v962 = vunpack.c.h.b16 %v332
      %v963 = vunpack.c.l.b16 %v333
      %v964 = vunpack.c.h.b16 %v333
      %v965 = vunpack.c.l.b16 %v334
      %v966 = vunpack.c.h.b16 %v334
      %v967 = vunpack.c.l.b16 %v335
      %v968 = vunpack.c.h.b16 %v335
      %v969 = vunpack.c.l.b16 %v336
      %v970 = vunpack.c.h.b16 %v336
      %v971 = vunpack.c.l.b16 %v337
      %v972 = vunpack.c.h.b16 %v337
      %v973 = vunpack.c.l.b16 %v338
      %v974 = vunpack.c.h.b16 %v338
      %v975 = vunpack.c.l.b16 %v339
      %v976 = vunpack.c.h.b16 %v339
      %v977 = vunpack.c.l.b16 %v340
      %v978 = vunpack.c.h.b16 %v340
      %v979 = vunpack.c.l.b16 %v341
      %v980 = vunpack.c.h.b16 %v341
      %v981 = vunpack.c.l.b16 %v342
      %v982 = vunpack.c.h.b16 %v342
      %v983 = vunpack.c.l.b16 %v343
      %v984 = vunpack.c.h.b16 %v343
      %v985 = vunpack.c.l.b16 %v344
      %v986 = vunpack.c.h.b16 %v344
      %v987 = vunpack.c.l.b16 %v345
      %v988 = vunpack.c.h.b16 %v345
      %v989 = vunpack.c.l.b16 %v346
      %v990 = vunpack.c.h.b16 %v346
      %v991 = vunpack.c.l.b16 %v347
      %v992 = vunpack.c.h.b16 %v347
      %v993 = vunpack.c.l.b16 %v348
      %v994 = vunpack.c.h.b16 %v348
      %v995 = vunpack.c.l.b16 %v349
      %v996 = vunpack.c.h.b16 %v349
      %v997 = vunpack.c.l.b16 %v350
      %v998 = vunpack.c.h.b16 %v350
      %v999 = vunpack.c.l.b16 %v351
      %v1000 = vunpack.c.h.b16 %v351
      %v1001 = vunpack.c.l.b16 %v352
      %v1002 = vunpack.c.h.b16 %v352
      %v1003 = vunpack.c.l.b16 %v353
      %v1004 = vunpack.c.h.b16 %v353
      %v1005 = vunpack.c.l.b16 %v354
      %v1006 = vunpack.c.h.b16 %v354
      %v1007 = vunpack.c.l.b16 %v355
      %v1008 = vunpack.c.h.b16 %v355
      %v1009 = vunpack.c.l.b16 %v356
      %v1010 = vunpack.c.h.b16 %v356
      %v1011 = vunpack.c.l.b16 %v357
      %v1012 = vunpack.c.h.b16 %v357
      %v1013 = vunpack.c.l.b16 %v358
      %v1014 = vunpack.c.h.b16 %v358
      %v1015 = vunpack.c.l.b16 %v359
      %v1016 = vunpack.c.h.b16 %v359
      %v1017 = vunpack.c.l.b16 %v360
      %v1018 = vunpack.c.h.b16 %v360
      %v1019 = vunpack.c.l.b16 %v361
      %v1020 = vunpack.c.h.b16 %v361
      %v1021 = vunpack.c.l.b16 %v362
      %v1022 = vunpack.c.h.b16 %v362
      %v1023 = vunpack.c.l.b16 %v363
      %v1024 = vunpack.c.h.b16 %v363
      %v1025 = vunpack.c.l.b16 %v364
      %v1026 = vunpack.c.h.b16 %v364
      %v1027 = vunpack.c.l.b16 %v365
      %v1028 = vunpack.c.h.b16 %v365
      %v1029 = vunpack.c.l.b16 %v366
      %v1030 = vunpack.c.h.b16 %v366
      %v1031 = vunpack.c.l.b16 %v367
      %v1032 = vunpack.c.h.b16 %v367
      %v1033 = vunpack.c.l.b16 %v368
      %v1034 = vunpack.c.h.b16 %v368
      %v1035 = vunpack.c.l.b16 %v369
      %v1036 = vunpack.c.h.b16 %v369
      %v1037 = vunpack.c.l.b16 %v370
      %v1038 = vunpack.c.h.b16 %v370
      %v1039 = vunpack.c.l.b16 %v371
      %v1040 = vunpack.c.h.b16 %v371
      %v1041 = vunpack.c.l.b16 %v372
      %v1042 = vunpack.c.h.b16 %v372
      %v1043 = vunpack.c.l.b16 %v373
      %v1044 = vunpack.c.h.b16 %v373
      %v1045 = vunpack.c.l.b16 %v374
      %v1046 = vunpack.c.h.b16 %v374
      %v1047 = vunpack.c.l.b16 %v375
      %v1048 = vunpack.c.h.b16 %v375
      %v1049 = vunpack.c.l.b16 %v376
      %v1050 = vunpack.c.h.b16 %v376
      %v1051 = vunpack.c.l.b16 %v377
      %v1052 = vunpack.c.h.b16 %v377
      %v1053 = vunpack.c.l.b16 %v378
      %v1054 = vunpack.c.h.b16 %v378
      %v1055 = vunpack.c.l.b16 %v379
      %v1056 = vunpack.c.h.b16 %v379
      %v1057 = vunpack.c.l.b16 %v380
      %v1058 = vunpack.c.h.b16 %v380
      %v1059 = vunpack.c.l.b16 %v381
      %v1060 = vunpack.c.h.b16 %v381
      %v1061 = vunpack.c.l.b16 %v382
      %v1062 = vunpack.c.h.b16 %v382
      %v1063 = vunpack.c.l.b16 %v383
      %v1064 = vunpack.c.h.b16 %v383
      %v1065 = vunpack.c.l.b16 %v384
      %v1066 = vunpack.c.h.b16 %v384
      %v1067 = vunpack.c.l.b16 %v385
      %v1068 = vunpack.c.h.b16 %v385
      %v1069 = vunpack.c.l.b16 %v386
      %v1070 = vunpack.c.h.b16 %v386
      %v1071 = vunpack.c.l.b16 %v387
      %v1072 = vunpack.c.h.b16 %v387
      %v1073 = vunpack.c.l.b16 %v388
      %v1074 = vunpack.c.h.b16 %v388
      %v1075 = vunpack.c.l.b16 %v389
      %v1076 = vunpack.c.h.b16 %v389
      %v1077 = vunpack.c.l.b16 %v390
      %v1078 = vunpack.c.h.b16 %v390
      %v1079 = vunpack.c.l.b16 %v391
      %v1080 = vunpack.c.h.b16 %v391
      %v1081 = vunpack.c.l.b16 %v392
      %v1082 = vunpack.c.h.b16 %v392
      %v1083 = vunpack.c.l.b16 %v393
      %v1084 = vunpack.c.h.b16 %v393
      %v1085 = vunpack.c.l.b16 %v394
      %v1086 = vunpack.c.h.b16 %v394
      %v1087 = vunpack.c.l.b16 %v395
      %v1088 = vunpack.c.h.b16 %v395
      %v1089 = vunpack.c.l.b16 %v396
      %v1090 = vunpack.c.h.b16 %v396
      %v1091 = vunpack.c.l.b16 %v397
      %v1092 = vunpack.c.h.b16 %v397
      %v1093 = vunpack.c.l.b16 %v398
      %v1094 = vunpack.c.h.b16 %v398
      %v1095 = vunpack.c.l.b16 %v399
      %v1096 = vunpack.c.h.b16 %v399
      %v1097 = vunpack.c.l.b16 %v400
      %v1098 = vunpack.c.h.b16 %v400
      %v1099 = vunpack.c.l.b16 %v401
      %v1100 = vunpack.c.h.b16 %v401
      %v1101 = vunpack.c.l.b16 %v402
      %v1102 = vunpack.c.h.b16 %v402
      %v1103 = vunpack.c.l.b16 %v403
      %v1104 = vunpack.c.h.b16 %v403
      %v1105 = vunpack.c.l.b16 %v404
      %v1106 = vunpack.c.h.b16 %v404
      %v1107 = vunpack.c.l.b16 %v405
      %v1108 = vunpack.c.h.b16 %v405
      %v1109 = vunpack.c.l.b16 %v406
      %v1110 = vunpack.c.h.b16 %v406
      %v1111 = vunpack.c.l.b16 %v407
      %v1112 = vunpack.c.h.b16 %v407
      %v1113 = vunpack.c.l.b16 %v408
      %v1114 = vunpack.c.h.b16 %v408
      %v1115 = vunpack.c.l.b16 %v409
      %v1116 = vunpack.c.h.b16 %v409
      %v1117 = vunpack.c.l.b16 %v410
      %v1118 = vunpack.c.h.b16 %v410
      %v1119 = vunpack.c.l.b16 %v411
      %v1120 = vunpack.c.h.b16 %v411
      %v1121 = vunpack.c.l.b16 %v412
      %v1122 = vunpack.c.h.b16 %v412
      %v1123 = vunpack.c.l.b16 %v413
      %v1124 = vunpack.c.h.b16 %v413
      %v1125 = vunpack.c.l.b16 %v414
      %v1126 = vunpack.c.h.b16 %v414
      %v1127 = vunpack.c.l.b16 %v415
      %v1128 = vunpack.c.h.b16 %v415
      %v1129 = vunpack.c.l.b16 %v416
      %v1130 = vunpack.c.h.b16 %v416
      %v1131 = vunpack.c.l.b16 %v417
      %v1132 = vunpack.c.h.b16 %v417
      %v1133 = vunpack.c.l.b16 %v418
      %v1134 = vunpack.c.h.b16 %v418
      %v1135 = vunpack.c.l.b16 %v419
      %v1136 = vunpack.c.h.b16 %v419
      %v1137 = vunpack.c.l.b16 %v420
      %v1138 = vunpack.c.h.b16 %v420
      %v1139 = vunpack.c.l.b16 %v421
      %v1140 = vunpack.c.h.b16 %v421
      %v1141 = vunpack.c.l.b16 %v422
      %v1142 = vunpack.c.h.b16 %v422
      %v1143 = vunpack.c.l.b16 %v423
      %v1144 = vunpack.c.h.b16 %v423
      %v1145 = vunpack.c.l.b16 %v424
      %v1146 = vunpack.c.h.b16 %v424
      %v1147 = vunpack.c.l.b16 %v425
      %v1148 = vunpack.c.h.b16 %v425
      %v1149 = vunpack.c.l.b16 %v426
      %v1150 = vunpack.c.h.b16 %v426
      %v1151 = vunpack.c.l.b16 %v427
      %v1152 = vunpack.c.h.b16 %v427
      %v1153 = vunpack.c.l.b16 %v428
      %v1154 = vunpack.c.h.b16 %v428
      %v1155 = vunpack.c.l.b16 %v429
      %v1156 = vunpack.c.h.b16 %v429
      %v1157 = vunpack.c.l.b16 %v430
      %v1158 = vunpack.c.h.b16 %v430
      %v1159 = vunpack.c.l.b16 %v431
      %v1160 = vunpack.c.h.b16 %v431
      %v1161 = vunpack.c.l.b16 %v432
      %v1162 = vunpack.c.h.b16 %v432
      %v1163 = vunpack.c.l.b16 %v433
      %v1164 = vunpack.c.h.b16 %v433
      %v1165 = vunpack.c.l.b16 %v434
      %v1166 = vunpack.c.h.b16 %v434
      %v1167 = vunpack.c.l.b16 %v435
      %v1168 = vunpack.c.h.b16 %v435
      %v1169 = vunpack.c.l.b16 %v436
      %v1170 = vunpack.c.h.b16 %v436
      %v1171 = vunpack.c.l.b16 %v437
      %v1172 = vunpack.c.h.b16 %v437
      %v1173 = vunpack.c.l.b16 %v438
      %v1174 = vunpack.c.h.b16 %v438
      %v1175 = vunpack.c.l.b16 %v439
      %v1176 = vunpack.c.h.b16 %v439
      %v1177 = vunpack.c.l.b16 %v440
      %v1178 = vunpack.c.h.b16 %v440
      %v1179 = vunpack.c.l.b16 %v441
      %v1180 = vunpack.c.h.b16 %v441
      %v1181 = vunpack.c.l.b16 %v442
      %v1182 = vunpack.c.h.b16 %v442
      %v1183 = vunpack.c.l.b16 %v443
      %v1184 = vunpack.c.h.b16 %v443
      %v1185 = vunpack.c.l.b16 %v444
      %v1186 = vunpack.c.h.b16 %v444
      %v1187 = vunpack.c.l.b16 %v445
      %v1188 = vunpack.c.h.b16 %v445
      %v1189 = vunpack.c.l.b16 %v446
      %v1190 = vunpack.c.h.b16 %v446
      %v1191 = vunpack.c.l.b16 %v447
      %v1192 = vunpack.c.h.b16 %v447
      %v1193 = vunpack.c.l.b16 %v448
      %v1194 = vunpack.c.h.b16 %v448
      %v1195 = vunpack.c.l.b16 %v449
      %v1196 = vunpack.c.h.b16 %v449
      %v1197 = vunpack.c.l.b16 %v450
      %v1198 = vunpack.c.h.b16 %v450
      %v1199 = vunpack.c.l.b16 %v451
      %v1200 = vunpack.c.h.b16 %v451
      %v1201 = vunpack.c.l.b16 %v452
      %v1202 = vunpack.c.h.b16 %v452
      %v1203 = vunpack.c.l.b16 %v453
      %v1204 = vunpack.c.h.b16 %v453
      %v1205 = vunpack.c.l.b16 %v454
      %v1206 = vunpack.c.h.b16 %v454
      %v1207 = vunpack.c.l.b16 %v455
      %v1208 = vunpack.c.h.b16 %v455
      %v1209 = vunpack.c.l.b16 %v456
      %v1210 = vunpack.c.h.b16 %v456
      %v1211 = vunpack.c.l.b16 %v457
      %v1212 = vunpack.c.h.b16 %v457
      %v1213 = vunpack.c.l.b16 %v458
      %v1214 = vunpack.c.h.b16 %v458
      %v1215 = vunpack.c.l.b16 %v459
      %v1216 = vunpack.c.h.b16 %v459
      %v1217 = vunpack.c.l.b16 %v460
      %v1218 = vunpack.c.h.b16 %v460
      %v1219 = vunpack.c.l.b16 %v461
      %v1220 = vunpack.c.h.b16 %v461
      %v1221 = vunpack.c.l.b16 %v462
      %v1222 = vunpack.c.h.b16 %v462
      %v1223 = vunpack.c.l.b16 %v463
      %v1224 = vunpack.c.h.b16 %v463
      %v1225 = vunpack.c.l.b16 %v464
      %v1226 = vunpack.c.h.b16 %v464
      %v1227 = vunpack.c.l.b16 %v465
      %v1228 = vunpack.c.h.b16 %v465
      %v1229 = vunpack.c.l.b16 %v466
      %v1230 = vunpack.c.h.b16 %v466
      %v1231 = vunpack.c.l.b16 %v467
      %v1232 = vunpack.c.h.b16 %v467
      %v1233 = vunpack.c.l.b16 %v468
      %v1234 = vunpack.c.h.b16 %v468
      %v1235 = vunpack.c.l.b16 %v469
      %v1236 = vunpack.c.h.b16 %v469
      %v1237 = vunpack.c.l.b16 %v470
      %v1238 = vunpack.c.h.b16 %v470
      %v1239 = vunpack.c.l.b16 %v471
      %v1240 = vunpack.c.h.b16 %v471
      %v1241 = vunpack.c.l.b16 %v472
      %v1242 = vunpack.c.h.b16 %v472
      %v1243 = vunpack.c.l.b16 %v473
      %v1244 = vunpack.c.h.b16 %v473
      %v1245 = vunpack.c.l.b16 %v474
      %v1246 = vunpack.c.h.b16 %v474
      %v1247 = vunpack.c.l.b16 %v475
      %v1248 = vunpack.c.h.b16 %v475
      %v1249 = vunpack.c.l.b16 %v476
      %v1250 = vunpack.c.h.b16 %v476
      %v1251 = vunpack.c.l.b16 %v477
      %v1252 = vunpack.c.h.b16 %v477
      %v1253 = vunpack.c.l.b16 %v478
      %v1254 = vunpack.c.h.b16 %v478
      %v1255 = vunpack.c.l.b16 %v479
      %v1256 = vunpack.c.h.b16 %v479
      %v1257 = vunpack.c.l.b16 %v480
      %v1258 = vunpack.c.h.b16 %v480
      %v1259 = vunpack.c.l.b16 %v481
      %v1260 = vunpack.c.h.b16 %v481
      %v1261 = vunpack.c.l.b16 %v482
      %v1262 = vunpack.c.h.b16 %v482
      %v1263 = vunpack.c.l.b16 %v483
      %v1264 = vunpack.c.h.b16 %v483
      %v1265 = vunpack.c.l.b16 %v484
      %v1266 = vunpack.c.h.b16 %v484
      %v1267 = vunpack.c.l.b16 %v485
      %v1268 = vunpack.c.h.b16 %v485
      %v1269 = vunpack.c.l.b16 %v486
      %v1270 = vunpack.c.h.b16 %v486
      %v1271 = vunpack.c.l.b16 %v487
      %v1272 = vunpack.c.h.b16 %v487
      %v1273 = vunpack.c.l.b16 %v488
      %v1274 = vunpack.c.h.b16 %v488
      %v1275 = vunpack.c.l.b16 %v489
      %v1276 = vunpack.c.h.b16 %v489
      %v1277 = vunpack.c.l.b16 %v490
      %v1278 = vunpack.c.h.b16 %v490
      %v1279 = vunpack.c.l.b16 %v491
      %v1280 = vunpack.c.h.b16 %v491
      %v1281 = vunpack.c.l.b16 %v492
      %v1282 = vunpack.c.h.b16 %v492
      %v1283 = vunpack.c.l.b16 %v493
      %v1284 = vunpack.c.h.b16 %v493
      %v1285 = vunpack.c.l.b16 %v494
      %v1286 = vunpack.c.h.b16 %v494
      %v1287 = vunpack.c.l.b16 %v495
      %v1288 = vunpack.c.h.b16 %v495
      %v1289 = vunpack.c.l.b16 %v496
      %v1290 = vunpack.c.h.b16 %v496
      %v1291 = vunpack.c.l.b16 %v497
      %v1292 = vunpack.c.h.b16 %v497
      %v1293 = vunpack.c.l.b16 %v498
      %v1294 = vunpack.c.h.b16 %v498
      %v1295 = vunpack.c.l.b16 %v499
      %v1296 = vunpack.c.h.b16 %v499
      %v1297 = vpack.c.b16 %v793, %v785
      %v1298 = vpack.c.b16 %v794, %v786
      %v1299 = vpack.c.b16 %v795, %v787
      %v1300 = vpack.c.b16 %v796, %v788
      %v1301 = vpack.c.b16 %v797, %v789
      %v1302 = vpack.c.b16 %v798, %v790
      %v1303 = vpack.c.b16 %v799, %v791
      %v1304 = vpack.c.b16 %v800, %v792
      %v1305 = vpack.c.b16 %v809, %v801
      %v1306 = vpack.c.b16 %v810, %v802
      %v1307 = vpack.c.b16 %v811, %v803
      %v1308 = vpack.c.b16 %v812, %v804
      %v1309 = vpack.c.b16 %v813, %v805
      %v1310 = vpack.c.b16 %v814, %v806
      %v1311 = vpack.c.b16 %v815, %v807
      %v1312 = vpack.c.b16 %v816, %v808
      %v1313 = vpack.c.b16 %v825, %v817
      %v1314 = vpack.c.b16 %v826, %v818
      %v1315 = vpack.c.b16 %v827, %v819
      %v1316 = vpack.c.b16 %v828, %v820
      %v1317 = vpack.c.b16 %v829, %v821
      %v1318 = vpack.c.b16 %v830, %v822
      %v1319 = vpack.c.b16 %v831, %v823
      %v1320 = vpack.c.b16 %v832, %v824
      %v1321 = vpack.c.b16 %v841, %v833
      %v1322 = vpack.c.b16 %v842, %v834
      %v1323 = vpack.c.b16 %v843, %v835
      %v1324 = vpack.c.b16 %v844, %v836
      %v1325 = vpack.c.b16 %v845, %v837
      %v1326 = vpack.c.b16 %v846, %v838
      %v1327 = vpack.c.b16 %v847, %v839
      %v1328 = vpack.c.b16 %v848, %v840
      %v1329 = vpack.c.b16 %v857, %v849
      %v1330 = vpack.c.b16 %v858, %v850
      %v1331 = vpack.c.b16 %v859, %v851
      %v1332 = vpack.c.b16 %v860, %v852
      %v1333 = vpack.c.b16 %v861, %v853
      %v1334 = vpack.c.b16 %v862, %v854
      %v1335 = vpack.c.b16 %v863, %v855
      %v1336 = vpack.c.b16 %v864, %v856
      %v1337 = vpack.c.b16 %v873, %v865
      %v1338 = vpack.c.b16 %v874, %v866
      %v1339 = vpack.c.b16 %v875, %v867
      %v1340 = vpack.c.b16 %v876, %v868
      %v1341 = vpack.c.b16 %v877, %v869
      %v1342 = vpack.c.b16 %v878, %v870
      %v1343 = vpack.c.b16 %v879, %v871
      %v1344 = vpack.c.b16 %v880, %v872
      %v1345 = vpack.c.b16 %v889, %v881
      %v1346 = vpack.c.b16 %v890, %v882
      %v1347 = vpack.c.b16 %v891, %v883
      %v1348 = vpack.c.b16 %v892, %v884
      %v1349 = vpack.c.b16 %v893, %v885
      %v1350 = vpack.c.b16 %v894, %v886
      %v1351 = vpack.c.b16 %v895, %v887
      %v1352 = vpack.c.b16 %v896, %v888
      %v1353 = vpack.c.b16 %v905, %v897
      %v1354 = vpack.c.b16 %v906, %v898
      %v1355 = vpack.c.b16 %v907, %v899
      %v1356 = vpack.c.b16 %v908, %v900
      %v1357 = vpack.c.b16 %v909, %v901
      %v1358 = vpack.c.b16 %v910, %v902
      %v1359 = vpack.c.b16 %v911, %v903
      %v1360 = vpack.c.b16 %v912, %v904
      %v1361 = vpack.c.b16 %v921, %v913
      %v1362 = vpack.c.b16 %v922, %v914
      %v1363 = vpack.c.b16 %v923, %v915
      %v1364 = vpack.c.b16 %v924, %v916
      %v1365 = vpack.c.b16 %v925, %v917
      %v1366 = vpack.c.b16 %v926, %v918
      %v1367 = vpack.c.b16 %v927, %v919
      %v1368 = vpack.c.b16 %v928, %v920
      %v1369 = vpack.c.b16 %v937, %v929
      %v1370 = vpack.c.b16 %v938, %v930
      %v1371 = vpack.c.b16 %v939, %v931
      %v1372 = vpack.c.b16 %v940, %v932
      %v1373 = vpack.c.b16 %v941, %v933
      %v1374 = vpack.c.b16 %v942, %v934
      %v1375 = vpack.c.b16 %v943, %v935
      %v1376 = vpack.c.b16 %v944, %v936
      %v1377 = vpack.c.b16 %v953, %v945
      %v1378 = vpack.c.b16 %v954, %v946
      %v1379 = vpack.c.b16 %v955, %v947
      %v1380 = vpack.c.b16 %v956, %v948
      %v1381 = vpack.c.b16 %v957, %v949
      %v1382 = vpack.c.b16 %v958, %v950
      %v1383 = vpack.c.b16 %v959, %v951
      %v1384 = vpack.c.b16 %v960, %v952
      %v1385 = vpack.c.b16 %v969, %v961
      %v1386 = vpack.c.b16 %v970, %v962
      %v1387 = vpack.c.b16 %v971, %v963
      %v1388 = vpack.c.b16 %v972, %v964
      %v1389 = vpack.c.b16 %v973, %v965
      %v1390 = vpack.c.b16 %v974, %v966
      %v1391 = vpack.c.b16 %v975, %v967
      %v1392 = vpack.c.b16 %v976, %v968
      %v1393 = vpack.c.b16 %v985, %v977
      %v1394 = vpack.c.b16 %v986, %v978
      %v1395 = vpack.c.b16 %v987, %v979
      %v1396 = vpack.c.b16 %v988, %v980
      %v1397 = vpack.c.b16 %v989, %v981
      %v1398 = vpack.c.b16 %v990, %v982
      %v1399 = vpack.c.b16 %v991, %v983
      %v1400 = vpack.c.b16 %v992, %v984
      %v1401 = vpack.c.b16 %v1001, %v993
      %v1402 = vpack.c.b16 %v1002, %v994
      %v1403 = vpack.c.b16 %v1003, %v995
      %v1404 = vpack.c.b16 %v1004, %v996
      %v1405 = vpack.c.b16 %v1005, %v997
      %v1406 = vpack.c.b16 %v1006, %v998
      %v1407 = vpack.c.b16 %v1007, %v999
      %v1408 = vpack.c.b16 %v1008, %v1000
      %v1409 = vpack.c.b16 %v1017, %v1009
      %v1410 = vpack.c.b16 %v1018, %v1010
      %v1411 = vpack.c.b16 %v1019, %v1011
      %v1412 = vpack.c.b16 %v1020, %v1012
      %v1413 = vpack.c.b16 %v1021, %v1013
      %v1414 = vpack.c.b16 %v1022, %v1014
      %v1415 = vpack.c.b16 %v1023, %v1015
      %v1416 = vpack.c.b16 %v1024, %v1016
      %v1417 = vpack.c.b16 %v1033, %v1025
      %v1418 = vpack.c.b16 %v1034, %v1026
      %v1419 = vpack.c.b16 %v1035, %v1027
      %v1420 = vpack.c.b16 %v1036, %v1028
      %v1421 = vpack.c.b16 %v1037, %v1029
      %v1422 = vpack.c.b16 %v1038, %v1030
      %v1423 = vpack.c.b16 %v1039, %v1031
      %v1424 = vpack.c.b16 %v1040, %v1032
      %v1425 = vpack.c.b16 %v1049, %v1041
      %v1426 = vpack.c.b16 %v1050, %v1042
      %v1427 = vpack.c.b16 %v1051, %v1043
      %v1428 = vpack.c.b16 %v1052, %v1044
      %v1429 = vpack.c.b16 %v1053, %v1045
      %v1430 = vpack.c.b16 %v1054, %v1046
      %v1431 = vpack.c.b16 %v1055, %v1047
      %v1432 = vpack.c.b16 %v1056, %v1048
      %v1433 = vpack.c.b16 %v1065, %v1057
      %v1434 = vpack.c.b16 %v1066, %v1058
      %v1435 = vpack.c.b16 %v1067, %v1059
      %v1436 = vpack.c.b16 %v1068, %v1060
      %v1437 = vpack.c.b16 %v1069, %v1061
      %v1438 = vpack.c.b16 %v1070, %v1062
      %v1439 = vpack.c.b16 %v1071, %v1063
      %v1440 = vpack.c.b16 %v1072, %v1064
      %v1441 = vpack.c.b16 %v1081, %v1073
      %v1442 = vpack.c.b16 %v1082, %v1074
      %v1443 = vpack.c.b16 %v1083, %v1075
      %v1444 = vpack.c.b16 %v1084, %v1076
      %v1445 = vpack.c.b16 %v1085, %v1077
      %v1446 = vpack.c.b16 %v1086, %v1078
      %v1447 = vpack.c.b16 %v1087, %v1079
      %v1448 = vpack.c.b16 %v1088, %v1080
      %v1449 = vpack.c.b16 %v1097, %v1089
      %v1450 = vpack.c.b16 %v1098, %v1090
      %v1451 = vpack.c.b16 %v1099, %v1091
      %v1452 = vpack.c.b16 %v1100, %v1092
      %v1453 = vpack.c.b16 %v1101, %v1093
      %v1454 = vpack.c.b16 %v1102, %v1094
      %v1455 = vpack.c.b16 %v1103, %v1095
      %v1456 = vpack.c.b16 %v1104, %v1096
      %v1457 = vpack.c.b16 %v1113, %v1105
      %v1458 = vpack.c.b16 %v1114, %v1106
      %v1459 = vpack.c.b16 %v1115, %v1107
      %v1460 = vpack.c.b16 %v1116, %v1108
      %v1461 = vpack.c.b16 %v1117, %v1109
      %v1462 = vpack.c.b16 %v1118, %v1110
      %v1463 = vpack.c.b16 %v1119, %v1111
      %v1464 = vpack.c.b16 %v1120, %v1112
      %v1465 = vpack.c.b16 %v1129, %v1121
      %v1466 = vpack.c.b16 %v1130, %v1122
      %v1467 = vpack.c.b16 %v1131, %v1123
      %v1468 = vpack.c.b16 %v1132, %v1124
      %v1469 = vpack.c.b16 %v1133, %v1125
      %v1470 = vpack.c.b16 %v1134, %v1126
      %v1471 = vpack.c.b16 %v1135, %v1127
      %v1472 = vpack.c.b16 %v1136, %v1128
      %v1473 = vpack.c.b16 %v1145, %v1137
      %v1474 = vpack.c.b16 %v1146, %v1138
      %v1475 = vpack.c.b16 %v1147, %v1139
      %v1476 = vpack.c.b16 %v1148, %v1140
      %v1477 = vpack.c.b16 %v1149, %v1141
      %v1478 = vpack.c.b16 %v1150, %v1142
      %v1479 = vpack.c.b16 %v1151, %v1143
      %v1480 = vpack.c.b16 %v1152, %v1144
      %v1481 = vpack.c.b16 %v1161, %v1153
      %v1482 = vpack.c.b16 %v1162, %v1154
      %v1483 = vpack.c.b16 %v1163, %v1155
      %v1484 = vpack.c.b16 %v1164, %v1156
      %v1485 = vpack.c.b16 %v1165, %v1157
      %v1486 = vpack.c.b16 %v1166, %v1158
      %v1487 = vpack.c.b16 %v1167, %v1159
      %v1488 = vpack.c.b16 %v1168, %v1160
      %v1489 = vpack.c.b16 %v1177, %v1169
      %v1490 = vpack.c.b16 %v1178, %v1170
      %v1491 = vpack.c.b16 %v1179, %v1171
      %v1492 = vpack.c.b16 %v1180, %v1172
      %v1493 = vpack.c.b16 %v1181, %v1173
      %v1494 = vpack.c.b16 %v1182, %v1174
      %v1495 = vpack.c.b16 %v1183, %v1175
      %v1496 = vpack.c.b16 %v1184, %v1176
      %v1497 = vpack.c.b16 %v1193, %v1185
      %v1498 = vpack.c.b16 %v1194, %v1186
      %v1499 = vpack.c.b16 %v1195, %v1187
      %v1500 = vpack.c.b16 %v1196, %v1188
      %v1501 = vpack.c.b16 %v1197, %v1189
      %v1502 = vpack.c.b16 %v1198, %v1190
      %v1503 = vpack.c.b16 %v1199, %v1191
      %v1504 = vpack.c.b16 %v1200, %v1192
      %v1505 = vpack.c.b16 %v1209, %v1201
      %v1506 = vpack.c.b16 %v1210, %v1202
      %v1507 = vpack.c.b16 %v1211, %v1203
      %v1508 = vpack.c.b16 %v1212, %v1204
      %v1509 = vpack.c.b16 %v1213, %v1205
      %v1510 = vpack.c.b16 %v1214, %v1206
      %v1511 = vpack.c.b16 %v1215, %v1207
      %v1512 = vpack.c.b16 %v1216, %v1208
      %v1513 = vpack.c.b16 %v1225, %v1217
      %v1514 = vpack.c.b16 %v1226, %v1218
      %v1515 = vpack.c.b16 %v1227, %v1219
      %v1516 = vpack.c.b16 %v1228, %v1220
      %v1517 = vpack.c.b16 %v1229, %v1221
      %v1518 = vpack.c.b16 %v1230, %v1222
      %v1519 = vpack.c.b16 %v1231, %v1223
      %v1520 = vpack.c.b16 %v1232, %v1224
      %v1521 = vpack.c.b16 %v1241, %v1233
      %v1522 = vpack.c.b16 %v1242, %v1234
      %v1523 = vpack.c.b16 %v1243, %v1235
      %v1524 = vpack.c.b16 %v1244, %v1236
      %v1525 = vpack.c.b16 %v1245, %v1237
      %v1526 = vpack.c.b16 %v1246, %v1238
      %v1527 = vpack.c.b16 %v1247, %v1239
      %v1528 = vpack.c.b16 %v1248, %v1240
      %v1529 = vpack.c.b16 %v1257, %v1249
      %v1530 = vpack.c.b16 %v1258, %v1250
      %v1531 = vpack.c.b16 %v1259, %v1251
      %v1532 = vpack.c.b16 %v1260, %v1252
      %v1533 = vpack.c.b16 %v1261, %v1253
      %v1534 = vpack.c.b16 %v1262, %v1254
      %v1535 = vpack.c.b16 %v1263, %v1255
      %v1536 = vpack.c.b16 %v1264, %v1256
      %v1537 = vpack.c.b16 %v1273, %v1265
      %v1538 = vpack.c.b16 %v1274, %v1266
      %v1539 = vpack.c.b16 %v1275, %v1267
      %v1540 = vpack.c.b16 %v1276, %v1268
      %v1541 = vpack.c.b16 %v1277, %v1269
      %v1542 = vpack.c.b16 %v1278, %v1270
      %v1543 = vpack.c.b16 %v1279, %v1271
      %v1544 = vpack.c.b16 %v1280, %v1272
      %v1545 = vpack.c.b16 %v1289, %v1281
      %v1546 = vpack.c.b16 %v1290, %v1282
      %v1547 = vpack.c.b16 %v1291, %v1283
      %v1548 = vpack.c.b16 %v1292, %v1284
      %v1549 = vpack.c.b16 %v1293, %v1285
      %v1550 = vpack.c.b16 %v1294, %v1286
      %v1551 = vpack.c.b16 %v1295, %v1287
      %v1552 = vpack.c.b16 %v1296, %v1288
      %1809 = vmatprep.subr.bf16.mxu0 %v1298
      %1810 = vmatpush1.bf16.msra.mxu0 %v1297
      %1811 = vmatprep.subr.bf16.mxu0 %v1306
      %1812 = vmatpush1.bf16.msra.mxu0 %v1305
      %1813 = vmatprep.subr.bf16.mxu0 %v1314
      %1814 = vmatpush1.bf16.msra.mxu0 %v1313
      %1815 = vmatprep.subr.bf16.mxu0 %v1322
      %1816 = vmatpush1.bf16.msra.mxu0 %v1321
      %1817 = vmatprep.subr.bf16.mxu0 %v1330
      %1818 = vmatpush1.bf16.msra.mxu0 %v1329
      %1819 = vmatprep.subr.bf16.mxu0 %v1338
      %1820 = vmatpush1.bf16.msra.mxu0 %v1337
      %1821 = vmatprep.subr.bf16.mxu0 %v1346
      %1822 = vmatpush1.bf16.msra.mxu0 %v1345
      %1823 = vmatprep.subr.bf16.mxu0 %v1354
      %1824 = vmatpush1.bf16.msra.mxu0 %v1353
      %1825 = vmatprep.subr.bf16.mxu0 %v1362
      %1826 = vmatpush1.bf16.msra.mxu0 %v1361
      %1827 = vmatprep.subr.bf16.mxu0 %v1370
      %1828 = vmatpush1.bf16.msra.mxu0 %v1369
      %1829 = vmatprep.subr.bf16.mxu0 %v1378
      %1830 = vmatpush1.bf16.msra.mxu0 %v1377
      %1831 = vmatprep.subr.bf16.mxu0 %v1386
      %1832 = vmatpush1.bf16.msra.mxu0 %v1385
      %1833 = vmatprep.subr.bf16.mxu0 %v1394
      %1834 = vmatpush1.bf16.msra.mxu0 %v1393
      %1835 = vmatprep.subr.bf16.mxu0 %v1402
      %1836 = vmatpush1.bf16.msra.mxu0 %v1401
      %1837 = vmatprep.subr.bf16.mxu0 %v1410
      %1838 = vmatpush1.bf16.msra.mxu0 %v1409
      %1839 = vmatprep.subr.bf16.mxu0 %v1418
      %1840 = vmatpush1.bf16.msra.mxu0 %v1417
      %1841 = vmatprep.mubr.bf16.mxu0 %v522
      %1842 = vmatmul.mubr.bf16.gmra.mrb[0].mxu0 %v515
      %v1843 = vpop.f32.mrb[0].mxu0
      %v1844 = vadd.f32 0.0, %v1843
      %v1845 = vpop.f32.mrb[0].mxu0
      %v1846 = vadd.f32 0.0, %v1845
      %v1847 = vpop.f32.mrb[0].mxu0
      %v1848 = vpop.f32.mrb[0].mxu0
      %1849 = vdwg.mxu0
      %1850 = vmatprep.subr.bf16.mxu0 %v1426
      %1851 = vmatpush1.bf16.msra.mxu0 %v1425
      %1852 = vmatprep.subr.bf16.mxu0 %v1434
      %1853 = vmatpush1.bf16.msra.mxu0 %v1433
      %1854 = vmatprep.subr.bf16.mxu0 %v1442
      %1855 = vmatpush1.bf16.msra.mxu0 %v1441
      %1856 = vmatprep.subr.bf16.mxu0 %v1450
      %1857 = vmatpush1.bf16.msra.mxu0 %v1449
      %1858 = vmatprep.subr.bf16.mxu0 %v1458
      %1859 = vmatpush1.bf16.msra.mxu0 %v1457
      %1860 = vmatprep.subr.bf16.mxu0 %v1466
      %1861 = vmatpush1.bf16.msra.mxu0 %v1465
      %1862 = vmatprep.subr.bf16.mxu0 %v1474
      %1863 = vmatpush1.bf16.msra.mxu0 %v1473
      %1864 = vmatprep.subr.bf16.mxu0 %v1482
      %1865 = vmatpush1.bf16.msra.mxu0 %v1481
      %1866 = vmatprep.subr.bf16.mxu0 %v1490
      %1867 = vmatpush1.bf16.msra.mxu0 %v1489
      %1868 = vmatprep.subr.bf16.mxu0 %v1498
      %1869 = vmatpush1.bf16.msra.mxu0 %v1497
      %1870 = vmatprep.subr.bf16.mxu0 %v1506
      %1871 = vmatpush1.bf16.msra.mxu0 %v1505
      %1872 = vmatprep.subr.bf16.mxu0 %v1514
      %1873 = vmatpush1.bf16.msra.mxu0 %v1513
      %1874 = vmatprep.subr.bf16.mxu0 %v1522
      %1875 = vmatpush1.bf16.msra.mxu0 %v1521
      %1876 = vmatprep.subr.bf16.mxu0 %v1530
      %1877 = vmatpush1.bf16.msra.mxu0 %v1529
      %1878 = vmatprep.subr.bf16.mxu0 %v1538
      %1879 = vmatpush1.bf16.msra.mxu0 %v1537
      %1880 = vmatprep.subr.bf16.mxu0 %v1546
      %1881 = vmatpush1.bf16.msra.mxu0 %v1545
      %1882 = vmatprep.mubr.bf16.mxu0 %v524
      %1883 = vmatmul.mubr.bf16.gmra.mrb[0].mxu0 %v523
      %v1884 = vpop.f32.mrb[0].mxu0
      %v1885 = vadd.f32 %v1844, %v1884
      %v1886 = vpop.f32.mrb[0].mxu0
      %v1887 = vadd.f32 %v1846, %v1886
      %v1888 = vpop.f32.mrb[0].mxu0
      %v1889 = vpop.f32.mrb[0].mxu0
      %1890 = vdwg.mxu0
      %1891 = vmatprep.subr.bf16.mxu0 %v1300
      %1892 = vmatpush1.bf16.msra.mxu0 %v1299
      %1893 = vmatprep.subr.bf16.mxu0 %v1308
      %1894 = vmatpush1.bf16.msra.mxu0 %v1307
      %1895 = vmatprep.subr.bf16.mxu0 %v1316
      %1896 = vmatpush1.bf16.msra.mxu0 %v1315
      %1897 = vmatprep.subr.bf16.mxu0 %v1324
      %1898 = vmatpush1.bf16.msra.mxu0 %v1323
      %1899 = vmatprep.subr.bf16.mxu0 %v1332
      %1900 = vmatpush1.bf16.msra.mxu0 %v1331
      %1901 = vmatprep.subr.bf16.mxu0 %v1340
      %1902 = vmatpush1.bf16.msra.mxu0 %v1339
      %1903 = vmatprep.subr.bf16.mxu0 %v1348
      %1904 = vmatpush1.bf16.msra.mxu0 %v1347
      %1905 = vmatprep.subr.bf16.mxu0 %v1356
      %1906 = vmatpush1.bf16.msra.mxu0 %v1355
      %1907 = vmatprep.subr.bf16.mxu0 %v1364
      %1908 = vmatpush1.bf16.msra.mxu0 %v1363
      %1909 = vmatprep.subr.bf16.mxu0 %v1372
      %1910 = vmatpush1.bf16.msra.mxu0 %v1371
      %1911 = vmatprep.subr.bf16.mxu0 %v1380
      %1912 = vmatpush1.bf16.msra.mxu0 %v1379
      %1913 = vmatprep.subr.bf16.mxu0 %v1388
      %1914 = vmatpush1.bf16.msra.mxu0 %v1387
      %1915 = vmatprep.subr.bf16.mxu0 %v1396
      %1916 = vmatpush1.bf16.msra.mxu0 %v1395
      %1917 = vmatprep.subr.bf16.mxu0 %v1404
      %1918 = vmatpush1.bf16.msra.mxu0 %v1403
      %1919 = vmatprep.subr.bf16.mxu0 %v1412
      %1920 = vmatpush1.bf16.msra.mxu0 %v1411
      %1921 = vmatprep.subr.bf16.mxu0 %v1420
      %1922 = vmatpush1.bf16.msra.mxu0 %v1419
      %1923 = vmatprep.mubr.bf16.mxu0 %v522
      %1924 = vmatmul.mubr.bf16.gmra.mrb[0].mxu0 %v515
      %v1925 = vpop.f32.mrb[0].mxu0
      %v1926 = vadd.f32 0.0, %v1925
      %v1927 = vpop.f32.mrb[0].mxu0
      %v1928 = vadd.f32 0.0, %v1927
      %v1929 = vpop.f32.mrb[0].mxu0
      %v1930 = vpop.f32.mrb[0].mxu0
      %1931 = vdwg.mxu0
      %1932 = vmatprep.subr.bf16.mxu0 %v1428
      %1933 = vmatpush1.bf16.msra.mxu0 %v1427
      %1934 = vmatprep.subr.bf16.mxu0 %v1436
      %1935 = vmatpush1.bf16.msra.mxu0 %v1435
      %1936 = vmatprep.subr.bf16.mxu0 %v1444
      %1937 = vmatpush1.bf16.msra.mxu0 %v1443
      %1938 = vmatprep.subr.bf16.mxu0 %v1452
      %1939 = vmatpush1.bf16.msra.mxu0 %v1451
      %1940 = vmatprep.subr.bf16.mxu0 %v1460
      %1941 = vmatpush1.bf16.msra.mxu0 %v1459
      %1942 = vmatprep.subr.bf16.mxu0 %v1468
      %1943 = vmatpush1.bf16.msra.mxu0 %v1467
      %1944 = vmatprep.subr.bf16.mxu0 %v1476
      %1945 = vmatpush1.bf16.msra.mxu0 %v1475
      %1946 = vmatprep.subr.bf16.mxu0 %v1484
      %1947 = vmatpush1.bf16.msra.mxu0 %v1483
      %1948 = vmatprep.subr.bf16.mxu0 %v1492
      %1949 = vmatpush1.bf16.msra.mxu0 %v1491
      %1950 = vmatprep.subr.bf16.mxu0 %v1500
      %1951 = vmatpush1.bf16.msra.mxu0 %v1499
      %1952 = vmatprep.subr.bf16.mxu0 %v1508
      %1953 = vmatpush1.bf16.msra.mxu0 %v1507
      %1954 = vmatprep.subr.bf16.mxu0 %v1516
      %1955 = vmatpush1.bf16.msra.mxu0 %v1515
      %1956 = vmatprep.subr.bf16.mxu0 %v1524
      %1957 = vmatpush1.bf16.msra.mxu0 %v1523
      %1958 = vmatprep.subr.bf16.mxu0 %v1532
      %1959 = vmatpush1.bf16.msra.mxu0 %v1531
      %1960 = vmatprep.subr.bf16.mxu0 %v1540
      %1961 = vmatpush1.bf16.msra.mxu0 %v1539
      %1962 = vmatprep.subr.bf16.mxu0 %v1548
      %1963 = vmatpush1.bf16.msra.mxu0 %v1547
      %1964 = vmatprep.mubr.bf16.mxu0 %v524
      %1965 = vmatmul.mubr.bf16.gmra.mrb[0].mxu0 %v523
      %v1966 = vpop.f32.mrb[0].mxu0
      %v1967 = vadd.f32 %v1926, %v1966
      %v1968 = vpop.f32.mrb[0].mxu0
      %v1969 = vadd.f32 %v1928, %v1968
      %v1970 = vpop.f32.mrb[0].mxu0
      %v1971 = vpop.f32.mrb[0].mxu0
      %1972 = vdwg.mxu0
      %1973 = vmatprep.subr.bf16.mxu0 %v1302
      %1974 = vmatpush1.bf16.msra.mxu0 %v1301
      %1975 = vmatprep.subr.bf16.mxu0 %v1310
      %1976 = vmatpush1.bf16.msra.mxu0 %v1309
      %1977 = vmatprep.subr.bf16.mxu0 %v1318
      %1978 = vmatpush1.bf16.msra.mxu0 %v1317
      %1979 = vmatprep.subr.bf16.mxu0 %v1326
      %1980 = vmatpush1.bf16.msra.mxu0 %v1325
      %1981 = vmatprep.subr.bf16.mxu0 %v1334
      %1982 = vmatpush1.bf16.msra.mxu0 %v1333
      %1983 = vmatprep.subr.bf16.mxu0 %v1342
      %1984 = vmatpush1.bf16.msra.mxu0 %v1341
      %1985 = vmatprep.subr.bf16.mxu0 %v1350
      %1986 = vmatpush1.bf16.msra.mxu0 %v1349
      %1987 = vmatprep.subr.bf16.mxu0 %v1358
      %1988 = vmatpush1.bf16.msra.mxu0 %v1357
      %1989 = vmatprep.subr.bf16.mxu0 %v1366
      %1990 = vmatpush1.bf16.msra.mxu0 %v1365
      %1991 = vmatprep.subr.bf16.mxu0 %v1374
      %1992 = vmatpush1.bf16.msra.mxu0 %v1373
      %1993 = vmatprep.subr.bf16.mxu0 %v1382
      %1994 = vmatpush1.bf16.msra.mxu0 %v1381
      %1995 = vmatprep.subr.bf16.mxu0 %v1390
      %1996 = vmatpush1.bf16.msra.mxu0 %v1389
      %1997 = vmatprep.subr.bf16.mxu0 %v1398
      %1998 = vmatpush1.bf16.msra.mxu0 %v1397
      %1999 = vmatprep.subr.bf16.mxu0 %v1406
      %2000 = vmatpush1.bf16.msra.mxu0 %v1405
      %2001 = vmatprep.subr.bf16.mxu0 %v1414
      %2002 = vmatpush1.bf16.msra.mxu0 %v1413
      %2003 = vmatprep.subr.bf16.mxu0 %v1422
      %2004 = vmatpush1.bf16.msra.mxu0 %v1421
      %2005 = vmatprep.mubr.bf16.mxu0 %v522
      %2006 = vmatmul.mubr.bf16.gmra.mrb[0].mxu0 %v515
      %v2007 = vpop.f32.mrb[0].mxu0
      %v2008 = vadd.f32 0.0, %v2007
      %v2009 = vpop.f32.mrb[0].mxu0
      %v2010 = vadd.f32 0.0, %v2009
      %v2011 = vpop.f32.mrb[0].mxu0
      %v2012 = vpop.f32.mrb[0].mxu0
      %2013 = vdwg.mxu0
      %2014 = vmatprep.subr.bf16.mxu0 %v1430
      %2015 = vmatpush1.bf16.msra.mxu0 %v1429
      %2016 = vmatprep.subr.bf16.mxu0 %v1438
      %2017 = vmatpush1.bf16.msra.mxu0 %v1437
      %2018 = vmatprep.subr.bf16.mxu0 %v1446
      %2019 = vmatpush1.bf16.msra.mxu0 %v1445
      %2020 = vmatprep.subr.bf16.mxu0 %v1454
      %2021 = vmatpush1.bf16.msra.mxu0 %v1453
      %2022 = vmatprep.subr.bf16.mxu0 %v1462
      %2023 = vmatpush1.bf16.msra.mxu0 %v1461
      %2024 = vmatprep.subr.bf16.mxu0 %v1470
      %2025 = vmatpush1.bf16.msra.mxu0 %v1469
      %2026 = vmatprep.subr.bf16.mxu0 %v1478
      %2027 = vmatpush1.bf16.msra.mxu0 %v1477
      %2028 = vmatprep.subr.bf16.mxu0 %v1486
      %2029 = vmatpush1.bf16.msra.mxu0 %v1485
      %2030 = vmatprep.subr.bf16.mxu0 %v1494
      %2031 = vmatpush1.bf16.msra.mxu0 %v1493
      %2032 = vmatprep.subr.bf16.mxu0 %v1502
      %2033 = vmatpush1.bf16.msra.mxu0 %v1501
      %2034 = vmatprep.subr.bf16.mxu0 %v1510
      %2035 = vmatpush1.bf16.msra.mxu0 %v1509
      %2036 = vmatprep.subr.bf16.mxu0 %v1518
      %2037 = vmatpush1.bf16.msra.mxu0 %v1517
      %2038 = vmatprep.subr.bf16.mxu0 %v1526
      %2039 = vmatpush1.bf16.msra.mxu0 %v1525
      %2040 = vmatprep.subr.bf16.mxu0 %v1534
      %2041 = vmatpush1.bf16.msra.mxu0 %v1533
      %2042 = vmatprep.subr.bf16.mxu0 %v1542
      %2043 = vmatpush1.bf16.msra.mxu0 %v1541
      %2044 = vmatprep.subr.bf16.mxu0 %v1550
      %2045 = vmatpush1.bf16.msra.mxu0 %v1549
      %2046 = vmatprep.mubr.bf16.mxu0 %v524
      %2047 = vmatmul.mubr.bf16.gmra.mrb[0].mxu0 %v523
      %v2048 = vpop.f32.mrb[0].mxu0
      %v2049 = vadd.f32 %v2008, %v2048
      %v2050 = vpop.f32.mrb[0].mxu0
      %v2051 = vadd.f32 %v2010, %v2050
      %v2052 = vpop.f32.mrb[0].mxu0
      %v2053 = vpop.f32.mrb[0].mxu0
      %2054 = vdwg.mxu0
      %2055 = vmatprep.subr.bf16.mxu0 %v1304
      %2056 = vmatpush1.bf16.msra.mxu0 %v1303
      %2057 = vmatprep.subr.bf16.mxu0 %v1312
      %2058 = vmatpush1.bf16.msra.mxu0 %v1311
      %2059 = vmatprep.subr.bf16.mxu0 %v1320
      %2060 = vmatpush1.bf16.msra.mxu0 %v1319
      %2061 = vmatprep.subr.bf16.mxu0 %v1328
      %2062 = vmatpush1.bf16.msra.mxu0 %v1327
      %2063 = vmatprep.subr.bf16.mxu0 %v1336
      %2064 = vmatpush1.bf16.msra.mxu0 %v1335
      %2065 = vmatprep.subr.bf16.mxu0 %v1344
      %2066 = vmatpush1.bf16.msra.mxu0 %v1343
      %2067 = vmatprep.subr.bf16.mxu0 %v1352
      %2068 = vmatpush1.bf16.msra.mxu0 %v1351
      %2069 = vmatprep.subr.bf16.mxu0 %v1360
      %2070 = vmatpush1.bf16.msra.mxu0 %v1359
      %2071 = vmatprep.subr.bf16.mxu0 %v1368
      %2072 = vmatpush1.bf16.msra.mxu0 %v1367
      %2073 = vmatprep.subr.bf16.mxu0 %v1376
      %2074 = vmatpush1.bf16.msra.mxu0 %v1375
      %2075 = vmatprep.subr.bf16.mxu0 %v1384
      %2076 = vmatpush1.bf16.msra.mxu0 %v1383
      %2077 = vmatprep.subr.bf16.mxu0 %v1392
      %2078 = vmatpush1.bf16.msra.mxu0 %v1391
      %2079 = vmatprep.subr.bf16.mxu0 %v1400
      %2080 = vmatpush1.bf16.msra.mxu0 %v1399
      %2081 = vmatprep.subr.bf16.mxu0 %v1408
      %2082 = vmatpush1.bf16.msra.mxu0 %v1407
      %2083 = vmatprep.subr.bf16.mxu0 %v1416
      %2084 = vmatpush1.bf16.msra.mxu0 %v1415
      %2085 = vmatprep.subr.bf16.mxu0 %v1424
      %2086 = vmatpush1.bf16.msra.mxu0 %v1423
      %2087 = vmatprep.mubr.bf16.mxu0 %v522
      %2088 = vmatmul.mubr.bf16.gmra.mrb[0].mxu0 %v515
      %v2089 = vpop.f32.mrb[0].mxu0
      %v2090 = vadd.f32 0.0, %v2089
      %v2091 = vpop.f32.mrb[0].mxu0
      %v2092 = vadd.f32 0.0, %v2091
      %v2093 = vpop.f32.mrb[0].mxu0
      %v2094 = vpop.f32.mrb[0].mxu0
      %2095 = vdwg.mxu0
      %2096 = vmatprep.subr.bf16.mxu0 %v1432
      %2097 = vmatpush1.bf16.msra.mxu0 %v1431
      %2098 = vmatprep.subr.bf16.mxu0 %v1440
      %2099 = vmatpush1.bf16.msra.mxu0 %v1439
      %2100 = vmatprep.subr.bf16.mxu0 %v1448
      %2101 = vmatpush1.bf16.msra.mxu0 %v1447
      %2102 = vmatprep.subr.bf16.mxu0 %v1456
      %2103 = vmatpush1.bf16.msra.mxu0 %v1455
      %2104 = vmatprep.subr.bf16.mxu0 %v1464
      %2105 = vmatpush1.bf16.msra.mxu0 %v1463
      %2106 = vmatprep.subr.bf16.mxu0 %v1472
      %2107 = vmatpush1.bf16.msra.mxu0 %v1471
      %2108 = vmatprep.subr.bf16.mxu0 %v1480
      %2109 = vmatpush1.bf16.msra.mxu0 %v1479
      %2110 = vmatprep.subr.bf16.mxu0 %v1488
      %2111 = vmatpush1.bf16.msra.mxu0 %v1487
      %2112 = vmatprep.subr.bf16.mxu0 %v1496
      %2113 = vmatpush1.bf16.msra.mxu0 %v1495
      %2114 = vmatprep.subr.bf16.mxu0 %v1504
      %2115 = vmatpush1.bf16.msra.mxu0 %v1503
      %2116 = vmatprep.subr.bf16.mxu0 %v1512
      %2117 = vmatpush1.bf16.msra.mxu0 %v1511
      %2118 = vmatprep.subr.bf16.mxu0 %v1520
      %2119 = vmatpush1.bf16.msra.mxu0 %v1519
      %2120 = vmatprep.subr.bf16.mxu0 %v1528
      %2121 = vmatpush1.bf16.msra.mxu0 %v1527
      %2122 = vmatprep.subr.bf16.mxu0 %v1536
      %2123 = vmatpush1.bf16.msra.mxu0 %v1535
      %2124 = vmatprep.subr.bf16.mxu0 %v1544
      %2125 = vmatpush1.bf16.msra.mxu0 %v1543
      %2126 = vmatprep.subr.bf16.mxu0 %v1552
      %2127 = vmatpush1.bf16.msra.mxu0 %v1551
      %2128 = vmatprep.mubr.bf16.mxu0 %v524
      %2129 = vmatmul.mubr.bf16.gmra.mrb[0].mxu0 %v523
      %v2130 = vpop.f32.mrb[0].mxu0
      %v2131 = vadd.f32 %v2090, %v2130
      %v2132 = vpop.f32.mrb[0].mxu0
      %v2133 = vadd.f32 %v2092, %v2132
      %v2134 = vpop.f32.mrb[0].mxu0
      %v2135 = vpop.f32.mrb[0].mxu0
      %2136 = vdwg.mxu0
      %v2145 = vcombine.low %v1885, %v1887
      %v2146 = vcombine.low %v1967, %v1969
      %v2148 = vunpack.c.l.s4 1983009808
      %v2149 = vunpack.c.0.s8 %v2148
      %v2150 = vlaneseq
      %v2151 = vshrl.u32 %v2150, 7
      %v2152 = vsub.s32 %v2149, %v2151
      %v2153 = vrot.slane %v2145, %v2152
      %v2155 = vunpack.c.l.s4 1983009808
      %v2156 = vunpack.c.0.s8 %v2155
      %v2157 = vlaneseq
      %v2158 = vshrl.u32 %v2157, 7
      %v2159 = vsub.s32 %v2156, %v2158
      %v2160 = vrot.slane %v2146, %v2159
      %v2161 = vcombine.low %v2153, %v2160
      %v2162 = vcombine.low %v2049, %v2051
      %v2163 = vcombine.low %v2131, %v2133
      %v2165 = vunpack.c.l.s4 1983009808
      %v2166 = vunpack.c.0.s8 %v2165
      %v2167 = vlaneseq
      %v2168 = vshrl.u32 %v2167, 7
      %v2169 = vsub.s32 %v2166, %v2168
      %v2170 = vrot.slane %v2162, %v2169
      %v2172 = vunpack.c.l.s4 1983009808
      %v2173 = vunpack.c.0.s8 %v2172
      %v2174 = vlaneseq
      %v2175 = vshrl.u32 %v2174, 7
      %v2176 = vsub.s32 %v2173, %v2175
      %v2177 = vrot.slane %v2163, %v2176
      %v2178 = vcombine.low %v2170, %v2177
      %v2181 = vadd.f32 %v241, %v2161
      %v2182 = vadd.f32 %v242, %v2178
      %2183 = vst [vmem:[#allocation2] sm:$0xff] %v2181
      %2184 = vst [vmem:[#allocation2 + $0x8] sm:$0xff] %v2182
      %p2185 = scmp.eq.s32.totalorder %s16, 1
      // Predicated region
      $region45: #{complex_cnn_forward.5} parent=39 // pred_check
        %p2186 = pneg %p2185
      $region46: #{complex_cnn_forward.5} parent=39 // pred_check_branch
        %2188 = sbr.rel (%p2186) target = $region48
      $region47: #{complex_cnn_forward.5} parent=39 // pred_region
        %v2189 = vld [vmem:[#allocation2] sm:$0xff]
        %v2190 = vld [vmem:[#allocation2 + $0x8] sm:$0xff]
        %v2191 = vld [vmem:[%s2] sm:$0xff]
        %v2193 = vlaneseq
        %v2194 = vshrl.u32 %v2193, 7
        %v2195 = vsub.s32 0, %v2194
        %v2196 = vrot.slane %v2191, %v2195
        %v2197 = vlaneseq
        %v2198 = vshrl.u32 %v2197, 7
        %v2199 = vsub.s32 1, %v2198
        %v2200 = vrot.slane %v2191, %v2199
        %v2201 = vlaneseq
        %v2202 = vshrl.u32 %v2201, 7
        %v2203 = vsub.s32 2, %v2202
        %v2204 = vrot.slane %v2191, %v2203
        %v2205 = vlaneseq
        %v2206 = vshrl.u32 %v2205, 7
        %v2207 = vsub.s32 3, %v2206
        %v2208 = vrot.slane %v2191, %v2207
        %v2209 = vlaneseq
        %v2210 = vshrl.u32 %v2209, 7
        %v2211 = vsub.s32 4, %v2210
        %v2212 = vrot.slane %v2191, %v2211
        %v2213 = vlaneseq
        %v2214 = vshrl.u32 %v2213, 7
        %v2215 = vsub.s32 5, %v2214
        %v2216 = vrot.slane %v2191, %v2215
        %v2217 = vlaneseq
        %v2218 = vshrl.u32 %v2217, 7
        %v2219 = vsub.s32 6, %v2218
        %v2220 = vrot.slane %v2191, %v2219
        %v2221 = vlaneseq
        %v2222 = vshrl.u32 %v2221, 7
        %v2223 = vsub.s32 7, %v2222
        %v2224 = vrot.slane %v2191, %v2223
        %v2225 = vcombine.low %v2196, %v2200
        %v2226 = vcombine.low %v2204, %v2208
        %v2228 = vunpack.c.l.s4 1983009808
        %v2229 = vunpack.c.0.s8 %v2228
        %v2230 = vlaneseq
        %v2231 = vshrl.u32 %v2230, 7
        %v2232 = vsub.s32 %v2229, %v2231
        %v2233 = vrot.slane %v2225, %v2232
        %v2235 = vunpack.c.l.s4 1983009808
        %v2236 = vunpack.c.0.s8 %v2235
        %v2237 = vlaneseq
        %v2238 = vshrl.u32 %v2237, 7
        %v2239 = vsub.s32 %v2236, %v2238
        %v2240 = vrot.slane %v2226, %v2239
        %v2241 = vcombine.low %v2233, %v2240
        %v2242 = vcombine.low %v2212, %v2216
        %v2243 = vcombine.low %v2220, %v2224
        %v2245 = vunpack.c.l.s4 1983009808
        %v2246 = vunpack.c.0.s8 %v2245
        %v2247 = vlaneseq
        %v2248 = vshrl.u32 %v2247, 7
        %v2249 = vsub.s32 %v2246, %v2248
        %v2250 = vrot.slane %v2242, %v2249
        %v2252 = vunpack.c.l.s4 1983009808
        %v2253 = vunpack.c.0.s8 %v2252
        %v2254 = vlaneseq
        %v2255 = vshrl.u32 %v2254, 7
        %v2256 = vsub.s32 %v2253, %v2255
        %v2257 = vrot.slane %v2243, %v2256
        %v2258 = vcombine.low %v2250, %v2257
        %v2261 = vadd.f32 %v2189, %v2241
        %v2262 = vadd.f32 %v2190, %v2258
        %v2263 = vmax.f32 %v2261, 0.0
        %v2264 = vmax.f32 %v2262, 0.0
        %v2267 = vcombine.high %v2263, %v2263
        %v2269 = vunpack.c.l.s4 1983009808
        %v2270 = vunpack.c.0.s8 %v2269
        %v2271 = vlaneseq
        %v2272 = vshrl.u32 %v2271, 7
        %v2273 = vsub.s32 %v2270, %v2272
        %v2274 = vrot.slane %v2263, %v2273
        %v2276 = vunpack.c.l.s4 1983009808
        %v2277 = vunpack.c.0.s8 %v2276
        %v2278 = vlaneseq
        %v2279 = vshrl.u32 %v2278, 7
        %v2280 = vsub.s32 %v2277, %v2279
        %v2281 = vrot.slane %v2267, %v2280
        %v2282 = vcombine.high %v2274, %v2274
        %v2283 = vcombine.high %v2281, %v2281
        %v2284 = vcombine.high %v2264, %v2264
        %v2286 = vunpack.c.l.s4 1983009808
        %v2287 = vunpack.c.0.s8 %v2286
        %v2288 = vlaneseq
        %v2289 = vshrl.u32 %v2288, 7
        %v2290 = vsub.s32 %v2287, %v2289
        %v2291 = vrot.slane %v2264, %v2290
        %v2293 = vunpack.c.l.s4 1983009808
        %v2294 = vunpack.c.0.s8 %v2293
        %v2295 = vlaneseq
        %v2296 = vshrl.u32 %v2295, 7
        %v2297 = vsub.s32 %v2294, %v2296
        %v2298 = vrot.slane %v2284, %v2297
        %v2299 = vcombine.high %v2291, %v2291
        %v2300 = vcombine.high %v2298, %v2298
        %v2309 = vpack.c.bf16 %v2274, %v2274
        %v2310 = vpack.c.bf16 %v2282, %v2282
        %v2311 = vpack.c.bf16 %v2281, %v2281
        %v2312 = vpack.c.bf16 %v2283, %v2283
        %v2313 = vpack.c.bf16 %v2291, %v2291
        %v2314 = vpack.c.bf16 %v2299, %v2299
        %v2315 = vpack.c.bf16 %v2298, %v2298
        %v2316 = vpack.c.bf16 %v2300, %v2300
        %v2317 = vld [vmem:[%s3] sm:$0xf]
        %v2318 = vld [vmem:[%s3 + $0x4] sm:$0xf]
        %v2319 = vld [vmem:[%s3 + $0x8] sm:$0xf]
        %v2320 = vld [vmem:[%s3 + $0xc] sm:$0xf]
        %v2321 = vld [vmem:[%s3 + $0x10] sm:$0xf]
        %v2322 = vld [vmem:[%s3 + $0x14] sm:$0xf]
        %v2323 = vld [vmem:[%s3 + $0x18] sm:$0xf]
        %v2324 = vld [vmem:[%s3 + $0x1c] sm:$0xf]
        %v2325 = vld [vmem:[%s3 + $0x20] sm:$0xf]
        %v2326 = vld [vmem:[%s3 + $0x24] sm:$0xf]
        %v2327 = vld [vmem:[%s3 + $0x28] sm:$0xf]
        %v2328 = vld [vmem:[%s3 + $0x2c] sm:$0xf]
        %v2329 = vld [vmem:[%s3 + $0x30] sm:$0xf]
        %v2330 = vld [vmem:[%s3 + $0x34] sm:$0xf]
        %v2331 = vld [vmem:[%s3 + $0x38] sm:$0xf]
        %v2332 = vld [vmem:[%s3 + $0x3c] sm:$0xf]
        %v2333 = vld [vmem:[%s3 + $0x40] sm:$0xf]
        %v2334 = vld [vmem:[%s3 + $0x44] sm:$0xf]
        %v2335 = vld [vmem:[%s3 + $0x48] sm:$0xf]
        %v2336 = vld [vmem:[%s3 + $0x4c] sm:$0xf]
        %v2337 = vld [vmem:[%s3 + $0x50] sm:$0xf]
        %v2338 = vld [vmem:[%s3 + $0x54] sm:$0xf]
        %v2339 = vld [vmem:[%s3 + $0x58] sm:$0xf]
        %v2340 = vld [vmem:[%s3 + $0x5c] sm:$0xf]
        %v2341 = vld [vmem:[%s3 + $0x60] sm:$0xf]
        %v2342 = vld [vmem:[%s3 + $0x64] sm:$0xf]
        %v2343 = vld [vmem:[%s3 + $0x68] sm:$0xf]
        %v2344 = vld [vmem:[%s3 + $0x6c] sm:$0xf]
        %v2345 = vld [vmem:[%s3 + $0x70] sm:$0xf]
        %v2346 = vld [vmem:[%s3 + $0x74] sm:$0xf]
        %v2347 = vld [vmem:[%s3 + $0x78] sm:$0xf]
        %v2348 = vld [vmem:[%s3 + $0x7c] sm:$0xf]
        %v2349 = vld [vmem:[%s3 + $0x80] sm:$0xf]
        %v2350 = vld [vmem:[%s3 + $0x84] sm:$0xf]
        %v2351 = vld [vmem:[%s3 + $0x88] sm:$0xf]
        %v2352 = vld [vmem:[%s3 + $0x8c] sm:$0xf]
        %v2353 = vld [vmem:[%s3 + $0x90] sm:$0xf]
        %v2354 = vld [vmem:[%s3 + $0x94] sm:$0xf]
        %v2355 = vld [vmem:[%s3 + $0x98] sm:$0xf]
        %v2356 = vld [vmem:[%s3 + $0x9c] sm:$0xf]
        %v2357 = vld [vmem:[%s3 + $0xa0] sm:$0xf]
        %v2358 = vld [vmem:[%s3 + $0xa4] sm:$0xf]
        %v2359 = vld [vmem:[%s3 + $0xa8] sm:$0xf]
        %v2360 = vld [vmem:[%s3 + $0xac] sm:$0xf]
        %v2361 = vld [vmem:[%s3 + $0xb0] sm:$0xf]
        %v2362 = vld [vmem:[%s3 + $0xb4] sm:$0xf]
        %v2363 = vld [vmem:[%s3 + $0xb8] sm:$0xf]
        %v2364 = vld [vmem:[%s3 + $0xbc] sm:$0xf]
        %v2365 = vld [vmem:[%s3 + $0xc0] sm:$0xf]
        %v2366 = vld [vmem:[%s3 + $0xc4] sm:$0xf]
        %v2367 = vld [vmem:[%s3 + $0xc8] sm:$0xf]
        %v2368 = vld [vmem:[%s3 + $0xcc] sm:$0xf]
        %v2369 = vld [vmem:[%s3 + $0xd0] sm:$0xf]
        %v2370 = vld [vmem:[%s3 + $0xd4] sm:$0xf]
        %v2371 = vld [vmem:[%s3 + $0xd8] sm:$0xf]
        %v2372 = vld [vmem:[%s3 + $0xdc] sm:$0xf]
        %v2373 = vld [vmem:[%s3 + $0xe0] sm:$0xf]
        %v2374 = vld [vmem:[%s3 + $0xe4] sm:$0xf]
        %v2375 = vld [vmem:[%s3 + $0xe8] sm:$0xf]
        %v2376 = vld [vmem:[%s3 + $0xec] sm:$0xf]
        %v2377 = vld [vmem:[%s3 + $0xf0] sm:$0xf]
        %v2378 = vld [vmem:[%s3 + $0xf4] sm:$0xf]
        %v2379 = vld [vmem:[%s3 + $0xf8] sm:$0xf]
        %v2380 = vld [vmem:[%s3 + $0xfc] sm:$0xf]
        %v2381 = vld [vmem:[%s3 + $0x100] sm:$0xf]
        %v2382 = vld [vmem:[%s3 + $0x104] sm:$0xf]
        %v2383 = vld [vmem:[%s3 + $0x108] sm:$0xf]
        %v2384 = vld [vmem:[%s3 + $0x10c] sm:$0xf]
        %v2385 = vld [vmem:[%s3 + $0x110] sm:$0xf]
        %v2386 = vld [vmem:[%s3 + $0x114] sm:$0xf]
        %v2387 = vld [vmem:[%s3 + $0x118] sm:$0xf]
        %v2388 = vld [vmem:[%s3 + $0x11c] sm:$0xf]
        %v2389 = vld [vmem:[%s3 + $0x120] sm:$0xf]
        %v2390 = vld [vmem:[%s3 + $0x124] sm:$0xf]
        %v2391 = vld [vmem:[%s3 + $0x128] sm:$0xf]
        %v2392 = vld [vmem:[%s3 + $0x12c] sm:$0xf]
        %v2393 = vld [vmem:[%s3 + $0x130] sm:$0xf]
        %v2394 = vld [vmem:[%s3 + $0x134] sm:$0xf]
        %v2395 = vld [vmem:[%s3 + $0x138] sm:$0xf]
        %v2396 = vld [vmem:[%s3 + $0x13c] sm:$0xf]
        %v2397 = vld [vmem:[%s3 + $0x140] sm:$0xf]
        %v2398 = vld [vmem:[%s3 + $0x144] sm:$0xf]
        %v2399 = vld [vmem:[%s3 + $0x148] sm:$0xf]
        %v2400 = vld [vmem:[%s3 + $0x14c] sm:$0xf]
        %v2401 = vld [vmem:[%s3 + $0x150] sm:$0xf]
        %v2402 = vld [vmem:[%s3 + $0x154] sm:$0xf]
        %v2403 = vld [vmem:[%s3 + $0x158] sm:$0xf]
        %v2404 = vld [vmem:[%s3 + $0x15c] sm:$0xf]
        %v2405 = vld [vmem:[%s3 + $0x160] sm:$0xf]
        %v2406 = vld [vmem:[%s3 + $0x164] sm:$0xf]
        %v2407 = vld [vmem:[%s3 + $0x168] sm:$0xf]
        %v2408 = vld [vmem:[%s3 + $0x16c] sm:$0xf]
        %v2409 = vld [vmem:[%s3 + $0x170] sm:$0xf]
        %v2410 = vld [vmem:[%s3 + $0x174] sm:$0xf]
        %v2411 = vld [vmem:[%s3 + $0x178] sm:$0xf]
        %v2412 = vld [vmem:[%s3 + $0x17c] sm:$0xf]
        %v2413 = vld [vmem:[%s3 + $0x180] sm:$0xf]
        %v2414 = vld [vmem:[%s3 + $0x184] sm:$0xf]
        %v2415 = vld [vmem:[%s3 + $0x188] sm:$0xf]
        %v2416 = vld [vmem:[%s3 + $0x18c] sm:$0xf]
        %v2417 = vld [vmem:[%s3 + $0x190] sm:$0xf]
        %v2418 = vld [vmem:[%s3 + $0x194] sm:$0xf]
        %v2419 = vld [vmem:[%s3 + $0x198] sm:$0xf]
        %v2420 = vld [vmem:[%s3 + $0x19c] sm:$0xf]
        %v2421 = vld [vmem:[%s3 + $0x1a0] sm:$0xf]
        %v2422 = vld [vmem:[%s3 + $0x1a4] sm:$0xf]
        %v2423 = vld [vmem:[%s3 + $0x1a8] sm:$0xf]
        %v2424 = vld [vmem:[%s3 + $0x1ac] sm:$0xf]
        %v2425 = vld [vmem:[%s3 + $0x1b0] sm:$0xf]
        %v2426 = vld [vmem:[%s3 + $0x1b4] sm:$0xf]
        %v2427 = vld [vmem:[%s3 + $0x1b8] sm:$0xf]
        %v2428 = vld [vmem:[%s3 + $0x1bc] sm:$0xf]
        %v2429 = vld [vmem:[%s3 + $0x1c0] sm:$0xf]
        %v2430 = vld [vmem:[%s3 + $0x1c4] sm:$0xf]
        %v2431 = vld [vmem:[%s3 + $0x1c8] sm:$0xf]
        %v2432 = vld [vmem:[%s3 + $0x1cc] sm:$0xf]
        %v2433 = vld [vmem:[%s3 + $0x1d0] sm:$0xf]
        %v2434 = vld [vmem:[%s3 + $0x1d4] sm:$0xf]
        %v2435 = vld [vmem:[%s3 + $0x1d8] sm:$0xf]
        %v2436 = vld [vmem:[%s3 + $0x1dc] sm:$0xf]
        %v2437 = vld [vmem:[%s3 + $0x1e0] sm:$0xf]
        %v2438 = vld [vmem:[%s3 + $0x1e4] sm:$0xf]
        %v2439 = vld [vmem:[%s3 + $0x1e8] sm:$0xf]
        %v2440 = vld [vmem:[%s3 + $0x1ec] sm:$0xf]
        %v2441 = vld [vmem:[%s3 + $0x1f0] sm:$0xf]
        %v2442 = vld [vmem:[%s3 + $0x1f4] sm:$0xf]
        %v2443 = vld [vmem:[%s3 + $0x1f8] sm:$0xf]
        %v2444 = vld [vmem:[%s3 + $0x1fc] sm:$0xf]
        %v2445 = vld [vmem:[%s4] sm:$0x1]
        %v2447 = vlaneseq
        %v2448 = vshrl.u32 %v2447, 7
        %v2449 = vsub.s32 0, %v2448
        %v2450 = vrot.slane %v2445, %v2449
        %v2580 = vunpack.c.l.b16 %v2317
        %v2581 = vunpack.c.l.b16 %v2318
        %v2582 = vunpack.c.l.b16 %v2319
        %v2583 = vunpack.c.l.b16 %v2320
        %v2584 = vunpack.c.l.b16 %v2321
        %v2585 = vunpack.c.l.b16 %v2322
        %v2586 = vunpack.c.l.b16 %v2323
        %v2587 = vunpack.c.l.b16 %v2324
        %v2588 = vunpack.c.l.b16 %v2325
        %v2589 = vunpack.c.l.b16 %v2326
        %v2590 = vunpack.c.l.b16 %v2327
        %v2591 = vunpack.c.l.b16 %v2328
        %v2592 = vunpack.c.l.b16 %v2329
        %v2593 = vunpack.c.l.b16 %v2330
        %v2594 = vunpack.c.l.b16 %v2331
        %v2595 = vunpack.c.l.b16 %v2332
        %v2596 = vunpack.c.l.b16 %v2333
        %v2597 = vunpack.c.l.b16 %v2334
        %v2598 = vunpack.c.l.b16 %v2335
        %v2599 = vunpack.c.l.b16 %v2336
        %v2600 = vunpack.c.l.b16 %v2337
        %v2601 = vunpack.c.l.b16 %v2338
        %v2602 = vunpack.c.l.b16 %v2339
        %v2603 = vunpack.c.l.b16 %v2340
        %v2604 = vunpack.c.l.b16 %v2341
        %v2605 = vunpack.c.l.b16 %v2342
        %v2606 = vunpack.c.l.b16 %v2343
        %v2607 = vunpack.c.l.b16 %v2344
        %v2608 = vunpack.c.l.b16 %v2345
        %v2609 = vunpack.c.l.b16 %v2346
        %v2610 = vunpack.c.l.b16 %v2347
        %v2611 = vunpack.c.l.b16 %v2348
        %v2612 = vunpack.c.l.b16 %v2349
        %v2613 = vunpack.c.l.b16 %v2350
        %v2614 = vunpack.c.l.b16 %v2351
        %v2615 = vunpack.c.l.b16 %v2352
        %v2616 = vunpack.c.l.b16 %v2353
        %v2617 = vunpack.c.l.b16 %v2354
        %v2618 = vunpack.c.l.b16 %v2355
        %v2619 = vunpack.c.l.b16 %v2356
        %v2620 = vunpack.c.l.b16 %v2357
        %v2621 = vunpack.c.l.b16 %v2358
        %v2622 = vunpack.c.l.b16 %v2359
        %v2623 = vunpack.c.l.b16 %v2360
        %v2624 = vunpack.c.l.b16 %v2361
        %v2625 = vunpack.c.l.b16 %v2362
        %v2626 = vunpack.c.l.b16 %v2363
        %v2627 = vunpack.c.l.b16 %v2364
        %v2628 = vunpack.c.l.b16 %v2365
        %v2629 = vunpack.c.l.b16 %v2366
        %v2630 = vunpack.c.l.b16 %v2367
        %v2631 = vunpack.c.l.b16 %v2368
        %v2632 = vunpack.c.l.b16 %v2369
        %v2633 = vunpack.c.l.b16 %v2370
        %v2634 = vunpack.c.l.b16 %v2371
        %v2635 = vunpack.c.l.b16 %v2372
        %v2636 = vunpack.c.l.b16 %v2373
        %v2637 = vunpack.c.l.b16 %v2374
        %v2638 = vunpack.c.l.b16 %v2375
        %v2639 = vunpack.c.l.b16 %v2376
        %v2640 = vunpack.c.l.b16 %v2377
        %v2641 = vunpack.c.l.b16 %v2378
        %v2642 = vunpack.c.l.b16 %v2379
        %v2643 = vunpack.c.l.b16 %v2380
        %v2644 = vunpack.c.l.b16 %v2381
        %v2645 = vunpack.c.l.b16 %v2382
        %v2646 = vunpack.c.l.b16 %v2383
        %v2647 = vunpack.c.l.b16 %v2384
        %v2648 = vunpack.c.l.b16 %v2385
        %v2649 = vunpack.c.l.b16 %v2386
        %v2650 = vunpack.c.l.b16 %v2387
        %v2651 = vunpack.c.l.b16 %v2388
        %v2652 = vunpack.c.l.b16 %v2389
        %v2653 = vunpack.c.l.b16 %v2390
        %v2654 = vunpack.c.l.b16 %v2391
        %v2655 = vunpack.c.l.b16 %v2392
        %v2656 = vunpack.c.l.b16 %v2393
        %v2657 = vunpack.c.l.b16 %v2394
        %v2658 = vunpack.c.l.b16 %v2395
        %v2659 = vunpack.c.l.b16 %v2396
        %v2660 = vunpack.c.l.b16 %v2397
        %v2661 = vunpack.c.l.b16 %v2398
        %v2662 = vunpack.c.l.b16 %v2399
        %v2663 = vunpack.c.l.b16 %v2400
        %v2664 = vunpack.c.l.b16 %v2401
        %v2665 = vunpack.c.l.b16 %v2402
        %v2666 = vunpack.c.l.b16 %v2403
        %v2667 = vunpack.c.l.b16 %v2404
        %v2668 = vunpack.c.l.b16 %v2405
        %v2669 = vunpack.c.l.b16 %v2406
        %v2670 = vunpack.c.l.b16 %v2407
        %v2671 = vunpack.c.l.b16 %v2408
        %v2672 = vunpack.c.l.b16 %v2409
        %v2673 = vunpack.c.l.b16 %v2410
        %v2674 = vunpack.c.l.b16 %v2411
        %v2675 = vunpack.c.l.b16 %v2412
        %v2676 = vunpack.c.l.b16 %v2413
        %v2677 = vunpack.c.l.b16 %v2414
        %v2678 = vunpack.c.l.b16 %v2415
        %v2679 = vunpack.c.l.b16 %v2416
        %v2680 = vunpack.c.l.b16 %v2417
        %v2681 = vunpack.c.l.b16 %v2418
        %v2682 = vunpack.c.l.b16 %v2419
        %v2683 = vunpack.c.l.b16 %v2420
        %v2684 = vunpack.c.l.b16 %v2421
        %v2685 = vunpack.c.l.b16 %v2422
        %v2686 = vunpack.c.l.b16 %v2423
        %v2687 = vunpack.c.l.b16 %v2424
        %v2688 = vunpack.c.l.b16 %v2425
        %v2689 = vunpack.c.l.b16 %v2426
        %v2690 = vunpack.c.l.b16 %v2427
        %v2691 = vunpack.c.l.b16 %v2428
        %v2692 = vunpack.c.l.b16 %v2429
        %v2693 = vunpack.c.l.b16 %v2430
        %v2694 = vunpack.c.l.b16 %v2431
        %v2695 = vunpack.c.l.b16 %v2432
        %v2696 = vunpack.c.l.b16 %v2433
        %v2697 = vunpack.c.l.b16 %v2434
        %v2698 = vunpack.c.l.b16 %v2435
        %v2699 = vunpack.c.l.b16 %v2436
        %v2700 = vunpack.c.l.b16 %v2437
        %v2701 = vunpack.c.l.b16 %v2438
        %v2702 = vunpack.c.l.b16 %v2439
        %v2703 = vunpack.c.l.b16 %v2440
        %v2704 = vunpack.c.l.b16 %v2441
        %v2705 = vunpack.c.l.b16 %v2442
        %v2706 = vunpack.c.l.b16 %v2443
        %v2707 = vunpack.c.l.b16 %v2444
        %v2708 = vpack.c.b16 %v2581, %v2580
        %v2709 = vpack.c.b16 %v2583, %v2582
        %v2710 = vpack.c.b16 %v2585, %v2584
        %v2711 = vpack.c.b16 %v2587, %v2586
        %v2712 = vpack.c.b16 %v2589, %v2588
        %v2713 = vpack.c.b16 %v2591, %v2590
        %v2714 = vpack.c.b16 %v2593, %v2592
        %v2715 = vpack.c.b16 %v2595, %v2594
        %v2716 = vpack.c.b16 %v2597, %v2596
        %v2717 = vpack.c.b16 %v2599, %v2598
        %v2718 = vpack.c.b16 %v2601, %v2600
        %v2719 = vpack.c.b16 %v2603, %v2602
        %v2720 = vpack.c.b16 %v2605, %v2604
        %v2721 = vpack.c.b16 %v2607, %v2606
        %v2722 = vpack.c.b16 %v2609, %v2608
        %v2723 = vpack.c.b16 %v2611, %v2610
        %v2724 = vpack.c.b16 %v2613, %v2612
        %v2725 = vpack.c.b16 %v2615, %v2614
        %v2726 = vpack.c.b16 %v2617, %v2616
        %v2727 = vpack.c.b16 %v2619, %v2618
        %v2728 = vpack.c.b16 %v2621, %v2620
        %v2729 = vpack.c.b16 %v2623, %v2622
        %v2730 = vpack.c.b16 %v2625, %v2624
        %v2731 = vpack.c.b16 %v2627, %v2626
        %v2732 = vpack.c.b16 %v2629, %v2628
        %v2733 = vpack.c.b16 %v2631, %v2630
        %v2734 = vpack.c.b16 %v2633, %v2632
        %v2735 = vpack.c.b16 %v2635, %v2634
        %v2736 = vpack.c.b16 %v2637, %v2636
        %v2737 = vpack.c.b16 %v2639, %v2638
        %v2738 = vpack.c.b16 %v2641, %v2640
        %v2739 = vpack.c.b16 %v2643, %v2642
        %v2740 = vpack.c.b16 %v2645, %v2644
        %v2741 = vpack.c.b16 %v2647, %v2646
        %v2742 = vpack.c.b16 %v2649, %v2648
        %v2743 = vpack.c.b16 %v2651, %v2650
        %v2744 = vpack.c.b16 %v2653, %v2652
        %v2745 = vpack.c.b16 %v2655, %v2654
        %v2746 = vpack.c.b16 %v2657, %v2656
        %v2747 = vpack.c.b16 %v2659, %v2658
        %v2748 = vpack.c.b16 %v2661, %v2660
        %v2749 = vpack.c.b16 %v2663, %v2662
        %v2750 = vpack.c.b16 %v2665, %v2664
        %v2751 = vpack.c.b16 %v2667, %v2666
        %v2752 = vpack.c.b16 %v2669, %v2668
        %v2753 = vpack.c.b16 %v2671, %v2670
        %v2754 = vpack.c.b16 %v2673, %v2672
        %v2755 = vpack.c.b16 %v2675, %v2674
        %v2756 = vpack.c.b16 %v2677, %v2676
        %v2757 = vpack.c.b16 %v2679, %v2678
        %v2758 = vpack.c.b16 %v2681, %v2680
        %v2759 = vpack.c.b16 %v2683, %v2682
        %v2760 = vpack.c.b16 %v2685, %v2684
        %v2761 = vpack.c.b16 %v2687, %v2686
        %v2762 = vpack.c.b16 %v2689, %v2688
        %v2763 = vpack.c.b16 %v2691, %v2690
        %v2764 = vpack.c.b16 %v2693, %v2692
        %v2765 = vpack.c.b16 %v2695, %v2694
        %v2766 = vpack.c.b16 %v2697, %v2696
        %v2767 = vpack.c.b16 %v2699, %v2698
        %v2768 = vpack.c.b16 %v2701, %v2700
        %v2769 = vpack.c.b16 %v2703, %v2702
        %v2770 = vpack.c.b16 %v2705, %v2704
        %v2771 = vpack.c.b16 %v2707, %v2706
        %2836 = vmatprep.subr.bf16.mxu0 0
        %2837 = vmatpush1.bf16.msra.mxu0 %v2708
        %2838 = vmatprep.subr.bf16.mxu0 0
        %2839 = vmatpush1.bf16.msra.mxu0 %v2709
        %2840 = vmatprep.subr.bf16.mxu0 0
        %2841 = vmatpush1.bf16.msra.mxu0 %v2710
        %2842 = vmatprep.subr.bf16.mxu0 0
        %2843 = vmatpush1.bf16.msra.mxu0 %v2711
        %2844 = vmatprep.subr.bf16.mxu0 0
        %2845 = vmatpush1.bf16.msra.mxu0 %v2712
        %2846 = vmatprep.subr.bf16.mxu0 0
        %2847 = vmatpush1.bf16.msra.mxu0 %v2713
        %2848 = vmatprep.subr.bf16.mxu0 0
        %2849 = vmatpush1.bf16.msra.mxu0 %v2714
        %2850 = vmatprep.subr.bf16.mxu0 0
        %2851 = vmatpush1.bf16.msra.mxu0 %v2715
        %2852 = vmatprep.subr.bf16.mxu0 0
        %2853 = vmatpush1.bf16.msra.mxu0 %v2716
        %2854 = vmatprep.subr.bf16.mxu0 0
        %2855 = vmatpush1.bf16.msra.mxu0 %v2717
        %2856 = vmatprep.subr.bf16.mxu0 0
        %2857 = vmatpush1.bf16.msra.mxu0 %v2718
        %2858 = vmatprep.subr.bf16.mxu0 0
        %2859 = vmatpush1.bf16.msra.mxu0 %v2719
        %2860 = vmatprep.subr.bf16.mxu0 0
        %2861 = vmatpush1.bf16.msra.mxu0 %v2720
        %2862 = vmatprep.subr.bf16.mxu0 0
        %2863 = vmatpush1.bf16.msra.mxu0 %v2721
        %2864 = vmatprep.subr.bf16.mxu0 0
        %2865 = vmatpush1.bf16.msra.mxu0 %v2722
        %2866 = vmatprep.subr.bf16.mxu0 0
        %2867 = vmatpush1.bf16.msra.mxu0 %v2723
        %2868 = vmatprep.mubr.bf16.mxu0 %v2310
        %2869 = vmatmul.mubr.bf16.gmra.mrb[0].mxu0 %v2309
        %v2870 = vpop.f32.mrb[0].mxu0
        %v2871 = vadd.f32 %v2450, %v2870
        %v2872 = vpop.f32.mrb[0].mxu0
        %v2873 = vpop.f32.mrb[0].mxu0
        %v2874 = vpop.f32.mrb[0].mxu0
        %2875 = vdwg.mxu0
        %2876 = vmatprep.subr.bf16.mxu0 0
        %2877 = vmatpush1.bf16.msra.mxu0 %v2724
        %2878 = vmatprep.subr.bf16.mxu0 0
        %2879 = vmatpush1.bf16.msra.mxu0 %v2725
        %2880 = vmatprep.subr.bf16.mxu0 0
        %2881 = vmatpush1.bf16.msra.mxu0 %v2726
        %2882 = vmatprep.subr.bf16.mxu0 0
        %2883 = vmatpush1.bf16.msra.mxu0 %v2727
        %2884 = vmatprep.subr.bf16.mxu0 0
        %2885 = vmatpush1.bf16.msra.mxu0 %v2728
        %2886 = vmatprep.subr.bf16.mxu0 0
        %2887 = vmatpush1.bf16.msra.mxu0 %v2729
        %2888 = vmatprep.subr.bf16.mxu0 0
        %2889 = vmatpush1.bf16.msra.mxu0 %v2730
        %2890 = vmatprep.subr.bf16.mxu0 0
        %2891 = vmatpush1.bf16.msra.mxu0 %v2731
        %2892 = vmatprep.subr.bf16.mxu0 0
        %2893 = vmatpush1.bf16.msra.mxu0 %v2732
        %2894 = vmatprep.subr.bf16.mxu0 0
        %2895 = vmatpush1.bf16.msra.mxu0 %v2733
        %2896 = vmatprep.subr.bf16.mxu0 0
        %2897 = vmatpush1.bf16.msra.mxu0 %v2734
        %2898 = vmatprep.subr.bf16.mxu0 0
        %2899 = vmatpush1.bf16.msra.mxu0 %v2735
        %2900 = vmatprep.subr.bf16.mxu0 0
        %2901 = vmatpush1.bf16.msra.mxu0 %v2736
        %2902 = vmatprep.subr.bf16.mxu0 0
        %2903 = vmatpush1.bf16.msra.mxu0 %v2737
        %2904 = vmatprep.subr.bf16.mxu0 0
        %2905 = vmatpush1.bf16.msra.mxu0 %v2738
        %2906 = vmatprep.subr.bf16.mxu0 0
        %2907 = vmatpush1.bf16.msra.mxu0 %v2739
        %2908 = vmatprep.mubr.bf16.mxu0 %v2312
        %2909 = vmatmul.mubr.bf16.gmra.mrb[0].mxu0 %v2311
        %v2910 = vpop.f32.mrb[0].mxu0
        %v2911 = vadd.f32 %v2871, %v2910
        %v2912 = vpop.f32.mrb[0].mxu0
        %v2913 = vpop.f32.mrb[0].mxu0
        %v2914 = vpop.f32.mrb[0].mxu0
        %2915 = vdwg.mxu0
        %2916 = vmatprep.subr.bf16.mxu0 0
        %2917 = vmatpush1.bf16.msra.mxu0 %v2740
        %2918 = vmatprep.subr.bf16.mxu0 0
        %2919 = vmatpush1.bf16.msra.mxu0 %v2741
        %2920 = vmatprep.subr.bf16.mxu0 0
        %2921 = vmatpush1.bf16.msra.mxu0 %v2742
        %2922 = vmatprep.subr.bf16.mxu0 0
        %2923 = vmatpush1.bf16.msra.mxu0 %v2743
        %2924 = vmatprep.subr.bf16.mxu0 0
        %2925 = vmatpush1.bf16.msra.mxu0 %v2744
        %2926 = vmatprep.subr.bf16.mxu0 0
        %2927 = vmatpush1.bf16.msra.mxu0 %v2745
        %2928 = vmatprep.subr.bf16.mxu0 0
        %2929 = vmatpush1.bf16.msra.mxu0 %v2746
        %2930 = vmatprep.subr.bf16.mxu0 0
        %2931 = vmatpush1.bf16.msra.mxu0 %v2747
        %2932 = vmatprep.subr.bf16.mxu0 0
        %2933 = vmatpush1.bf16.msra.mxu0 %v2748
        %2934 = vmatprep.subr.bf16.mxu0 0
        %2935 = vmatpush1.bf16.msra.mxu0 %v2749
        %2936 = vmatprep.subr.bf16.mxu0 0
        %2937 = vmatpush1.bf16.msra.mxu0 %v2750
        %2938 = vmatprep.subr.bf16.mxu0 0
        %2939 = vmatpush1.bf16.msra.mxu0 %v2751
        %2940 = vmatprep.subr.bf16.mxu0 0
        %2941 = vmatpush1.bf16.msra.mxu0 %v2752
        %2942 = vmatprep.subr.bf16.mxu0 0
        %2943 = vmatpush1.bf16.msra.mxu0 %v2753
        %2944 = vmatprep.subr.bf16.mxu0 0
        %2945 = vmatpush1.bf16.msra.mxu0 %v2754
        %2946 = vmatprep.subr.bf16.mxu0 0
        %2947 = vmatpush1.bf16.msra.mxu0 %v2755
        %2948 = vmatprep.mubr.bf16.mxu0 %v2314
        %2949 = vmatmul.mubr.bf16.gmra.mrb[0].mxu0 %v2313
        %v2950 = vpop.f32.mrb[0].mxu0
        %v2951 = vadd.f32 %v2911, %v2950
        %v2952 = vpop.f32.mrb[0].mxu0
        %v2953 = vpop.f32.mrb[0].mxu0
        %v2954 = vpop.f32.mrb[0].mxu0
        %2955 = vdwg.mxu0
        %2956 = vmatprep.subr.bf16.mxu0 0
        %2957 = vmatpush1.bf16.msra.mxu0 %v2756
        %2958 = vmatprep.subr.bf16.mxu0 0
        %2959 = vmatpush1.bf16.msra.mxu0 %v2757
        %2960 = vmatprep.subr.bf16.mxu0 0
        %2961 = vmatpush1.bf16.msra.mxu0 %v2758
        %2962 = vmatprep.subr.bf16.mxu0 0
        %2963 = vmatpush1.bf16.msra.mxu0 %v2759
        %2964 = vmatprep.subr.bf16.mxu0 0
        %2965 = vmatpush1.bf16.msra.mxu0 %v2760
        %2966 = vmatprep.subr.bf16.mxu0 0
        %2967 = vmatpush1.bf16.msra.mxu0 %v2761
        %2968 = vmatprep.subr.bf16.mxu0 0
        %2969 = vmatpush1.bf16.msra.mxu0 %v2762
        %2970 = vmatprep.subr.bf16.mxu0 0
        %2971 = vmatpush1.bf16.msra.mxu0 %v2763
        %2972 = vmatprep.subr.bf16.mxu0 0
        %2973 = vmatpush1.bf16.msra.mxu0 %v2764
        %2974 = vmatprep.subr.bf16.mxu0 0
        %2975 = vmatpush1.bf16.msra.mxu0 %v2765
        %2976 = vmatprep.subr.bf16.mxu0 0
        %2977 = vmatpush1.bf16.msra.mxu0 %v2766
        %2978 = vmatprep.subr.bf16.mxu0 0
        %2979 = vmatpush1.bf16.msra.mxu0 %v2767
        %2980 = vmatprep.subr.bf16.mxu0 0
        %2981 = vmatpush1.bf16.msra.mxu0 %v2768
        %2982 = vmatprep.subr.bf16.mxu0 0
        %2983 = vmatpush1.bf16.msra.mxu0 %v2769
        %2984 = vmatprep.subr.bf16.mxu0 0
        %2985 = vmatpush1.bf16.msra.mxu0 %v2770
        %2986 = vmatprep.subr.bf16.mxu0 0
        %2987 = vmatpush1.bf16.msra.mxu0 %v2771
        %2988 = vmatprep.mubr.bf16.mxu0 %v2316
        %2989 = vmatmul.mubr.bf16.gmra.mrb[0].mxu0 %v2315
        %v2990 = vpop.f32.mrb[0].mxu0
        %v2991 = vadd.f32 %v2951, %v2990
        %v2992 = vpop.f32.mrb[0].mxu0
        %v2993 = vpop.f32.mrb[0].mxu0
        %v2994 = vpop.f32.mrb[0].mxu0
        %2995 = vdwg.mxu0
        %2996 = vst [vmem:[%s5] sm:$0x3] %v2991
      $region48: #{complex_cnn_forward.5} parent=39 // pred_fallthru
        _
      // Predicated region
      $region49: #{complex_cnn_forward.5} parent=39 // pred_check
        %p2997 = pneg %p144
      $region50: #{complex_cnn_forward.5} parent=39 // pred_check_branch
        %2999 = sbr.rel (%p2997) target = $region52
      $region51: #{complex_cnn_forward.5} parent=39 // pred_region
        _
      $region52: #{complex_cnn_forward.5} parent=39 // pred_fallthru
        _
      // Predicated region
      $region53: #{complex_cnn_forward.5} parent=39 // pred_check
        %p3000 = pneg %p144
      $region54: #{complex_cnn_forward.5} parent=39 // pred_check_branch
        %3002 = sbr.rel (%p3000) target = $region56
      $region55: #{complex_cnn_forward.5} parent=39 // pred_region
        _
      $region56: #{complex_cnn_forward.5} parent=39 // pred_fallthru
        _
    $region40: #{complex_cnn_forward.5} parent=5 // pred_fallthru
      _
    %p3003 = scmp.le.s32.totalorder 2, %s11
    // Predicated region
    $region57: #{complex_cnn_forward.5} parent=5 // pred_check
      %p3004 = pneg %p3003
    $region58: #{complex_cnn_forward.5} parent=5 // pred_check_branch
      %3006 = sbr.rel (%p3004) target = $region60
    $region59: #{complex_cnn_forward.5} parent=5 // pred_region
      %s3007 = ssub.s32 %s11, 2
    $region60: #{complex_cnn_forward.5} parent=5 // pred_fallthru
      _
  $region6: #{complex_cnn_forward.5} parent=0 // loop_footer
    %s15 = sadd.s32 1, %s11
  $region7: #{complex_cnn_forward.5} parent=0 // loop_footer_branch
    %10 = sbr.rel target = $region3
  $region8: #{complex_cnn_forward.5} parent=0 // loop_exit
    _

</llo_original>
